<compile_context>
chip_gen: v7x
topology: tpu7x:2x2x1
jax: 0.10.0
libtpu: 0.0.40
codegen_flags: <defaults>
</compile_context>

<pallas_src>
import jax
import jax.numpy as jnp
from jax.experimental import pallas as pl
from jax.experimental.pallas import tpu as pltpu


def _leaky_relu(x, slope=0.2):
    return jnp.where(x > 0, x, slope * x)


def _batchnorm_train(x, gamma, beta, eps=1e-5):
    # BatchNorm1d training-mode: normalize over the batch axis, biased variance.
    mean = jnp.mean(x, axis=0, keepdims=True)
    diff = x - mean
    var = jnp.mean(diff * diff, axis=0, keepdims=True)
    return diff * jax.lax.rsqrt(var + eps) * gamma + beta


def discriminator_kernel(
    x_ref, lab_ref,
    w11_ref, b11_ref,            # fc1_1: 784 -> 1024         (w bf16)
    t_ref,                       # folded label table (10,512) f32
    w2t_ref, b2_ref,             # fc2 top half: 1024 -> 512  (w bf16)
    g2_ref, beta2_ref,           # fc2_bn
    w3_ref, b3_ref,              # fc3: 512 -> 256            (w bf16)
    g3_ref, beta3_ref,           # fc3_bn
    w4_ref, b4_ref,              # fc4: 256 -> 1  (w4 stored as (1,256) f32 row)
    out_ref,
):
    # x = leaky_relu(fc1_1(input), 0.2)     -- x already bf16 (cast in wrapper)
    h_x = jnp.dot(x_ref[...], w11_ref[...],
                  preferred_element_type=jnp.float32) + b11_ref[...]
    h_x = _leaky_relu(h_x)

    # Label branch folded into a 10-row table (exact for one-hot labels):
    #   leaky_relu(onehot @ w12 + b12) @ w2_bot == onehot @ T
    lab_z2 = jnp.dot(lab_ref[...], t_ref[...],
                     preferred_element_type=jnp.float32)

    # x = leaky_relu(fc2_bn(fc2(cat([x, y], 1))), 0.2)  -- concat eliminated
    z2 = (
        jnp.dot(h_x.astype(jnp.bfloat16), w2t_ref[...],
                preferred_element_type=jnp.float32)
        + lab_z2
        + b2_ref[...]
    )
    z2 = _leaky_relu(_batchnorm_train(z2, g2_ref[...], beta2_ref[...]))

    # x = leaky_relu(fc3_bn(fc3(x)), 0.2)
    z3 = jnp.dot(z2.astype(jnp.bfloat16), w3_ref[...],
                 preferred_element_type=jnp.float32) + b3_ref[...]
    z3 = _leaky_relu(_batchnorm_train(z3, g3_ref[...], beta3_ref[...]))

    # x = sigmoid(fc4(x))  -- N=1: lane reduce instead of a wasted MXU pass.
    z4 = jnp.sum(z3 * w4_ref[...], axis=-1, keepdims=True) + b4_ref[...]
    out_ref[...] = jax.nn.sigmoid(z4)


def discriminator_forward(x, label, kparams):
    """Forward pass.

    x:     (B, 784) or (G, B, 784)   -- G groups share one weight DMA stream.
    label: (B, 10)  or (G, B, 10)    -- one-hot class labels.

    Each group gets independent training-mode BatchNorm statistics, matching
    G separate calls of the PyTorch module (use G=2 to fuse the real/fake
    discriminator calls of a GAN step and halve the weight traffic).
    """
    squeeze = x.ndim == 2
    if squeeze:
        x, label = x[None], label[None]
    G, B, _ = x.shape

    # Pre-cast inputs in the wrapper (less HBM traffic, no in-kernel cast).
    x = x.astype(jnp.bfloat16)
    label = label.astype(jnp.float32)

    weights = (
        kparams["w11"], kparams["b11"],
        kparams["T"],
        kparams["w2_top"], kparams["b2"],
        kparams["g2"], kparams["beta2"],
        kparams["w3"], kparams["b3"],
        kparams["g3"], kparams["beta3"],
        kparams["w4"], kparams["b4"],
    )

    def resident(arr):
        # Whole array as the block, same block index every grid step ->
        # Pallas keeps it VMEM-resident (no re-DMA across groups).
        return pl.BlockSpec(arr.shape, lambda g, n=arr.ndim: (0,) * n)

    def act_spec(feat):
        return pl.BlockSpec((None, B, feat), lambda g: (g, 0, 0))

    out = pl.pallas_call(
        discriminator_kernel,
        out_shape=jax.ShapeDtypeStruct((G, B, 1), jnp.float32),
        grid=(G,),
        in_specs=[act_spec(784), act_spec(10)] + [resident(w) for w in weights],
        out_specs=pl.BlockSpec((None, B, 1), lambda g: (g, 0, 0)),
        compiler_params=pltpu.CompilerParams(
            dimension_semantics=("arbitrary",),
            vmem_limit_bytes=32 << 20,
        ),
    )(x, label, *weights)

    return out[0] if squeeze else out


# ----------------------------------------------------------------------------
# Parameter construction (synthetic, matching the PyTorch weight_init(0, 0.02))
# ----------------------------------------------------------------------------

def init_model_params(key):
    """Full-precision model parameters: normal(0, 0.02) weights, zero biases,
    unit gamma / zero beta for the BatchNorm layers (PyTorch defaults)."""
    std = 0.02
    ks = jax.random.split(key, 5)

    def lin(k, fan_in, fan_out):
        w = jax.random.normal(k, (fan_in, fan_out), jnp.float32) * std
        b = jnp.zeros((1, fan_out), jnp.float32)
        return w, b

    w11, b11 = lin(ks[0], 784, 1024)
    w12, b12 = lin(ks[1], 10, 1024)
    w2, b2 = lin(ks[2], 2048, 512)
    w3, b3 = lin(ks[3], 512, 256)
    w4, b4 = lin(ks[4], 256, 1)
    return dict(
        w11=w11, b11=b11, w12=w12, b12=b12,
        w2=w2, b2=b2,
        g2=jnp.ones((1, 512), jnp.float32), beta2=jnp.zeros((1, 512), jnp.float32),
        w3=w3, b3=b3,
        g3=jnp.ones((1, 256), jnp.float32), beta3=jnp.zeros((1, 256), jnp.float32),
        w4=w4, b4=b4,
    )


def prepare_kernel_params(p):
    """Kernel-side parameters: bf16 matmul weights, fc2 split, label table."""
    w2_top = p["w2"][:1024, :]
    w2_bot = p["w2"][1024:, :]
    # Fold the one-hot label path: T[c] = leaky_relu(w12[c] + b12) @ w2_bot.
    table = _leaky_relu(p["w12"] + p["b12"]) @ w2_bot       # (10, 512) f32
    return dict(
        w11=p["w11"].astype(jnp.bfloat16), b11=p["b11"],
        T=table,
        w2_top=w2_top.astype(jnp.bfloat16), b2=p["b2"],
        g2=p["g2"], beta2=p["beta2"],
        w3=p["w3"].astype(jnp.bfloat16), b3=p["b3"],
        g3=p["g3"], beta3=p["beta3"],
        w4=p["w4"].T,                       # (1, 256) f32 row for the lane-reduce
        b4=p["b4"].reshape(1, 1),
    )


# ----------------------------------------------------------------------------
# References
# ----------------------------------------------------------------------------

def reference_matched(x, lab, kp):
    """Pure-JAX reference with the same mixed precision / label folding."""
    xb = x.astype(jnp.bfloat16)
    hx = _leaky_relu(
        jnp.dot(xb, kp["w11"], preferred_element_type=jnp.float32) + kp["b11"])
    z2 = (jnp.dot(hx.astype(jnp.bfloat16), kp["w2_top"],
                  preferred_element_type=jnp.float32)
          + jnp.dot(lab.astype(jnp.float32), kp["T"],
                    preferred_element_type=jnp.float32)
          + kp["b2"])
    z2 = _leaky_relu(_batchnorm_train(z2, kp["g2"], kp["beta2"]))
    z3 = jnp.dot(z2.astype(jnp.bfloat16), kp["w3"],
                 preferred_element_type=jnp.float32) + kp["b3"]
    z3 = _leaky_relu(_batchnorm_train(z3, kp["g3"], kp["beta3"]))
    z4 = jnp.sum(z3 * kp["w4"], axis=-1, keepdims=True) + kp["b4"]
    return jax.nn.sigmoid(z4)


def reference_f32(x, lab, p):
    """Full-f32 reference of the original PyTorch forward (concat kept)."""
    hx = _leaky_relu(x @ p["w11"] + p["b11"])
    hy = _leaky_relu(lab @ p["w12"] + p["b12"])
    h = jnp.concatenate([hx, hy], axis=1)
    z2 = _leaky_relu(_batchnorm_train(h @ p["w2"] + p["b2"], p["g2"], p["beta2"]))
    z3 = _leaky_relu(_batchnorm_train(z2 @ p["w3"] + p["b3"], p["g3"], p["beta3"]))
    z4 = z3 @ p["w4"] + p["b4"]
    return jax.nn.sigmoid(z4)


if __name__ == "__main__":
    key = jax.random.PRNGKey(0)
    k_x, k_lab, k_p = jax.random.split(key, 3)

    # Two groups (e.g. the "real" and "fake" batches of one GAN step) fused
    # into a single weight stream; B > 1 so BatchNorm statistics are defined.
    G, B = 2, 8
    x = jax.random.normal(k_x, (G, B, 784), jnp.float32)
    lab_idx = jax.random.randint(k_lab, (G, B), 0, 10)
    label = jax.nn.one_hot(lab_idx, 10, dtype=jnp.float32)

    model_params = init_model_params(k_p)
    kernel_params = prepare_kernel_params(model_params)

    out = discriminator_forward(x, label, kernel_params)
    out = jax.block_until_ready(out)
    assert out.shape == (G, B, 1)

    # Tight check vs a reference using identical mixed precision / folding.
    ref_m = jnp.stack(
        [reference_matched(x[g], label[g], kernel_params) for g in range(G)])
    assert jnp.allclose(out, ref_m, atol=1e-4, rtol=1e-4), (
        f"max diff vs matched ref: {jnp.max(jnp.abs(out - ref_m))}")

    # Loose check vs the full-f32 original forward (bf16-weight approximation).
    ref_f = jnp.stack(
        [reference_f32(x[g], label[g], model_params) for g in range(G)])
    assert jnp.allclose(out, ref_f, atol=5e-2), (
        f"max diff vs f32 ref: {jnp.max(jnp.abs(out - ref_f))}")

    # Single-batch convenience path matches its group in the fused call.
    out1 = discriminator_forward(x[0], label[0], kernel_params)
    out1 = jax.block_until_ready(out1)
    assert out1.shape == (B, 1)
    assert jnp.allclose(out1, out[0], atol=1e-5), (
        f"single-batch path mismatch: {jnp.max(jnp.abs(out1 - out[0]))}")

    print("KERNEL_OK")
</pallas_src>

<mosaic_0001>
module attributes {stable_mosaic.version = 11 : i64} {
  func.func @discriminator_kernel(%arg0: i32, %arg1: memref<1x8x784xbf16, #tpu.memory_space<vmem>>, %arg2: memref<1x8x10xf32, #tpu.memory_space<vmem>>, %arg3: memref<784x1024xbf16, #tpu.memory_space<vmem>>, %arg4: memref<1x1024xf32, #tpu.memory_space<vmem>>, %arg5: memref<10x512xf32, #tpu.memory_space<vmem>>, %arg6: memref<1024x512xbf16, #tpu.memory_space<vmem>>, %arg7: memref<1x512xf32, #tpu.memory_space<vmem>>, %arg8: memref<1x512xf32, #tpu.memory_space<vmem>>, %arg9: memref<1x512xf32, #tpu.memory_space<vmem>>, %arg10: memref<512x256xbf16, #tpu.memory_space<vmem>>, %arg11: memref<1x256xf32, #tpu.memory_space<vmem>>, %arg12: memref<1x256xf32, #tpu.memory_space<vmem>>, %arg13: memref<1x256xf32, #tpu.memory_space<vmem>>, %arg14: memref<1x256xf32, #tpu.memory_space<vmem>>, %arg15: memref<1x1xf32, #tpu.memory_space<vmem>>, %arg16: memref<1x8x1xf32, #tpu.memory_space<vmem>>) attributes {dimension_semantics = [#tpu.dimension_semantics<arbitrary>], iteration_bounds = array<i64: 2>, scalar_prefetch = 0 : i64, scratch_operands = 0 : i64, tpu.core_type = #tpu.core_type<tc>, window_params = [{transform_indices = @transform_0, window_bounds = array<i64: 1, 8, 784>}, {transform_indices = @transform_1, window_bounds = array<i64: 1, 8, 10>}, {pipeline_mode = #tpu.pipeline_mode<synchronous>, transform_indices = @transform_2, window_bounds = array<i64: 784, 1024>}, {pipeline_mode = #tpu.pipeline_mode<synchronous>, transform_indices = @transform_3, window_bounds = array<i64: 1, 1024>}, {pipeline_mode = #tpu.pipeline_mode<synchronous>, transform_indices = @transform_4, window_bounds = array<i64: 10, 512>}, {pipeline_mode = #tpu.pipeline_mode<synchronous>, transform_indices = @transform_5, window_bounds = array<i64: 1024, 512>}, {pipeline_mode = #tpu.pipeline_mode<synchronous>, transform_indices = @transform_6, window_bounds = array<i64: 1, 512>}, {pipeline_mode = #tpu.pipeline_mode<synchronous>, transform_indices = @transform_7, window_bounds = array<i64: 1, 512>}, {pipeline_mode = #tpu.pipeline_mode<synchronous>, transform_indices = @transform_8, window_bounds = array<i64: 1, 512>}, {pipeline_mode = #tpu.pipeline_mode<synchronous>, transform_indices = @transform_9, window_bounds = array<i64: 512, 256>}, {pipeline_mode = #tpu.pipeline_mode<synchronous>, transform_indices = @transform_10, window_bounds = array<i64: 1, 256>}, {pipeline_mode = #tpu.pipeline_mode<synchronous>, transform_indices = @transform_11, window_bounds = array<i64: 1, 256>}, {pipeline_mode = #tpu.pipeline_mode<synchronous>, transform_indices = @transform_12, window_bounds = array<i64: 1, 256>}, {pipeline_mode = #tpu.pipeline_mode<synchronous>, transform_indices = @transform_13, window_bounds = array<i64: 1, 256>}, {pipeline_mode = #tpu.pipeline_mode<synchronous>, transform_indices = @transform_14, window_bounds = array<i64: 1, 1>}, {transform_indices = @transform_15, window_bounds = array<i64: 1, 8, 1>}]} {
    %c0 = arith.constant 0 : index
    %c0_0 = arith.constant 0 : index
    %c0_1 = arith.constant 0 : index
    %0 = vector.load %arg1[%c0, %c0_0, %c0_1] : memref<1x8x784xbf16, #tpu.memory_space<vmem>>, vector<1x8x784xbf16>
    %1 = vector.shape_cast %0 : vector<1x8x784xbf16> to vector<8x784xbf16>
    %c0_2 = arith.constant 0 : index
    %c0_3 = arith.constant 0 : index
    %2 = vector.load %arg3[%c0_2, %c0_3] : memref<784x1024xbf16, #tpu.memory_space<vmem>>, vector<784x1024xbf16>
    %cst = arith.constant dense<0.000000e+00> : vector<8x1024xf32>
    %3 = tpu.matmul %1, %2, %cst {dimension_numbers = #tpu.dot_dimension_numbers<[1], [0], [0], [1], [0, 0, 1, 1], [], []>} : vector<8x784xbf16>, vector<784x1024xbf16>, vector<8x1024xf32> -> vector<8x1024xf32>
    %c0_4 = arith.constant 0 : index
    %c0_5 = arith.constant 0 : index
    %4 = vector.load %arg4[%c0_4, %c0_5] : memref<1x1024xf32, #tpu.memory_space<vmem>>, vector<1x1024xf32>
    %5 = vector.broadcast %4 : vector<1x1024xf32> to vector<8x1024xf32>
    %6 = arith.addf %3, %5 : vector<8x1024xf32>
    %cst_6 = arith.constant 0.000000e+00 : f32
    %7 = vector.broadcast %cst_6 : f32 to vector<8x1024xf32>
    %8 = arith.cmpf ogt, %6, %7 : vector<8x1024xf32>
    %cst_7 = arith.constant 2.000000e-01 : f32
    %9 = vector.broadcast %cst_7 : f32 to vector<8x1024xf32>
    %10 = arith.mulf %9, %6 : vector<8x1024xf32>
    %11 = arith.select %8, %6, %10 : vector<8x1024xi1>, vector<8x1024xf32>
    %c0_8 = arith.constant 0 : index
    %c0_9 = arith.constant 0 : index
    %c0_10 = arith.constant 0 : index
    %12 = vector.load %arg2[%c0_8, %c0_9, %c0_10] : memref<1x8x10xf32, #tpu.memory_space<vmem>>, vector<1x8x10xf32>
    %13 = vector.shape_cast %12 : vector<1x8x10xf32> to vector<8x10xf32>
    %c0_11 = arith.constant 0 : index
    %c0_12 = arith.constant 0 : index
    %14 = vector.load %arg5[%c0_11, %c0_12] : memref<10x512xf32, #tpu.memory_space<vmem>>, vector<10x512xf32>
    %cst_13 = arith.constant dense<0.000000e+00> : vector<8x512xf32>
    %15 = tpu.matmul %13, %14, %cst_13 {dimension_numbers = #tpu.dot_dimension_numbers<[1], [0], [0], [1], [0, 0, 1, 1], [], []>} : vector<8x10xf32>, vector<10x512xf32>, vector<8x512xf32> -> vector<8x512xf32>
    %16 = arith.truncf %11 : vector<8x1024xf32> to vector<8x1024xbf16>
    %c0_14 = arith.constant 0 : index
    %c0_15 = arith.constant 0 : index
    %17 = vector.load %arg6[%c0_14, %c0_15] : memref<1024x512xbf16, #tpu.memory_space<vmem>>, vector<1024x512xbf16>
    %cst_16 = arith.constant dense<0.000000e+00> : vector<8x512xf32>
    %18 = tpu.matmul %16, %17, %cst_16 {dimension_numbers = #tpu.dot_dimension_numbers<[1], [0], [0], [1], [0, 0, 1, 1], [], []>} : vector<8x1024xbf16>, vector<1024x512xbf16>, vector<8x512xf32> -> vector<8x512xf32>
    %19 = arith.addf %18, %15 : vector<8x512xf32>
    %c0_17 = arith.constant 0 : index
    %c0_18 = arith.constant 0 : index
    %20 = vector.load %arg7[%c0_17, %c0_18] : memref<1x512xf32, #tpu.memory_space<vmem>>, vector<1x512xf32>
    %21 = vector.broadcast %20 : vector<1x512xf32> to vector<8x512xf32>
    %22 = arith.addf %19, %21 : vector<8x512xf32>
    %c0_19 = arith.constant 0 : index
    %c0_20 = arith.constant 0 : index
    %23 = vector.load %arg8[%c0_19, %c0_20] : memref<1x512xf32, #tpu.memory_space<vmem>>, vector<1x512xf32>
    %c0_21 = arith.constant 0 : index
    %c0_22 = arith.constant 0 : index
    %24 = vector.load %arg9[%c0_21, %c0_22] : memref<1x512xf32, #tpu.memory_space<vmem>>, vector<1x512xf32>
    %cst_23 = arith.constant dense<0.000000e+00> : vector<512xf32>
    %25 = vector.multi_reduction <add>, %22, %cst_23 [0] : vector<8x512xf32> to vector<512xf32>
    %26 = vector.shape_cast %25 : vector<512xf32> to vector<1x512xf32>
    %cst_24 = arith.constant 8.000000e+00 : f32
    %27 = vector.broadcast %cst_24 : f32 to vector<1x512xf32>
    %28 = arith.divf %26, %27 : vector<1x512xf32>
    %29 = vector.broadcast %28 : vector<1x512xf32> to vector<8x512xf32>
    %30 = arith.subf %22, %29 : vector<8x512xf32>
    %31 = arith.mulf %30, %30 : vector<8x512xf32>
    %cst_25 = arith.constant dense<0.000000e+00> : vector<512xf32>
    %32 = vector.multi_reduction <add>, %31, %cst_25 [0] : vector<8x512xf32> to vector<512xf32>
    %33 = vector.shape_cast %32 : vector<512xf32> to vector<1x512xf32>
    %cst_26 = arith.constant 8.000000e+00 : f32
    %34 = vector.broadcast %cst_26 : f32 to vector<1x512xf32>
    %35 = arith.divf %33, %34 : vector<1x512xf32>
    %cst_27 = arith.constant 9.99999974E-6 : f32
    %36 = vector.broadcast %cst_27 : f32 to vector<1x512xf32>
    %37 = arith.addf %35, %36 : vector<1x512xf32>
    %38 = math.rsqrt %37 : vector<1x512xf32>
    %39 = vector.broadcast %38 : vector<1x512xf32> to vector<8x512xf32>
    %40 = arith.mulf %30, %39 : vector<8x512xf32>
    %41 = vector.broadcast %23 : vector<1x512xf32> to vector<8x512xf32>
    %42 = arith.mulf %40, %41 : vector<8x512xf32>
    %43 = vector.broadcast %24 : vector<1x512xf32> to vector<8x512xf32>
    %44 = arith.addf %42, %43 : vector<8x512xf32>
    %cst_28 = arith.constant 0.000000e+00 : f32
    %45 = vector.broadcast %cst_28 : f32 to vector<8x512xf32>
    %46 = arith.cmpf ogt, %44, %45 : vector<8x512xf32>
    %cst_29 = arith.constant 2.000000e-01 : f32
    %47 = vector.broadcast %cst_29 : f32 to vector<8x512xf32>
    %48 = arith.mulf %47, %44 : vector<8x512xf32>
    %49 = arith.select %46, %44, %48 : vector<8x512xi1>, vector<8x512xf32>
    %50 = arith.truncf %49 : vector<8x512xf32> to vector<8x512xbf16>
    %c0_30 = arith.constant 0 : index
    %c0_31 = arith.constant 0 : index
    %51 = vector.load %arg10[%c0_30, %c0_31] : memref<512x256xbf16, #tpu.memory_space<vmem>>, vector<512x256xbf16>
    %cst_32 = arith.constant dense<0.000000e+00> : vector<8x256xf32>
    %52 = tpu.matmul %50, %51, %cst_32 {dimension_numbers = #tpu.dot_dimension_numbers<[1], [0], [0], [1], [0, 0, 1, 1], [], []>} : vector<8x512xbf16>, vector<512x256xbf16>, vector<8x256xf32> -> vector<8x256xf32>
    %c0_33 = arith.constant 0 : index
    %c0_34 = arith.constant 0 : index
    %53 = vector.load %arg11[%c0_33, %c0_34] : memref<1x256xf32, #tpu.memory_space<vmem>>, vector<1x256xf32>
    %54 = vector.broadcast %53 : vector<1x256xf32> to vector<8x256xf32>
    %55 = arith.addf %52, %54 : vector<8x256xf32>
    %c0_35 = arith.constant 0 : index
    %c0_36 = arith.constant 0 : index
    %56 = vector.load %arg12[%c0_35, %c0_36] : memref<1x256xf32, #tpu.memory_space<vmem>>, vector<1x256xf32>
    %c0_37 = arith.constant 0 : index
    %c0_38 = arith.constant 0 : index
    %57 = vector.load %arg13[%c0_37, %c0_38] : memref<1x256xf32, #tpu.memory_space<vmem>>, vector<1x256xf32>
    %cst_39 = arith.constant dense<0.000000e+00> : vector<256xf32>
    %58 = vector.multi_reduction <add>, %55, %cst_39 [0] : vector<8x256xf32> to vector<256xf32>
    %59 = vector.shape_cast %58 : vector<256xf32> to vector<1x256xf32>
    %cst_40 = arith.constant 8.000000e+00 : f32
    %60 = vector.broadcast %cst_40 : f32 to vector<1x256xf32>
    %61 = arith.divf %59, %60 : vector<1x256xf32>
    %62 = vector.broadcast %61 : vector<1x256xf32> to vector<8x256xf32>
    %63 = arith.subf %55, %62 : vector<8x256xf32>
    %64 = arith.mulf %63, %63 : vector<8x256xf32>
    %cst_41 = arith.constant dense<0.000000e+00> : vector<256xf32>
    %65 = vector.multi_reduction <add>, %64, %cst_41 [0] : vector<8x256xf32> to vector<256xf32>
    %66 = vector.shape_cast %65 : vector<256xf32> to vector<1x256xf32>
    %cst_42 = arith.constant 8.000000e+00 : f32
    %67 = vector.broadcast %cst_42 : f32 to vector<1x256xf32>
    %68 = arith.divf %66, %67 : vector<1x256xf32>
    %cst_43 = arith.constant 9.99999974E-6 : f32
    %69 = vector.broadcast %cst_43 : f32 to vector<1x256xf32>
    %70 = arith.addf %68, %69 : vector<1x256xf32>
    %71 = math.rsqrt %70 : vector<1x256xf32>
    %72 = vector.broadcast %71 : vector<1x256xf32> to vector<8x256xf32>
    %73 = arith.mulf %63, %72 : vector<8x256xf32>
    %74 = vector.broadcast %56 : vector<1x256xf32> to vector<8x256xf32>
    %75 = arith.mulf %73, %74 : vector<8x256xf32>
    %76 = vector.broadcast %57 : vector<1x256xf32> to vector<8x256xf32>
    %77 = arith.addf %75, %76 : vector<8x256xf32>
    %cst_44 = arith.constant 0.000000e+00 : f32
    %78 = vector.broadcast %cst_44 : f32 to vector<8x256xf32>
    %79 = arith.cmpf ogt, %77, %78 : vector<8x256xf32>
    %cst_45 = arith.constant 2.000000e-01 : f32
    %80 = vector.broadcast %cst_45 : f32 to vector<8x256xf32>
    %81 = arith.mulf %80, %77 : vector<8x256xf32>
    %82 = arith.select %79, %77, %81 : vector<8x256xi1>, vector<8x256xf32>
    %c0_46 = arith.constant 0 : index
    %c0_47 = arith.constant 0 : index
    %83 = vector.load %arg14[%c0_46, %c0_47] : memref<1x256xf32, #tpu.memory_space<vmem>>, vector<1x256xf32>
    %84 = vector.broadcast %83 : vector<1x256xf32> to vector<8x256xf32>
    %85 = arith.mulf %82, %84 : vector<8x256xf32>
    %cst_48 = arith.constant dense<0.000000e+00> : vector<8xf32>
    %86 = vector.multi_reduction <add>, %85, %cst_48 [1] : vector<8x256xf32> to vector<8xf32>
    %87 = vector.shape_cast %86 : vector<8xf32> to vector<8x1xf32>
    %c0_49 = arith.constant 0 : index
    %c0_50 = arith.constant 0 : index
    %88 = vector.load %arg15[%c0_49, %c0_50] : memref<1x1xf32, #tpu.memory_space<vmem>>, vector<1x1xf32>
    %89 = vector.broadcast %88 : vector<1x1xf32> to vector<8x1xf32>
    %90 = arith.addf %87, %89 : vector<8x1xf32>
    %91 = arith.negf %90 : vector<8x1xf32>
    %92 = math.exp %91 : vector<8x1xf32>
    %cst_51 = arith.constant 1.000000e+00 : f32
    %93 = vector.broadcast %cst_51 : f32 to vector<8x1xf32>
    %94 = arith.addf %93, %92 : vector<8x1xf32>
    %95 = arith.divf %93, %94 : vector<8x1xf32>
    %c0_52 = arith.constant 0 : index
    %c0_53 = arith.constant 0 : index
    %c0_54 = arith.constant 0 : index
    %96 = vector.load %arg16[%c0_52, %c0_53, %c0_54] : memref<1x8x1xf32, #tpu.memory_space<vmem>>, vector<1x8x1xf32>
    %97 = vector.shape_cast %96 : vector<1x8x1xf32> to vector<8x1xf32>
    %98 = vector.shape_cast %95 : vector<8x1xf32> to vector<1x8x1xf32>
    tpu.vector_store %arg16[%c0_52, %c0_53, %c0_54], %98 {strides = array<i32>} : memref<1x8x1xf32, #tpu.memory_space<vmem>>, vector<1x8x1xf32>,
    return
  }
  func.func @transform_0(%arg0: i32) -> (i32, i32, i32) {
    %c0_i32 = arith.constant 0 : i32
    %c0_i32_0 = arith.constant 0 : i32
    %c0_i32_1 = arith.constant 0 : i32
    return %arg0, %c0_i32, %c0_i32_0 : i32, i32, i32
  }
  func.func @transform_1(%arg0: i32) -> (i32, i32, i32) {
    %c0_i32 = arith.constant 0 : i32
    %c0_i32_0 = arith.constant 0 : i32
    %c0_i32_1 = arith.constant 0 : i32
    return %arg0, %c0_i32, %c0_i32_0 : i32, i32, i32
  }
  func.func @transform_2(%arg0: i32) -> (i32, i32) {
    %c0_i32 = arith.constant 0 : i32
    %c0_i32_0 = arith.constant 0 : i32
    %c0_i32_1 = arith.constant 0 : i32
    return %c0_i32, %c0_i32_0 : i32, i32
  }
  func.func @transform_3(%arg0: i32) -> (i32, i32) {
    %c0_i32 = arith.constant 0 : i32
    %c0_i32_0 = arith.constant 0 : i32
    %c0_i32_1 = arith.constant 0 : i32
    return %c0_i32, %c0_i32_0 : i32, i32
  }
  func.func @transform_4(%arg0: i32) -> (i32, i32) {
    %c0_i32 = arith.constant 0 : i32
    %c0_i32_0 = arith.constant 0 : i32
    %c0_i32_1 = arith.constant 0 : i32
    return %c0_i32, %c0_i32_0 : i32, i32
  }
  func.func @transform_5(%arg0: i32) -> (i32, i32) {
    %c0_i32 = arith.constant 0 : i32
    %c0_i32_0 = arith.constant 0 : i32
    %c0_i32_1 = arith.constant 0 : i32
    return %c0_i32, %c0_i32_0 : i32, i32
  }
  func.func @transform_6(%arg0: i32) -> (i32, i32) {
    %c0_i32 = arith.constant 0 : i32
    %c0_i32_0 = arith.constant 0 : i32
    %c0_i32_1 = arith.constant 0 : i32
    return %c0_i32, %c0_i32_0 : i32, i32
  }
  func.func @transform_7(%arg0: i32) -> (i32, i32) {
    %c0_i32 = arith.constant 0 : i32
    %c0_i32_0 = arith.constant 0 : i32
    %c0_i32_1 = arith.constant 0 : i32
    return %c0_i32, %c0_i32_0 : i32, i32
  }
  func.func @transform_8(%arg0: i32) -> (i32, i32) {
    %c0_i32 = arith.constant 0 : i32
    %c0_i32_0 = arith.constant 0 : i32
    %c0_i32_1 = arith.constant 0 : i32
    return %c0_i32, %c0_i32_0 : i32, i32
  }
  func.func @transform_9(%arg0: i32) -> (i32, i32) {
    %c0_i32 = arith.constant 0 : i32
    %c0_i32_0 = arith.constant 0 : i32
    %c0_i32_1 = arith.constant 0 : i32
    return %c0_i32, %c0_i32_0 : i32, i32
  }
  func.func @transform_10(%arg0: i32) -> (i32, i32) {
    %c0_i32 = arith.constant 0 : i32
    %c0_i32_0 = arith.constant 0 : i32
    %c0_i32_1 = arith.constant 0 : i32
    return %c0_i32, %c0_i32_0 : i32, i32
  }
  func.func @transform_11(%arg0: i32) -> (i32, i32) {
    %c0_i32 = arith.constant 0 : i32
    %c0_i32_0 = arith.constant 0 : i32
    %c0_i32_1 = arith.constant 0 : i32
    return %c0_i32, %c0_i32_0 : i32, i32
  }
  func.func @transform_12(%arg0: i32) -> (i32, i32) {
    %c0_i32 = arith.constant 0 : i32
    %c0_i32_0 = arith.constant 0 : i32
    %c0_i32_1 = arith.constant 0 : i32
    return %c0_i32, %c0_i32_0 : i32, i32
  }
  func.func @transform_13(%arg0: i32) -> (i32, i32) {
    %c0_i32 = arith.constant 0 : i32
    %c0_i32_0 = arith.constant 0 : i32
    %c0_i32_1 = arith.constant 0 : i32
    return %c0_i32, %c0_i32_0 : i32, i32
  }
  func.func @transform_14(%arg0: i32) -> (i32, i32) {
    %c0_i32 = arith.constant 0 : i32
    %c0_i32_0 = arith.constant 0 : i32
    %c0_i32_1 = arith.constant 0 : i32
    return %c0_i32, %c0_i32_0 : i32, i32
  }
  func.func @transform_15(%arg0: i32) -> (i32, i32, i32) {
    %c0_i32 = arith.constant 0 : i32
    %c0_i32_0 = arith.constant 0 : i32
    %c0_i32_1 = arith.constant 0 : i32
    return %arg0, %c0_i32, %c0_i32_0 : i32, i32, i32
  }
}

</mosaic_0001>

<llo_original>
// kernel: tpu_custom_call.1
$region0: #{tpu_custom_call.1}
  #allocation0 [shape = 'u32[]', space=smem, size = 0x4, offset = 0x4, fixed_abs, tag = 'smem constant byte address 0x4 - core index']
  #allocation1 [shape = 'u32[144,128]{1,0:T(1,128)}', space=vmem, size = 0x12000, scoped, tag = 'internal scratch']
  #allocation2 [shape = 'f32[1,1]{1,0:T(1,128)S(1)}', space=vmem, size = 0x200, scoped, tag = 'scoped memory for tpu_custom_call.1']
  %s0 = inlined_call_operand.hbm [shape: bf16[2,8,784], index: 0, kind: input, shape index: {}]
  %s1 = inlined_call_operand.hbm [shape: f32[2,8,10], index: 1, kind: input, shape index: {}]
  %s2 = inlined_call_operand.hbm [shape: bf16[784,1024], index: 2, kind: input, shape index: {}]
  %s3 = inlined_call_operand.hbm [shape: f32[1,1024], index: 3, kind: input, shape index: {}]
  %s4 = inlined_call_operand.hbm [shape: f32[10,512], index: 4, kind: input, shape index: {}]
  %s5 = inlined_call_operand.hbm [shape: bf16[1024,512], index: 5, kind: input, shape index: {}]
  %s6 = inlined_call_operand.hbm [shape: f32[1,512], index: 6, kind: input, shape index: {}]
  %s7 = inlined_call_operand.hbm [shape: f32[1,512], index: 7, kind: input, shape index: {}]
  %s8 = inlined_call_operand.hbm [shape: f32[1,512], index: 8, kind: input, shape index: {}]
  %s9 = inlined_call_operand.hbm [shape: bf16[512,256], index: 9, kind: input, shape index: {}]
  %s10 = inlined_call_operand.hbm [shape: f32[1,256], index: 10, kind: input, shape index: {}]
  %s11 = inlined_call_operand.hbm [shape: f32[1,256], index: 11, kind: input, shape index: {}]
  %s12 = inlined_call_operand.hbm [shape: f32[1,256], index: 12, kind: input, shape index: {}]
  %s13 = inlined_call_operand.hbm [shape: f32[1,256], index: 13, kind: input, shape index: {}]
  %s14 = inlined_call_operand.<no memory space> [shape: f32[1,1], index: 14, kind: input, shape index: {}]
  %s15 = inlined_call_operand.vmem [shape: f32[2,8,1], index: 15, kind: output, shape index: {}]
  %s16 = sld [smem:[#allocation0]]
  $region149: #{tpu_custom_call.1} parent=0
    _
  %s18 = ssub.s32 1, %s16
  %s19 = scalar_select 0, %s18, %s16
  %v20 = vstv %s14
  %21 = vst [vmem:[#allocation2] sm:$0x1] %v20
  $region1: #{tpu_custom_call.1} parent=0
    #allocation3 [shape = 'u8[28672]{0}', space=vmem, size = 0x7000, scoped, tag = 'input window, operand 0']
    #allocation4 [shape = 's32[2]{0}', space=sflag, size = 0x8, scoped, tag = 'scoped memory for tpu_custom_call.1']
    #allocation5 [shape = 'u8[8192]{0}', space=vmem, size = 0x2000, scoped, tag = 'input window, operand 1']
    #allocation6 [shape = 's32[2]{0}', space=sflag, size = 0x8, scoped, tag = 'scoped memory for tpu_custom_call.1']
    #allocation7 [shape = 'u8[1605632]{0}', space=vmem, size = 0x188000, scoped, tag = 'input window, operand 2, single buffered']
    #allocation8 [shape = 'u8[4096]{0}', space=vmem, size = 0x1000, scoped, tag = 'input window, operand 3, single buffered']
    #allocation9 [shape = 's32[1]{0}', space=sflag, size = 0x4, scoped, tag = 'scoped memory for tpu_custom_call.1']
    #allocation10 [shape = 'u8[32768]{0}', space=vmem, size = 0x8000, scoped, tag = 'input window, operand 4, single buffered']
    #allocation11 [shape = 'u8[1048576]{0}', space=vmem, size = 0x100000, scoped, tag = 'input window, operand 5, single buffered']
    #allocation12 [shape = 's32[1]{0}', space=sflag, size = 0x4, scoped, tag = 'scoped memory for tpu_custom_call.1']
    #allocation13 [shape = 'u8[2048]{0}', space=vmem, size = 0x800, scoped, tag = 'input window, operand 6, single buffered']
    #allocation14 [shape = 'u8[2048]{0}', space=vmem, size = 0x800, scoped, tag = 'input window, operand 7, single buffered']
    #allocation15 [shape = 's32[1]{0}', space=sflag, size = 0x4, scoped, tag = 'scoped memory for tpu_custom_call.1']
    #allocation16 [shape = 'u8[2048]{0}', space=vmem, size = 0x800, scoped, tag = 'input window, operand 8, single buffered']
    #allocation17 [shape = 'u8[262144]{0}', space=vmem, size = 0x40000, scoped, tag = 'input window, operand 9, single buffered']
    #allocation18 [shape = 's32[1]{0}', space=sflag, size = 0x4, scoped, tag = 'scoped memory for tpu_custom_call.1']
    #allocation19 [shape = 'u8[1024]{0}', space=vmem, size = 0x400, scoped, tag = 'input window, operand 10, single buffered']
    #allocation20 [shape = 'u8[1024]{0}', space=vmem, size = 0x400, scoped, tag = 'input window, operand 11, single buffered']
    #allocation21 [shape = 's32[1]{0}', space=sflag, size = 0x4, scoped, tag = 'scoped memory for tpu_custom_call.1']
    #allocation22 [shape = 'u8[1024]{0}', space=vmem, size = 0x400, scoped, tag = 'input window, operand 12, single buffered']
    #allocation23 [shape = 'u8[1024]{0}', space=vmem, size = 0x400, scoped, tag = 'input window, operand 13, single buffered']
    #allocation24 [shape = 's32[1]{0}', space=sflag, size = 0x4, scoped, tag = 'scoped memory for tpu_custom_call.1']
    %22 = vsyncpa [#allocation4], 0
    %s23 = scalar_lea.sflag [#allocation4], 1
    %24 = vsyncpa %s23, 0
    %25 = vsyncpa [#allocation6], 0
    %s26 = scalar_lea.sflag [#allocation6], 1
    %27 = vsyncpa %s26, 0
    %28 = vsyncpa [#allocation9], 0
    %29 = vsyncpa [#allocation12], 0
    %30 = vsyncpa [#allocation15], 0
    %31 = vsyncpa [#allocation18], 0
    %32 = vsyncpa [#allocation21], 0
    %33 = vsyncpa [#allocation24], 0
    loop: start=0, step=1, limit=4
    $region2: #{tpu_custom_call.1} parent=1 // loop_pre_header
      _
    $region3: #{tpu_custom_call.1} parent=1 // loop_header
      %s35 = sphi 0, %s39
      %p36 = scmp.ge.s32.totalorder %s35, 4
      %s45 = sphi 0, %s47
      %s48 = sphi 0, %s45
      %s49 = sphi 0, %s48
      %s65 = sphi 0, %s49
      %s71 = sphi 0, %s73
      %s74 = sphi 0, %s71
      %s75 = sphi 0, %s74
      %s91 = sphi 0, %s75
      %s95 = sphi 0, %s95
      %s97 = sphi 0, %s95
      %s98 = sphi 0, %s97
      %s112 = sphi 0, %s98
      %s116 = sphi 0, %s116
      %s118 = sphi 0, %s116
      %s119 = sphi 0, %s118
      %s133 = sphi 0, %s119
      %s137 = sphi 0, %s137
      %s139 = sphi 0, %s137
      %s140 = sphi 0, %s139
      %s154 = sphi 0, %s140
      %s158 = sphi 0, %s158
      %s160 = sphi 0, %s158
      %s161 = sphi 0, %s160
      %s175 = sphi 0, %s161
      %s179 = sphi 0, %s179
      %s181 = sphi 0, %s179
      %s182 = sphi 0, %s181
      %s196 = sphi 0, %s182
      %s200 = sphi 0, %s200
      %s202 = sphi 0, %s200
      %s203 = sphi 0, %s202
      %s217 = sphi 0, %s203
      %s221 = sphi 0, %s221
      %s223 = sphi 0, %s221
      %s224 = sphi 0, %s223
      %s238 = sphi 0, %s224
      %s242 = sphi 0, %s242
      %s244 = sphi 0, %s242
      %s245 = sphi 0, %s244
      %s259 = sphi 0, %s245
      %s263 = sphi 0, %s263
      %s265 = sphi 0, %s263
      %s266 = sphi 0, %s265
      %s280 = sphi 0, %s266
      %s284 = sphi 0, %s284
      %s286 = sphi 0, %s284
      %s287 = sphi 0, %s286
      %s301 = sphi 0, %s287
      %s305 = sphi 0, %s305
      %s307 = sphi 0, %s305
      %s308 = sphi 0, %s307
      %s322 = sphi 0, %s308
      %s326 = sphi 0, %s326
      %s328 = sphi 0, %s326
      %s329 = sphi 0, %s328
      %s343 = sphi 0, %s329
      %s347 = sphi 0, %s347
      %s349 = sphi 0, %s347
      %s350 = sphi 0, %s349
      %s364 = sphi 0, %s350
      %s370 = sphi 0, %s372
      %s373 = sphi 0, %s370
      %s374 = sphi 0, %s373
      %s390 = sphi 0, %s374
    $region4: #{tpu_custom_call.1} parent=1 // loop_header_branch
      %38 = sbr.rel (%p36) target = $region8
    $region5: #{tpu_custom_call.1} parent=1 // loop_body
      %s40 = ssub.s32 %s35, 1
      %s41 = ssub.s32 %s35, 2
      %s42 = sadd.s32 %s35, 1
      %s43 = ssub.s32 %s35, %s42
      %p44 = scmp.eq.s32.totalorder %s43, 0
      %s46 = sadd.s32 %s45, 1
      %s47 = scalar_select %p44, %s45, %s46
      %p50 = pneg %p44
      %p51 = scmp.eq.s32.totalorder %s35, 1
      %p52 = por %p50, %p51
      %p53 = scmp.ne.s32.totalorder %s45, %s48
      %p54 = scmp.eq.s32.totalorder %s35, 0
      %p55 = por %p53, %p54
      %p56 = scmp.ne.s32.totalorder %s45, %s48
      %p57 = scmp.eq.s32.totalorder %s40, 1
      %p58 = por %p56, %p57
      %p59 = scmp.ne.s32.totalorder %s48, %s49
      %p60 = scmp.eq.s32.totalorder %s40, 0
      %p61 = por %p59, %p60
      %p62 = scmp.ne.s32.totalorder %s48, %s49
      %p63 = scmp.eq.s32.totalorder %s41, 1
      %p64 = por %p62, %p63
      %p66 = scmp.ne.s32.totalorder %s49, %s65
      %p67 = scmp.eq.s32.totalorder %s41, 0
      %p68 = por %p66, %p67
      %s69 = ssub.s32 %s35, %s42
      %p70 = scmp.eq.s32.totalorder %s69, 0
      %s72 = sadd.s32 %s71, 1
      %s73 = scalar_select %p70, %s71, %s72
      %p76 = pneg %p70
      %p77 = scmp.eq.s32.totalorder %s35, 1
      %p78 = por %p76, %p77
      %p79 = scmp.ne.s32.totalorder %s71, %s74
      %p80 = scmp.eq.s32.totalorder %s35, 0
      %p81 = por %p79, %p80
      %p82 = scmp.ne.s32.totalorder %s71, %s74
      %p83 = scmp.eq.s32.totalorder %s40, 1
      %p84 = por %p82, %p83
      %p85 = scmp.ne.s32.totalorder %s74, %s75
      %p86 = scmp.eq.s32.totalorder %s40, 0
      %p87 = por %p85, %p86
      %p88 = scmp.ne.s32.totalorder %s74, %s75
      %p89 = scmp.eq.s32.totalorder %s41, 1
      %p90 = por %p88, %p89
      %p92 = scmp.ne.s32.totalorder %s75, %s91
      %p93 = scmp.eq.s32.totalorder %s41, 0
      %p94 = por %p92, %p93
      %s96 = sadd.s32 %s95, 1
      %p99 = scmp.eq.s32.totalorder %s35, 1
      %p100 = scmp.ne.s32.totalorder %s95, %s97
      %p101 = scmp.eq.s32.totalorder %s35, 0
      %p102 = por %p100, %p101
      %p103 = scmp.ne.s32.totalorder %s95, %s97
      %p104 = scmp.eq.s32.totalorder %s40, 1
      %p105 = por %p103, %p104
      %p106 = scmp.ne.s32.totalorder %s97, %s98
      %p107 = scmp.eq.s32.totalorder %s40, 0
      %p108 = por %p106, %p107
      %p109 = scmp.ne.s32.totalorder %s97, %s98
      %p110 = scmp.eq.s32.totalorder %s41, 1
      %p111 = por %p109, %p110
      %p113 = scmp.ne.s32.totalorder %s98, %s112
      %p114 = scmp.eq.s32.totalorder %s41, 0
      %p115 = por %p113, %p114
      %s117 = sadd.s32 %s116, 1
      %p120 = scmp.eq.s32.totalorder %s35, 1
      %p121 = scmp.ne.s32.totalorder %s116, %s118
      %p122 = scmp.eq.s32.totalorder %s35, 0
      %p123 = por %p121, %p122
      %p124 = scmp.ne.s32.totalorder %s116, %s118
      %p125 = scmp.eq.s32.totalorder %s40, 1
      %p126 = por %p124, %p125
      %p127 = scmp.ne.s32.totalorder %s118, %s119
      %p128 = scmp.eq.s32.totalorder %s40, 0
      %p129 = por %p127, %p128
      %p130 = scmp.ne.s32.totalorder %s118, %s119
      %p131 = scmp.eq.s32.totalorder %s41, 1
      %p132 = por %p130, %p131
      %p134 = scmp.ne.s32.totalorder %s119, %s133
      %p135 = scmp.eq.s32.totalorder %s41, 0
      %p136 = por %p134, %p135
      %s138 = sadd.s32 %s137, 1
      %p141 = scmp.eq.s32.totalorder %s35, 1
      %p142 = scmp.ne.s32.totalorder %s137, %s139
      %p143 = scmp.eq.s32.totalorder %s35, 0
      %p144 = por %p142, %p143
      %p145 = scmp.ne.s32.totalorder %s137, %s139
      %p146 = scmp.eq.s32.totalorder %s40, 1
      %p147 = por %p145, %p146
      %p148 = scmp.ne.s32.totalorder %s139, %s140
      %p149 = scmp.eq.s32.totalorder %s40, 0
      %p150 = por %p148, %p149
      %p151 = scmp.ne.s32.totalorder %s139, %s140
      %p152 = scmp.eq.s32.totalorder %s41, 1
      %p153 = por %p151, %p152
      %p155 = scmp.ne.s32.totalorder %s140, %s154
      %p156 = scmp.eq.s32.totalorder %s41, 0
      %p157 = por %p155, %p156
      %s159 = sadd.s32 %s158, 1
      %p162 = scmp.eq.s32.totalorder %s35, 1
      %p163 = scmp.ne.s32.totalorder %s158, %s160
      %p164 = scmp.eq.s32.totalorder %s35, 0
      %p165 = por %p163, %p164
      %p166 = scmp.ne.s32.totalorder %s158, %s160
      %p167 = scmp.eq.s32.totalorder %s40, 1
      %p168 = por %p166, %p167
      %p169 = scmp.ne.s32.totalorder %s160, %s161
      %p170 = scmp.eq.s32.totalorder %s40, 0
      %p171 = por %p169, %p170
      %p172 = scmp.ne.s32.totalorder %s160, %s161
      %p173 = scmp.eq.s32.totalorder %s41, 1
      %p174 = por %p172, %p173
      %p176 = scmp.ne.s32.totalorder %s161, %s175
      %p177 = scmp.eq.s32.totalorder %s41, 0
      %p178 = por %p176, %p177
      %s180 = sadd.s32 %s179, 1
      %p183 = scmp.eq.s32.totalorder %s35, 1
      %p184 = scmp.ne.s32.totalorder %s179, %s181
      %p185 = scmp.eq.s32.totalorder %s35, 0
      %p186 = por %p184, %p185
      %p187 = scmp.ne.s32.totalorder %s179, %s181
      %p188 = scmp.eq.s32.totalorder %s40, 1
      %p189 = por %p187, %p188
      %p190 = scmp.ne.s32.totalorder %s181, %s182
      %p191 = scmp.eq.s32.totalorder %s40, 0
      %p192 = por %p190, %p191
      %p193 = scmp.ne.s32.totalorder %s181, %s182
      %p194 = scmp.eq.s32.totalorder %s41, 1
      %p195 = por %p193, %p194
      %p197 = scmp.ne.s32.totalorder %s182, %s196
      %p198 = scmp.eq.s32.totalorder %s41, 0
      %p199 = por %p197, %p198
      %s201 = sadd.s32 %s200, 1
      %p204 = scmp.eq.s32.totalorder %s35, 1
      %p205 = scmp.ne.s32.totalorder %s200, %s202
      %p206 = scmp.eq.s32.totalorder %s35, 0
      %p207 = por %p205, %p206
      %p208 = scmp.ne.s32.totalorder %s200, %s202
      %p209 = scmp.eq.s32.totalorder %s40, 1
      %p210 = por %p208, %p209
      %p211 = scmp.ne.s32.totalorder %s202, %s203
      %p212 = scmp.eq.s32.totalorder %s40, 0
      %p213 = por %p211, %p212
      %p214 = scmp.ne.s32.totalorder %s202, %s203
      %p215 = scmp.eq.s32.totalorder %s41, 1
      %p216 = por %p214, %p215
      %p218 = scmp.ne.s32.totalorder %s203, %s217
      %p219 = scmp.eq.s32.totalorder %s41, 0
      %p220 = por %p218, %p219
      %s222 = sadd.s32 %s221, 1
      %p225 = scmp.eq.s32.totalorder %s35, 1
      %p226 = scmp.ne.s32.totalorder %s221, %s223
      %p227 = scmp.eq.s32.totalorder %s35, 0
      %p228 = por %p226, %p227
      %p229 = scmp.ne.s32.totalorder %s221, %s223
      %p230 = scmp.eq.s32.totalorder %s40, 1
      %p231 = por %p229, %p230
      %p232 = scmp.ne.s32.totalorder %s223, %s224
      %p233 = scmp.eq.s32.totalorder %s40, 0
      %p234 = por %p232, %p233
      %p235 = scmp.ne.s32.totalorder %s223, %s224
      %p236 = scmp.eq.s32.totalorder %s41, 1
      %p237 = por %p235, %p236
      %p239 = scmp.ne.s32.totalorder %s224, %s238
      %p240 = scmp.eq.s32.totalorder %s41, 0
      %p241 = por %p239, %p240
      %s243 = sadd.s32 %s242, 1
      %p246 = scmp.eq.s32.totalorder %s35, 1
      %p247 = scmp.ne.s32.totalorder %s242, %s244
      %p248 = scmp.eq.s32.totalorder %s35, 0
      %p249 = por %p247, %p248
      %p250 = scmp.ne.s32.totalorder %s242, %s244
      %p251 = scmp.eq.s32.totalorder %s40, 1
      %p252 = por %p250, %p251
      %p253 = scmp.ne.s32.totalorder %s244, %s245
      %p254 = scmp.eq.s32.totalorder %s40, 0
      %p255 = por %p253, %p254
      %p256 = scmp.ne.s32.totalorder %s244, %s245
      %p257 = scmp.eq.s32.totalorder %s41, 1
      %p258 = por %p256, %p257
      %p260 = scmp.ne.s32.totalorder %s245, %s259
      %p261 = scmp.eq.s32.totalorder %s41, 0
      %p262 = por %p260, %p261
      %s264 = sadd.s32 %s263, 1
      %p267 = scmp.eq.s32.totalorder %s35, 1
      %p268 = scmp.ne.s32.totalorder %s263, %s265
      %p269 = scmp.eq.s32.totalorder %s35, 0
      %p270 = por %p268, %p269
      %p271 = scmp.ne.s32.totalorder %s263, %s265
      %p272 = scmp.eq.s32.totalorder %s40, 1
      %p273 = por %p271, %p272
      %p274 = scmp.ne.s32.totalorder %s265, %s266
      %p275 = scmp.eq.s32.totalorder %s40, 0
      %p276 = por %p274, %p275
      %p277 = scmp.ne.s32.totalorder %s265, %s266
      %p278 = scmp.eq.s32.totalorder %s41, 1
      %p279 = por %p277, %p278
      %p281 = scmp.ne.s32.totalorder %s266, %s280
      %p282 = scmp.eq.s32.totalorder %s41, 0
      %p283 = por %p281, %p282
      %s285 = sadd.s32 %s284, 1
      %p288 = scmp.eq.s32.totalorder %s35, 1
      %p289 = scmp.ne.s32.totalorder %s284, %s286
      %p290 = scmp.eq.s32.totalorder %s35, 0
      %p291 = por %p289, %p290
      %p292 = scmp.ne.s32.totalorder %s284, %s286
      %p293 = scmp.eq.s32.totalorder %s40, 1
      %p294 = por %p292, %p293
      %p295 = scmp.ne.s32.totalorder %s286, %s287
      %p296 = scmp.eq.s32.totalorder %s40, 0
      %p297 = por %p295, %p296
      %p298 = scmp.ne.s32.totalorder %s286, %s287
      %p299 = scmp.eq.s32.totalorder %s41, 1
      %p300 = por %p298, %p299
      %p302 = scmp.ne.s32.totalorder %s287, %s301
      %p303 = scmp.eq.s32.totalorder %s41, 0
      %p304 = por %p302, %p303
      %s306 = sadd.s32 %s305, 1
      %p309 = scmp.eq.s32.totalorder %s35, 1
      %p310 = scmp.ne.s32.totalorder %s305, %s307
      %p311 = scmp.eq.s32.totalorder %s35, 0
      %p312 = por %p310, %p311
      %p313 = scmp.ne.s32.totalorder %s305, %s307
      %p314 = scmp.eq.s32.totalorder %s40, 1
      %p315 = por %p313, %p314
      %p316 = scmp.ne.s32.totalorder %s307, %s308
      %p317 = scmp.eq.s32.totalorder %s40, 0
      %p318 = por %p316, %p317
      %p319 = scmp.ne.s32.totalorder %s307, %s308
      %p320 = scmp.eq.s32.totalorder %s41, 1
      %p321 = por %p319, %p320
      %p323 = scmp.ne.s32.totalorder %s308, %s322
      %p324 = scmp.eq.s32.totalorder %s41, 0
      %p325 = por %p323, %p324
      %s327 = sadd.s32 %s326, 1
      %p330 = scmp.eq.s32.totalorder %s35, 1
      %p331 = scmp.ne.s32.totalorder %s326, %s328
      %p332 = scmp.eq.s32.totalorder %s35, 0
      %p333 = por %p331, %p332
      %p334 = scmp.ne.s32.totalorder %s326, %s328
      %p335 = scmp.eq.s32.totalorder %s40, 1
      %p336 = por %p334, %p335
      %p337 = scmp.ne.s32.totalorder %s328, %s329
      %p338 = scmp.eq.s32.totalorder %s40, 0
      %p339 = por %p337, %p338
      %p340 = scmp.ne.s32.totalorder %s328, %s329
      %p341 = scmp.eq.s32.totalorder %s41, 1
      %p342 = por %p340, %p341
      %p344 = scmp.ne.s32.totalorder %s329, %s343
      %p345 = scmp.eq.s32.totalorder %s41, 0
      %p346 = por %p344, %p345
      %s348 = sadd.s32 %s347, 1
      %p351 = scmp.eq.s32.totalorder %s35, 1
      %p352 = scmp.ne.s32.totalorder %s347, %s349
      %p353 = scmp.eq.s32.totalorder %s35, 0
      %p354 = por %p352, %p353
      %p355 = scmp.ne.s32.totalorder %s347, %s349
      %p356 = scmp.eq.s32.totalorder %s40, 1
      %p357 = por %p355, %p356
      %p358 = scmp.ne.s32.totalorder %s349, %s350
      %p359 = scmp.eq.s32.totalorder %s40, 0
      %p360 = por %p358, %p359
      %p361 = scmp.ne.s32.totalorder %s349, %s350
      %p362 = scmp.eq.s32.totalorder %s41, 1
      %p363 = por %p361, %p362
      %p365 = scmp.ne.s32.totalorder %s350, %s364
      %p366 = scmp.eq.s32.totalorder %s41, 0
      %p367 = por %p365, %p366
      %s368 = ssub.s32 %s35, %s42
      %p369 = scmp.eq.s32.totalorder %s368, 0
      %s371 = sadd.s32 %s370, 1
      %s372 = scalar_select %p369, %s370, %s371
      %p375 = pneg %p369
      %p376 = scmp.eq.s32.totalorder %s35, 1
      %p377 = por %p375, %p376
      %p378 = scmp.ne.s32.totalorder %s370, %s373
      %p379 = scmp.eq.s32.totalorder %s35, 0
      %p380 = por %p378, %p379
      %p381 = scmp.ne.s32.totalorder %s370, %s373
      %p382 = scmp.eq.s32.totalorder %s40, 1
      %p383 = por %p381, %p382
      %p384 = scmp.ne.s32.totalorder %s373, %s374
      %p385 = scmp.eq.s32.totalorder %s40, 0
      %p386 = por %p384, %p385
      %p387 = scmp.ne.s32.totalorder %s373, %s374
      %p388 = scmp.eq.s32.totalorder %s41, 1
      %p389 = por %p387, %p388
      %p391 = scmp.ne.s32.totalorder %s374, %s390
      %p392 = scmp.eq.s32.totalorder %s41, 0
      %p393 = por %p391, %p392
      %p394 = scmp.le.s32.totalorder 1, %s35
      %p395 = scmp.lt.s32.totalorder %s35, 3
      %p396 = pnand %p394, %p395
      %p397 = pneg %p396
      // Predicated region
      $region9: #{tpu_custom_call.1} parent=5 // pred_check
        _
      $region10: #{tpu_custom_call.1} parent=5 // pred_check_branch
        %399 = sbr.rel (%p396) target = $region12
      $region11: #{tpu_custom_call.1} parent=5 // pred_region
        %s400 = ssub.s32 %s35, 1
        // Predicated region
        $region13: #{tpu_custom_call.1} parent=11 // pred_check
          %p401 = pneg %p108
        $region14: #{tpu_custom_call.1} parent=11 // pred_check_branch
          %403 = sbr.rel (%p401) target = $region16
        $region15: #{tpu_custom_call.1} parent=11 // pred_region
          %s405 = ssub.s32 50176, 50176
          %406 = vsyncadd [#allocation6], %s405
          %s407 = sshll.u32 [#allocation7], 4
          %s408 = int_to_ptr.vmem [resolvable:$true] %s407
          %413 = dma.hbm_to_vmem [thread:$0]  %s2, 50176, %s408, [#allocation6], 512, 512, 32
        $region16: #{tpu_custom_call.1} parent=11 // pred_fallthru
          _
        // Predicated region
        $region17: #{tpu_custom_call.1} parent=11 // pred_check
          %p414 = pneg %p129
        $region18: #{tpu_custom_call.1} parent=11 // pred_check_branch
          %416 = sbr.rel (%p414) target = $region20
        $region19: #{tpu_custom_call.1} parent=11 // pred_region
          %s418 = ssub.s32 128, 128
          %419 = vsyncadd [#allocation9], %s418
          %s421 = sshll.u32 [#allocation8], 4
          %s422 = int_to_ptr.vmem [resolvable:$true] %s421
          %424 = dma.hbm_to_vmem [thread:$0]  %s3, 128, %s422, [#allocation9]
        $region20: #{tpu_custom_call.1} parent=11 // pred_fallthru
          _
        // Predicated region
        $region21: #{tpu_custom_call.1} parent=11 // pred_check
          %p425 = pneg %p150
        $region22: #{tpu_custom_call.1} parent=11 // pred_check_branch
          %427 = sbr.rel (%p425) target = $region24
        $region23: #{tpu_custom_call.1} parent=11 // pred_region
          %s429 = ssub.s32 1024, 1024
          %430 = vsyncadd [#allocation9], %s429
          %s431 = sshll.u32 [#allocation10], 4
          %s432 = int_to_ptr.vmem [resolvable:$true] %s431
          %437 = dma.hbm_to_vmem [thread:$0]  %s4, 1024, %s432, [#allocation9], 512, 512, 32
        $region24: #{tpu_custom_call.1} parent=11 // pred_fallthru
          _
        // Predicated region
        $region25: #{tpu_custom_call.1} parent=11 // pred_check
          %p438 = pneg %p171
        $region26: #{tpu_custom_call.1} parent=11 // pred_check_branch
          %440 = sbr.rel (%p438) target = $region28
        $region27: #{tpu_custom_call.1} parent=11 // pred_region
          %s442 = ssub.s32 32768, 32768
          %443 = vsyncadd [#allocation12], %s442
          %s444 = sshll.u32 [#allocation11], 4
          %s445 = int_to_ptr.vmem [resolvable:$true] %s444
          %450 = dma.hbm_to_vmem [thread:$0]  %s5, 32768, %s445, [#allocation12], 256, 256, 16
        $region28: #{tpu_custom_call.1} parent=11 // pred_fallthru
          _
        // Predicated region
        $region29: #{tpu_custom_call.1} parent=11 // pred_check
          %p451 = pneg %p192
        $region30: #{tpu_custom_call.1} parent=11 // pred_check_branch
          %453 = sbr.rel (%p451) target = $region32
        $region31: #{tpu_custom_call.1} parent=11 // pred_region
          %s455 = ssub.s32 64, 64
          %456 = vsyncadd [#allocation12], %s455
          %s458 = sshll.u32 [#allocation13], 4
          %s459 = int_to_ptr.vmem [resolvable:$true] %s458
          %461 = dma.hbm_to_vmem [thread:$0]  %s6, 64, %s459, [#allocation12]
        $region32: #{tpu_custom_call.1} parent=11 // pred_fallthru
          _
        // Predicated region
        $region33: #{tpu_custom_call.1} parent=11 // pred_check
          %p462 = pneg %p213
        $region34: #{tpu_custom_call.1} parent=11 // pred_check_branch
          %464 = sbr.rel (%p462) target = $region36
        $region35: #{tpu_custom_call.1} parent=11 // pred_region
          %s466 = ssub.s32 64, 64
          %467 = vsyncadd [#allocation15], %s466
          %s469 = sshll.u32 [#allocation14], 4
          %s470 = int_to_ptr.vmem [resolvable:$true] %s469
          %472 = dma.hbm_to_vmem [thread:$0]  %s7, 64, %s470, [#allocation15]
        $region36: #{tpu_custom_call.1} parent=11 // pred_fallthru
          _
        // Predicated region
        $region37: #{tpu_custom_call.1} parent=11 // pred_check
          %p473 = pneg %p234
        $region38: #{tpu_custom_call.1} parent=11 // pred_check_branch
          %475 = sbr.rel (%p473) target = $region40
        $region39: #{tpu_custom_call.1} parent=11 // pred_region
          %s477 = ssub.s32 64, 64
          %478 = vsyncadd [#allocation15], %s477
          %s480 = sshll.u32 [#allocation16], 4
          %s481 = int_to_ptr.vmem [resolvable:$true] %s480
          %483 = dma.hbm_to_vmem [thread:$0]  %s8, 64, %s481, [#allocation15]
        $region40: #{tpu_custom_call.1} parent=11 // pred_fallthru
          _
        // Predicated region
        $region41: #{tpu_custom_call.1} parent=11 // pred_check
          %p484 = pneg %p255
        $region42: #{tpu_custom_call.1} parent=11 // pred_check_branch
          %486 = sbr.rel (%p484) target = $region44
        $region43: #{tpu_custom_call.1} parent=11 // pred_region
          %s488 = ssub.s32 8192, 8192
          %489 = vsyncadd [#allocation18], %s488
          %s490 = sshll.u32 [#allocation17], 4
          %s491 = int_to_ptr.vmem [resolvable:$true] %s490
          %496 = dma.hbm_to_vmem [thread:$0]  %s9, 8192, %s491, [#allocation18], 128, 128, 8
        $region44: #{tpu_custom_call.1} parent=11 // pred_fallthru
          _
        // Predicated region
        $region45: #{tpu_custom_call.1} parent=11 // pred_check
          %p497 = pneg %p276
        $region46: #{tpu_custom_call.1} parent=11 // pred_check_branch
          %499 = sbr.rel (%p497) target = $region48
        $region47: #{tpu_custom_call.1} parent=11 // pred_region
          %s501 = ssub.s32 32, 32
          %502 = vsyncadd [#allocation18], %s501
          %s504 = sshll.u32 [#allocation19], 4
          %s505 = int_to_ptr.vmem [resolvable:$true] %s504
          %507 = dma.hbm_to_vmem [thread:$0]  %s10, 32, %s505, [#allocation18]
        $region48: #{tpu_custom_call.1} parent=11 // pred_fallthru
          _
        // Predicated region
        $region49: #{tpu_custom_call.1} parent=11 // pred_check
          %p508 = pneg %p297
        $region50: #{tpu_custom_call.1} parent=11 // pred_check_branch
          %510 = sbr.rel (%p508) target = $region52
        $region51: #{tpu_custom_call.1} parent=11 // pred_region
          %s512 = ssub.s32 32, 32
          %513 = vsyncadd [#allocation21], %s512
          %s515 = sshll.u32 [#allocation20], 4
          %s516 = int_to_ptr.vmem [resolvable:$true] %s515
          %518 = dma.hbm_to_vmem [thread:$0]  %s11, 32, %s516, [#allocation21]
        $region52: #{tpu_custom_call.1} parent=11 // pred_fallthru
          _
        // Predicated region
        $region53: #{tpu_custom_call.1} parent=11 // pred_check
          %p519 = pneg %p318
        $region54: #{tpu_custom_call.1} parent=11 // pred_check_branch
          %521 = sbr.rel (%p519) target = $region56
        $region55: #{tpu_custom_call.1} parent=11 // pred_region
          %s523 = ssub.s32 32, 32
          %524 = vsyncadd [#allocation21], %s523
          %s526 = sshll.u32 [#allocation22], 4
          %s527 = int_to_ptr.vmem [resolvable:$true] %s526
          %529 = dma.hbm_to_vmem [thread:$0]  %s12, 32, %s527, [#allocation21]
        $region56: #{tpu_custom_call.1} parent=11 // pred_fallthru
          _
        // Predicated region
        $region57: #{tpu_custom_call.1} parent=11 // pred_check
          %p530 = pneg %p339
        $region58: #{tpu_custom_call.1} parent=11 // pred_check_branch
          %532 = sbr.rel (%p530) target = $region60
        $region59: #{tpu_custom_call.1} parent=11 // pred_region
          %s534 = ssub.s32 32, 32
          %535 = vsyncadd [#allocation24], %s534
          %s537 = sshll.u32 [#allocation23], 4
          %s538 = int_to_ptr.vmem [resolvable:$true] %s537
          %540 = dma.hbm_to_vmem [thread:$0]  %s13, 32, %s538, [#allocation24]
        $region60: #{tpu_custom_call.1} parent=11 // pred_fallthru
          _
        // Predicated region
        $region61: #{tpu_custom_call.1} parent=11 // pred_check
          %p541 = pneg %p360
        $region62: #{tpu_custom_call.1} parent=11 // pred_check_branch
          %543 = sbr.rel (%p541) target = $region64
        $region63: #{tpu_custom_call.1} parent=11 // pred_region
          _
        $region64: #{tpu_custom_call.1} parent=11 // pred_fallthru
          _
      $region12: #{tpu_custom_call.1} parent=5 // pred_fallthru
        _
      %p544 = scmp.lt.s32.totalorder %s35, 2
      // Predicated region
      $region65: #{tpu_custom_call.1} parent=5 // pred_check
        %p545 = pneg %p544
      $region66: #{tpu_custom_call.1} parent=5 // pred_check_branch
        %547 = sbr.rel (%p545) target = $region68
      $region67: #{tpu_custom_call.1} parent=5 // pred_region
        // Predicated region
        $region69: #{tpu_custom_call.1} parent=67 // pred_check
          %p548 = pneg %p55
        $region70: #{tpu_custom_call.1} parent=67 // pred_check_branch
          %550 = sbr.rel (%p548) target = $region72
        $region71: #{tpu_custom_call.1} parent=67 // pred_region
          %s551 = sand.u32 %s45, 1
          %s552 = scalar_lea.sflag [#allocation4], %s551
          %s553 = sand.u32 %s45, 1
          %s554 = smul.addr %s553, 28
          %s555 = scalar_lea.vmem [#allocation3], %s554
          %s557 = ssub.s32 448, 448
          %558 = vsyncadd %s552, %s557
          %s559 = smul.addr %s35, 7
          %s560 = smul.addr %s559, 64
          %s561 = scalar_lea.hbm %s0, %s560
          %s563 = sshll.u32 %s555, 4
          %s564 = int_to_ptr.vmem [resolvable:$true] %s563
          %566 = dma.hbm_to_vmem [thread:$0]  %s561, 448, %s564, %s552
        $region72: #{tpu_custom_call.1} parent=67 // pred_fallthru
          _
        // Predicated region
        $region73: #{tpu_custom_call.1} parent=67 // pred_check
          %p567 = pneg %p81
        $region74: #{tpu_custom_call.1} parent=67 // pred_check_branch
          %569 = sbr.rel (%p567) target = $region76
        $region75: #{tpu_custom_call.1} parent=67 // pred_region
          %s570 = sand.u32 %s35, 1
          %s571 = scalar_lea.sflag [#allocation6], %s570
          %s572 = sand.u32 %s71, 1
          %s573 = smul.addr %s572, 8
          %s574 = scalar_lea.vmem [#allocation5], %s573
          %s576 = ssub.s32 128, 128
          %577 = vsyncadd %s571, %s576
          %s578 = smul.addr %s35, 128
          %s579 = scalar_lea.hbm %s1, %s578
          %s581 = sshll.u32 %s574, 4
          %s582 = int_to_ptr.vmem [resolvable:$true] %s581
          %584 = dma.hbm_to_vmem [thread:$0]  %s579, 128, %s582, %s571
        $region76: #{tpu_custom_call.1} parent=67 // pred_fallthru
          _
      $region68: #{tpu_custom_call.1} parent=5 // pred_fallthru
        _
      %p585 = scmp.le.s32.totalorder 1, %s35
      %p586 = scmp.lt.s32.totalorder %s35, 3
      %p587 = pnand %p585, %p586
      %p588 = pneg %p587
      // Predicated region
      $region77: #{tpu_custom_call.1} parent=5 // pred_check
        _
      $region78: #{tpu_custom_call.1} parent=5 // pred_check_branch
        %590 = sbr.rel (%p587) target = $region80
      $region79: #{tpu_custom_call.1} parent=5 // pred_region
        %s591 = ssub.s32 %s35, 1
        %s592 = sand.u32 %s48, 1
        %s593 = scalar_lea.sflag [#allocation4], %s592
        %s594 = sand.u32 %s48, 1
        %s595 = smul.addr %s594, 28
        %s596 = scalar_lea.vmem [#allocation3], %s595
        // Predicated region
        $region81: #{tpu_custom_call.1} parent=79 // pred_check
          %p597 = pneg %p61
        $region82: #{tpu_custom_call.1} parent=79 // pred_check_branch
          %599 = sbr.rel (%p597) target = $region84
        $region83: #{tpu_custom_call.1} parent=79 // pred_region
          %600 = dma.done %s593, 448
        $region84: #{tpu_custom_call.1} parent=79 // pred_fallthru
          _
        %s601 = sand.u32 %s40, 1
        %s602 = scalar_lea.sflag [#allocation6], %s601
        %s603 = sand.u32 %s74, 1
        %s604 = smul.addr %s603, 8
        %s605 = scalar_lea.vmem [#allocation5], %s604
        // Predicated region
        $region85: #{tpu_custom_call.1} parent=79 // pred_check
          %p606 = pneg %p87
        $region86: #{tpu_custom_call.1} parent=79 // pred_check_branch
          %608 = sbr.rel (%p606) target = $region88
        $region87: #{tpu_custom_call.1} parent=79 // pred_region
          %609 = dma.done %s602, 128
        $region88: #{tpu_custom_call.1} parent=79 // pred_fallthru
          _
        // Predicated region
        $region89: #{tpu_custom_call.1} parent=79 // pred_check
          %p610 = pneg %p108
        $region90: #{tpu_custom_call.1} parent=79 // pred_check_branch
          %612 = sbr.rel (%p610) target = $region92
        $region91: #{tpu_custom_call.1} parent=79 // pred_region
          %613 = dma.done [#allocation6], 50176
        $region92: #{tpu_custom_call.1} parent=79 // pred_fallthru
          _
        // Predicated region
        $region93: #{tpu_custom_call.1} parent=79 // pred_check
          %p614 = pneg %p129
        $region94: #{tpu_custom_call.1} parent=79 // pred_check_branch
          %616 = sbr.rel (%p614) target = $region96
        $region95: #{tpu_custom_call.1} parent=79 // pred_region
          %617 = dma.done [#allocation9], 128
        $region96: #{tpu_custom_call.1} parent=79 // pred_fallthru
          _
        // Predicated region
        $region97: #{tpu_custom_call.1} parent=79 // pred_check
          %p618 = pneg %p150
        $region98: #{tpu_custom_call.1} parent=79 // pred_check_branch
          %620 = sbr.rel (%p618) target = $region100
        $region99: #{tpu_custom_call.1} parent=79 // pred_region
          %621 = dma.done [#allocation9], 1024
        $region100: #{tpu_custom_call.1} parent=79 // pred_fallthru
          _
        // Predicated region
        $region101: #{tpu_custom_call.1} parent=79 // pred_check
          %p622 = pneg %p171
        $region102: #{tpu_custom_call.1} parent=79 // pred_check_branch
          %624 = sbr.rel (%p622) target = $region104
        $region103: #{tpu_custom_call.1} parent=79 // pred_region
          %625 = dma.done [#allocation12], 32768
        $region104: #{tpu_custom_call.1} parent=79 // pred_fallthru
          _
        // Predicated region
        $region105: #{tpu_custom_call.1} parent=79 // pred_check
          %p626 = pneg %p192
        $region106: #{tpu_custom_call.1} parent=79 // pred_check_branch
          %628 = sbr.rel (%p626) target = $region108
        $region107: #{tpu_custom_call.1} parent=79 // pred_region
          %629 = dma.done [#allocation12], 64
        $region108: #{tpu_custom_call.1} parent=79 // pred_fallthru
          _
        // Predicated region
        $region109: #{tpu_custom_call.1} parent=79 // pred_check
          %p630 = pneg %p213
        $region110: #{tpu_custom_call.1} parent=79 // pred_check_branch
          %632 = sbr.rel (%p630) target = $region112
        $region111: #{tpu_custom_call.1} parent=79 // pred_region
          %633 = dma.done [#allocation15], 64
        $region112: #{tpu_custom_call.1} parent=79 // pred_fallthru
          _
        // Predicated region
        $region113: #{tpu_custom_call.1} parent=79 // pred_check
          %p634 = pneg %p234
        $region114: #{tpu_custom_call.1} parent=79 // pred_check_branch
          %636 = sbr.rel (%p634) target = $region116
        $region115: #{tpu_custom_call.1} parent=79 // pred_region
          %637 = dma.done [#allocation15], 64
        $region116: #{tpu_custom_call.1} parent=79 // pred_fallthru
          _
        // Predicated region
        $region117: #{tpu_custom_call.1} parent=79 // pred_check
          %p638 = pneg %p255
        $region118: #{tpu_custom_call.1} parent=79 // pred_check_branch
          %640 = sbr.rel (%p638) target = $region120
        $region119: #{tpu_custom_call.1} parent=79 // pred_region
          %641 = dma.done [#allocation18], 8192
        $region120: #{tpu_custom_call.1} parent=79 // pred_fallthru
          _
        // Predicated region
        $region121: #{tpu_custom_call.1} parent=79 // pred_check
          %p642 = pneg %p276
        $region122: #{tpu_custom_call.1} parent=79 // pred_check_branch
          %644 = sbr.rel (%p642) target = $region124
        $region123: #{tpu_custom_call.1} parent=79 // pred_region
          %645 = dma.done [#allocation18], 32
        $region124: #{tpu_custom_call.1} parent=79 // pred_fallthru
          _
        // Predicated region
        $region125: #{tpu_custom_call.1} parent=79 // pred_check
          %p646 = pneg %p297
        $region126: #{tpu_custom_call.1} parent=79 // pred_check_branch
          %648 = sbr.rel (%p646) target = $region128
        $region127: #{tpu_custom_call.1} parent=79 // pred_region
          %649 = dma.done [#allocation21], 32
        $region128: #{tpu_custom_call.1} parent=79 // pred_fallthru
          _
        // Predicated region
        $region129: #{tpu_custom_call.1} parent=79 // pred_check
          %p650 = pneg %p318
        $region130: #{tpu_custom_call.1} parent=79 // pred_check_branch
          %652 = sbr.rel (%p650) target = $region132
        $region131: #{tpu_custom_call.1} parent=79 // pred_region
          %653 = dma.done [#allocation21], 32
        $region132: #{tpu_custom_call.1} parent=79 // pred_fallthru
          _
        // Predicated region
        $region133: #{tpu_custom_call.1} parent=79 // pred_check
          %p654 = pneg %p339
        $region134: #{tpu_custom_call.1} parent=79 // pred_check_branch
          %656 = sbr.rel (%p654) target = $region136
        $region135: #{tpu_custom_call.1} parent=79 // pred_region
          %657 = dma.done [#allocation24], 32
        $region136: #{tpu_custom_call.1} parent=79 // pred_fallthru
          _
        %s658 = sand.u32 %s48, 1
        %s659 = scalar_lea.sflag [#allocation4], %s658
        %s660 = sand.u32 %s48, 1
        %s661 = smul.addr %s660, 28
        %s662 = scalar_lea.vmem [#allocation3], %s661
        %p663 = pneg %p61
        %p664 = pneg %p58
        %s665 = sand.u32 %s40, 1
        %s666 = scalar_lea.sflag [#allocation6], %s665
        %s667 = sand.u32 %s74, 1
        %s668 = smul.addr %s667, 8
        %s669 = scalar_lea.vmem [#allocation5], %s668
        %p670 = pneg %p87
        %p671 = pneg %p84
        %p672 = pneg %p108
        %p673 = pneg %p105
        %p674 = pneg %p129
        %p675 = pneg %p126
        %p676 = pneg %p150
        %p677 = pneg %p147
        %p678 = pneg %p171
        %p679 = pneg %p168
        %p680 = pneg %p192
        %p681 = pneg %p189
        %p682 = pneg %p213
        %p683 = pneg %p210
        %p684 = pneg %p234
        %p685 = pneg %p231
        %p686 = pneg %p255
        %p687 = pneg %p252
        %p688 = pneg %p276
        %p689 = pneg %p273
        %p690 = pneg %p297
        %p691 = pneg %p294
        %p692 = pneg %p318
        %p693 = pneg %p315
        %p694 = pneg %p339
        %p695 = pneg %p336
        %p696 = pneg %p360
        %p697 = pneg %p357
        %p698 = pneg %p386
        %p699 = pneg %p383
        %p700 = scmp.lt.s32.totalorder %s40, 1
        %s701 = scalar_select %p700, %s40, 1
        %s702 = smul.addr %s701, 8
        %s703 = scalar_lea.vmem %s15, %s702
        %p704 = scmp.lt.s32.totalorder %s40, 1
        %s705 = scalar_select %p704, %s40, 1
        %s706 = smul.addr %s705, 8
        %s707 = scalar_lea.vmem %s15, %s706
        %v709 = vld [vmem:[%s596] sm:$0xff]
        %v710 = vld [vmem:[%s596 + $0x8] sm:$0xff]
        %v711 = vld [vmem:[%s596 + $0x10] sm:$0xff]
        %v712 = vld [vmem:[%s596 + $0x18] sm:$0xf]
        %v713 = vld [vmem:[#allocation7] sm:$0xff]
        %v714 = vld [vmem:[#allocation7 + $0x8] sm:$0xff]
        %v715 = vld [vmem:[#allocation7 + $0x10] sm:$0xff]
        %v716 = vld [vmem:[#allocation7 + $0x18] sm:$0xff]
        %v717 = vld [vmem:[#allocation7 + $0x20] sm:$0xff]
        %v718 = vld [vmem:[#allocation7 + $0x28] sm:$0xff]
        %v719 = vld [vmem:[#allocation7 + $0x30] sm:$0xff]
        %v720 = vld [vmem:[#allocation7 + $0x38] sm:$0xff]
        %v721 = vld [vmem:[#allocation7 + $0x40] sm:$0xff]
        %v722 = vld [vmem:[#allocation7 + $0x48] sm:$0xff]
        %v723 = vld [vmem:[#allocation7 + $0x50] sm:$0xff]
        %v724 = vld [vmem:[#allocation7 + $0x58] sm:$0xff]
        %v725 = vld [vmem:[#allocation7 + $0x60] sm:$0xff]
        %v726 = vld [vmem:[#allocation7 + $0x68] sm:$0xff]
        %v727 = vld [vmem:[#allocation7 + $0x70] sm:$0xff]
        %v728 = vld [vmem:[#allocation7 + $0x78] sm:$0xff]
        %v729 = vld [vmem:[#allocation7 + $0x80] sm:$0xff]
        %v730 = vld [vmem:[#allocation7 + $0x88] sm:$0xff]
        %v731 = vld [vmem:[#allocation7 + $0x90] sm:$0xff]
        %v732 = vld [vmem:[#allocation7 + $0x98] sm:$0xff]
        %v733 = vld [vmem:[#allocation7 + $0xa0] sm:$0xff]
        %v734 = vld [vmem:[#allocation7 + $0xa8] sm:$0xff]
        %v735 = vld [vmem:[#allocation7 + $0xb0] sm:$0xff]
        %v736 = vld [vmem:[#allocation7 + $0xb8] sm:$0xff]
        %v737 = vld [vmem:[#allocation7 + $0xc0] sm:$0xff]
        %v738 = vld [vmem:[#allocation7 + $0xc8] sm:$0xff]
        %v739 = vld [vmem:[#allocation7 + $0xd0] sm:$0xff]
        %v740 = vld [vmem:[#allocation7 + $0xd8] sm:$0xff]
        %v741 = vld [vmem:[#allocation7 + $0xe0] sm:$0xff]
        %v742 = vld [vmem:[#allocation7 + $0xe8] sm:$0xff]
        %v743 = vld [vmem:[#allocation7 + $0xf0] sm:$0xff]
        %v744 = vld [vmem:[#allocation7 + $0xf8] sm:$0xff]
        %v745 = vld [vmem:[#allocation7 + $0x100] sm:$0xff]
        %v746 = vld [vmem:[#allocation7 + $0x108] sm:$0xff]
        %v747 = vld [vmem:[#allocation7 + $0x110] sm:$0xff]
        %v748 = vld [vmem:[#allocation7 + $0x118] sm:$0xff]
        %v749 = vld [vmem:[#allocation7 + $0x120] sm:$0xff]
        %v750 = vld [vmem:[#allocation7 + $0x128] sm:$0xff]
        %v751 = vld [vmem:[#allocation7 + $0x130] sm:$0xff]
        %v752 = vld [vmem:[#allocation7 + $0x138] sm:$0xff]
        %v753 = vld [vmem:[#allocation7 + $0x140] sm:$0xff]
        %v754 = vld [vmem:[#allocation7 + $0x148] sm:$0xff]
        %v755 = vld [vmem:[#allocation7 + $0x150] sm:$0xff]
        %v756 = vld [vmem:[#allocation7 + $0x158] sm:$0xff]
        %v757 = vld [vmem:[#allocation7 + $0x160] sm:$0xff]
        %v758 = vld [vmem:[#allocation7 + $0x168] sm:$0xff]
        %v759 = vld [vmem:[#allocation7 + $0x170] sm:$0xff]
        %v760 = vld [vmem:[#allocation7 + $0x178] sm:$0xff]
        %v761 = vld [vmem:[#allocation7 + $0x180] sm:$0xff]
        %v762 = vld [vmem:[#allocation7 + $0x188] sm:$0xff]
        %v763 = vld [vmem:[#allocation7 + $0x190] sm:$0xff]
        %v764 = vld [vmem:[#allocation7 + $0x198] sm:$0xff]
        %v765 = vld [vmem:[#allocation7 + $0x1a0] sm:$0xff]
        %v766 = vld [vmem:[#allocation7 + $0x1a8] sm:$0xff]
        %v767 = vld [vmem:[#allocation7 + $0x1b0] sm:$0xff]
        %v768 = vld [vmem:[#allocation7 + $0x1b8] sm:$0xff]
        %v769 = vld [vmem:[#allocation7 + $0x1c0] sm:$0xff]
        %v770 = vld [vmem:[#allocation7 + $0x1c8] sm:$0xff]
        %v771 = vld [vmem:[#allocation7 + $0x1d0] sm:$0xff]
        %v772 = vld [vmem:[#allocation7 + $0x1d8] sm:$0xff]
        %v773 = vld [vmem:[#allocation7 + $0x1e0] sm:$0xff]
        %v774 = vld [vmem:[#allocation7 + $0x1e8] sm:$0xff]
        %v775 = vld [vmem:[#allocation7 + $0x1f0] sm:$0xff]
        %v776 = vld [vmem:[#allocation7 + $0x1f8] sm:$0xff]
        %v777 = vld [vmem:[#allocation7 + $0x200] sm:$0xff]
        %v778 = vld [vmem:[#allocation7 + $0x208] sm:$0xff]
        %v779 = vld [vmem:[#allocation7 + $0x210] sm:$0xff]
        %v780 = vld [vmem:[#allocation7 + $0x218] sm:$0xff]
        %v781 = vld [vmem:[#allocation7 + $0x220] sm:$0xff]
        %v782 = vld [vmem:[#allocation7 + $0x228] sm:$0xff]
        %v783 = vld [vmem:[#allocation7 + $0x230] sm:$0xff]
        %v784 = vld [vmem:[#allocation7 + $0x238] sm:$0xff]
        %v785 = vld [vmem:[#allocation7 + $0x240] sm:$0xff]
        %v786 = vld [vmem:[#allocation7 + $0x248] sm:$0xff]
        %v787 = vld [vmem:[#allocation7 + $0x250] sm:$0xff]
        %v788 = vld [vmem:[#allocation7 + $0x258] sm:$0xff]
        %v789 = vld [vmem:[#allocation7 + $0x260] sm:$0xff]
        %v790 = vld [vmem:[#allocation7 + $0x268] sm:$0xff]
        %v791 = vld [vmem:[#allocation7 + $0x270] sm:$0xff]
        %v792 = vld [vmem:[#allocation7 + $0x278] sm:$0xff]
        %v793 = vld [vmem:[#allocation7 + $0x280] sm:$0xff]
        %v794 = vld [vmem:[#allocation7 + $0x288] sm:$0xff]
        %v795 = vld [vmem:[#allocation7 + $0x290] sm:$0xff]
        %v796 = vld [vmem:[#allocation7 + $0x298] sm:$0xff]
        %v797 = vld [vmem:[#allocation7 + $0x2a0] sm:$0xff]
        %v798 = vld [vmem:[#allocation7 + $0x2a8] sm:$0xff]
        %v799 = vld [vmem:[#allocation7 + $0x2b0] sm:$0xff]
        %v800 = vld [vmem:[#allocation7 + $0x2b8] sm:$0xff]
        %v801 = vld [vmem:[#allocation7 + $0x2c0] sm:$0xff]
        %v802 = vld [vmem:[#allocation7 + $0x2c8] sm:$0xff]
        %v803 = vld [vmem:[#allocation7 + $0x2d0] sm:$0xff]
        %v804 = vld [vmem:[#allocation7 + $0x2d8] sm:$0xff]
        %v805 = vld [vmem:[#allocation7 + $0x2e0] sm:$0xff]
        %v806 = vld [vmem:[#allocation7 + $0x2e8] sm:$0xff]
        %v807 = vld [vmem:[#allocation7 + $0x2f0] sm:$0xff]
        %v808 = vld [vmem:[#allocation7 + $0x2f8] sm:$0xff]
        %v809 = vld [vmem:[#allocation7 + $0x300] sm:$0xff]
        %v810 = vld [vmem:[#allocation7 + $0x308] sm:$0xff]
        %v811 = vld [vmem:[#allocation7 + $0x310] sm:$0xff]
        %v812 = vld [vmem:[#allocation7 + $0x318] sm:$0xff]
        %v813 = vld [vmem:[#allocation7 + $0x320] sm:$0xff]
        %v814 = vld [vmem:[#allocation7 + $0x328] sm:$0xff]
        %v815 = vld [vmem:[#allocation7 + $0x330] sm:$0xff]
        %v816 = vld [vmem:[#allocation7 + $0x338] sm:$0xff]
        %v817 = vld [vmem:[#allocation7 + $0x340] sm:$0xff]
        %v818 = vld [vmem:[#allocation7 + $0x348] sm:$0xff]
        %v819 = vld [vmem:[#allocation7 + $0x350] sm:$0xff]
        %v820 = vld [vmem:[#allocation7 + $0x358] sm:$0xff]
        %v821 = vld [vmem:[#allocation7 + $0x360] sm:$0xff]
        %v822 = vld [vmem:[#allocation7 + $0x368] sm:$0xff]
        %v823 = vld [vmem:[#allocation7 + $0x370] sm:$0xff]
        %v824 = vld [vmem:[#allocation7 + $0x378] sm:$0xff]
        %v825 = vld [vmem:[#allocation7 + $0x380] sm:$0xff]
        %v826 = vld [vmem:[#allocation7 + $0x388] sm:$0xff]
        %v827 = vld [vmem:[#allocation7 + $0x390] sm:$0xff]
        %v828 = vld [vmem:[#allocation7 + $0x398] sm:$0xff]
        %v829 = vld [vmem:[#allocation7 + $0x3a0] sm:$0xff]
        %v830 = vld [vmem:[#allocation7 + $0x3a8] sm:$0xff]
        %v831 = vld [vmem:[#allocation7 + $0x3b0] sm:$0xff]
        %v832 = vld [vmem:[#allocation7 + $0x3b8] sm:$0xff]
        %v833 = vld [vmem:[#allocation7 + $0x3c0] sm:$0xff]
        %v834 = vld [vmem:[#allocation7 + $0x3c8] sm:$0xff]
        %v835 = vld [vmem:[#allocation7 + $0x3d0] sm:$0xff]
        %v836 = vld [vmem:[#allocation7 + $0x3d8] sm:$0xff]
        %v837 = vld [vmem:[#allocation7 + $0x3e0] sm:$0xff]
        %v838 = vld [vmem:[#allocation7 + $0x3e8] sm:$0xff]
        %v839 = vld [vmem:[#allocation7 + $0x3f0] sm:$0xff]
        %v840 = vld [vmem:[#allocation7 + $0x3f8] sm:$0xff]
        %v841 = vld [vmem:[#allocation7 + $0x400] sm:$0xff]
        %v842 = vld [vmem:[#allocation7 + $0x408] sm:$0xff]
        %v843 = vld [vmem:[#allocation7 + $0x410] sm:$0xff]
        %v844 = vld [vmem:[#allocation7 + $0x418] sm:$0xff]
        %v845 = vld [vmem:[#allocation7 + $0x420] sm:$0xff]
        %v846 = vld [vmem:[#allocation7 + $0x428] sm:$0xff]
        %v847 = vld [vmem:[#allocation7 + $0x430] sm:$0xff]
        %v848 = vld [vmem:[#allocation7 + $0x438] sm:$0xff]
        %v849 = vld [vmem:[#allocation7 + $0x440] sm:$0xff]
        %v850 = vld [vmem:[#allocation7 + $0x448] sm:$0xff]
        %v851 = vld [vmem:[#allocation7 + $0x450] sm:$0xff]
        %v852 = vld [vmem:[#allocation7 + $0x458] sm:$0xff]
        %v853 = vld [vmem:[#allocation7 + $0x460] sm:$0xff]
        %v854 = vld [vmem:[#allocation7 + $0x468] sm:$0xff]
        %v855 = vld [vmem:[#allocation7 + $0x470] sm:$0xff]
        %v856 = vld [vmem:[#allocation7 + $0x478] sm:$0xff]
        %v857 = vld [vmem:[#allocation7 + $0x480] sm:$0xff]
        %v858 = vld [vmem:[#allocation7 + $0x488] sm:$0xff]
        %v859 = vld [vmem:[#allocation7 + $0x490] sm:$0xff]
        %v860 = vld [vmem:[#allocation7 + $0x498] sm:$0xff]
        %v861 = vld [vmem:[#allocation7 + $0x4a0] sm:$0xff]
        %v862 = vld [vmem:[#allocation7 + $0x4a8] sm:$0xff]
        %v863 = vld [vmem:[#allocation7 + $0x4b0] sm:$0xff]
        %v864 = vld [vmem:[#allocation7 + $0x4b8] sm:$0xff]
        %v865 = vld [vmem:[#allocation7 + $0x4c0] sm:$0xff]
        %v866 = vld [vmem:[#allocation7 + $0x4c8] sm:$0xff]
        %v867 = vld [vmem:[#allocation7 + $0x4d0] sm:$0xff]
        %v868 = vld [vmem:[#allocation7 + $0x4d8] sm:$0xff]
        %v869 = vld [vmem:[#allocation7 + $0x4e0] sm:$0xff]
        %v870 = vld [vmem:[#allocation7 + $0x4e8] sm:$0xff]
        %v871 = vld [vmem:[#allocation7 + $0x4f0] sm:$0xff]
        %v872 = vld [vmem:[#allocation7 + $0x4f8] sm:$0xff]
        %v873 = vld [vmem:[#allocation7 + $0x500] sm:$0xff]
        %v874 = vld [vmem:[#allocation7 + $0x508] sm:$0xff]
        %v875 = vld [vmem:[#allocation7 + $0x510] sm:$0xff]
        %v876 = vld [vmem:[#allocation7 + $0x518] sm:$0xff]
        %v877 = vld [vmem:[#allocation7 + $0x520] sm:$0xff]
        %v878 = vld [vmem:[#allocation7 + $0x528] sm:$0xff]
        %v879 = vld [vmem:[#allocation7 + $0x530] sm:$0xff]
        %v880 = vld [vmem:[#allocation7 + $0x538] sm:$0xff]
        %v881 = vld [vmem:[#allocation7 + $0x540] sm:$0xff]
        %v882 = vld [vmem:[#allocation7 + $0x548] sm:$0xff]
        %v883 = vld [vmem:[#allocation7 + $0x550] sm:$0xff]
        %v884 = vld [vmem:[#allocation7 + $0x558] sm:$0xff]
        %v885 = vld [vmem:[#allocation7 + $0x560] sm:$0xff]
        %v886 = vld [vmem:[#allocation7 + $0x568] sm:$0xff]
        %v887 = vld [vmem:[#allocation7 + $0x570] sm:$0xff]
        %v888 = vld [vmem:[#allocation7 + $0x578] sm:$0xff]
        %v889 = vld [vmem:[#allocation7 + $0x580] sm:$0xff]
        %v890 = vld [vmem:[#allocation7 + $0x588] sm:$0xff]
        %v891 = vld [vmem:[#allocation7 + $0x590] sm:$0xff]
        %v892 = vld [vmem:[#allocation7 + $0x598] sm:$0xff]
        %v893 = vld [vmem:[#allocation7 + $0x5a0] sm:$0xff]
        %v894 = vld [vmem:[#allocation7 + $0x5a8] sm:$0xff]
        %v895 = vld [vmem:[#allocation7 + $0x5b0] sm:$0xff]
        %v896 = vld [vmem:[#allocation7 + $0x5b8] sm:$0xff]
        %v897 = vld [vmem:[#allocation7 + $0x5c0] sm:$0xff]
        %v898 = vld [vmem:[#allocation7 + $0x5c8] sm:$0xff]
        %v899 = vld [vmem:[#allocation7 + $0x5d0] sm:$0xff]
        %v900 = vld [vmem:[#allocation7 + $0x5d8] sm:$0xff]
        %v901 = vld [vmem:[#allocation7 + $0x5e0] sm:$0xff]
        %v902 = vld [vmem:[#allocation7 + $0x5e8] sm:$0xff]
        %v903 = vld [vmem:[#allocation7 + $0x5f0] sm:$0xff]
        %v904 = vld [vmem:[#allocation7 + $0x5f8] sm:$0xff]
        %v905 = vld [vmem:[#allocation7 + $0x600] sm:$0xff]
        %v906 = vld [vmem:[#allocation7 + $0x608] sm:$0xff]
        %v907 = vld [vmem:[#allocation7 + $0x610] sm:$0xff]
        %v908 = vld [vmem:[#allocation7 + $0x618] sm:$0xff]
        %v909 = vld [vmem:[#allocation7 + $0x620] sm:$0xff]
        %v910 = vld [vmem:[#allocation7 + $0x628] sm:$0xff]
        %v911 = vld [vmem:[#allocation7 + $0x630] sm:$0xff]
        %v912 = vld [vmem:[#allocation7 + $0x638] sm:$0xff]
        %v913 = vld [vmem:[#allocation7 + $0x640] sm:$0xff]
        %v914 = vld [vmem:[#allocation7 + $0x648] sm:$0xff]
        %v915 = vld [vmem:[#allocation7 + $0x650] sm:$0xff]
        %v916 = vld [vmem:[#allocation7 + $0x658] sm:$0xff]
        %v917 = vld [vmem:[#allocation7 + $0x660] sm:$0xff]
        %v918 = vld [vmem:[#allocation7 + $0x668] sm:$0xff]
        %v919 = vld [vmem:[#allocation7 + $0x670] sm:$0xff]
        %v920 = vld [vmem:[#allocation7 + $0x678] sm:$0xff]
        %v921 = vld [vmem:[#allocation7 + $0x680] sm:$0xff]
        %v922 = vld [vmem:[#allocation7 + $0x688] sm:$0xff]
        %v923 = vld [vmem:[#allocation7 + $0x690] sm:$0xff]
        %v924 = vld [vmem:[#allocation7 + $0x698] sm:$0xff]
        %v925 = vld [vmem:[#allocation7 + $0x6a0] sm:$0xff]
        %v926 = vld [vmem:[#allocation7 + $0x6a8] sm:$0xff]
        %v927 = vld [vmem:[#allocation7 + $0x6b0] sm:$0xff]
        %v928 = vld [vmem:[#allocation7 + $0x6b8] sm:$0xff]
        %v929 = vld [vmem:[#allocation7 + $0x6c0] sm:$0xff]
        %v930 = vld [vmem:[#allocation7 + $0x6c8] sm:$0xff]
        %v931 = vld [vmem:[#allocation7 + $0x6d0] sm:$0xff]
        %v932 = vld [vmem:[#allocation7 + $0x6d8] sm:$0xff]
        %v933 = vld [vmem:[#allocation7 + $0x6e0] sm:$0xff]
        %v934 = vld [vmem:[#allocation7 + $0x6e8] sm:$0xff]
        %v935 = vld [vmem:[#allocation7 + $0x6f0] sm:$0xff]
        %v936 = vld [vmem:[#allocation7 + $0x6f8] sm:$0xff]
        %v937 = vld [vmem:[#allocation7 + $0x700] sm:$0xff]
        %v938 = vld [vmem:[#allocation7 + $0x708] sm:$0xff]
        %v939 = vld [vmem:[#allocation7 + $0x710] sm:$0xff]
        %v940 = vld [vmem:[#allocation7 + $0x718] sm:$0xff]
        %v941 = vld [vmem:[#allocation7 + $0x720] sm:$0xff]
        %v942 = vld [vmem:[#allocation7 + $0x728] sm:$0xff]
        %v943 = vld [vmem:[#allocation7 + $0x730] sm:$0xff]
        %v944 = vld [vmem:[#allocation7 + $0x738] sm:$0xff]
        %v945 = vld [vmem:[#allocation7 + $0x740] sm:$0xff]
        %v946 = vld [vmem:[#allocation7 + $0x748] sm:$0xff]
        %v947 = vld [vmem:[#allocation7 + $0x750] sm:$0xff]
        %v948 = vld [vmem:[#allocation7 + $0x758] sm:$0xff]
        %v949 = vld [vmem:[#allocation7 + $0x760] sm:$0xff]
        %v950 = vld [vmem:[#allocation7 + $0x768] sm:$0xff]
        %v951 = vld [vmem:[#allocation7 + $0x770] sm:$0xff]
        %v952 = vld [vmem:[#allocation7 + $0x778] sm:$0xff]
        %v953 = vld [vmem:[#allocation7 + $0x780] sm:$0xff]
        %v954 = vld [vmem:[#allocation7 + $0x788] sm:$0xff]
        %v955 = vld [vmem:[#allocation7 + $0x790] sm:$0xff]
        %v956 = vld [vmem:[#allocation7 + $0x798] sm:$0xff]
        %v957 = vld [vmem:[#allocation7 + $0x7a0] sm:$0xff]
        %v958 = vld [vmem:[#allocation7 + $0x7a8] sm:$0xff]
        %v959 = vld [vmem:[#allocation7 + $0x7b0] sm:$0xff]
        %v960 = vld [vmem:[#allocation7 + $0x7b8] sm:$0xff]
        %v961 = vld [vmem:[#allocation7 + $0x7c0] sm:$0xff]
        %v962 = vld [vmem:[#allocation7 + $0x7c8] sm:$0xff]
        %v963 = vld [vmem:[#allocation7 + $0x7d0] sm:$0xff]
        %v964 = vld [vmem:[#allocation7 + $0x7d8] sm:$0xff]
        %v965 = vld [vmem:[#allocation7 + $0x7e0] sm:$0xff]
        %v966 = vld [vmem:[#allocation7 + $0x7e8] sm:$0xff]
        %v967 = vld [vmem:[#allocation7 + $0x7f0] sm:$0xff]
        %v968 = vld [vmem:[#allocation7 + $0x7f8] sm:$0xff]
        %v969 = vld [vmem:[#allocation7 + $0x800] sm:$0xff]
        %v970 = vld [vmem:[#allocation7 + $0x808] sm:$0xff]
        %v971 = vld [vmem:[#allocation7 + $0x810] sm:$0xff]
        %v972 = vld [vmem:[#allocation7 + $0x818] sm:$0xff]
        %v973 = vld [vmem:[#allocation7 + $0x820] sm:$0xff]
        %v974 = vld [vmem:[#allocation7 + $0x828] sm:$0xff]
        %v975 = vld [vmem:[#allocation7 + $0x830] sm:$0xff]
        %v976 = vld [vmem:[#allocation7 + $0x838] sm:$0xff]
        %v977 = vld [vmem:[#allocation7 + $0x840] sm:$0xff]
        %v978 = vld [vmem:[#allocation7 + $0x848] sm:$0xff]
        %v979 = vld [vmem:[#allocation7 + $0x850] sm:$0xff]
        %v980 = vld [vmem:[#allocation7 + $0x858] sm:$0xff]
        %v981 = vld [vmem:[#allocation7 + $0x860] sm:$0xff]
        %v982 = vld [vmem:[#allocation7 + $0x868] sm:$0xff]
        %v983 = vld [vmem:[#allocation7 + $0x870] sm:$0xff]
        %v984 = vld [vmem:[#allocation7 + $0x878] sm:$0xff]
        %v985 = vld [vmem:[#allocation7 + $0x880] sm:$0xff]
        %v986 = vld [vmem:[#allocation7 + $0x888] sm:$0xff]
        %v987 = vld [vmem:[#allocation7 + $0x890] sm:$0xff]
        %v988 = vld [vmem:[#allocation7 + $0x898] sm:$0xff]
        %v989 = vld [vmem:[#allocation7 + $0x8a0] sm:$0xff]
        %v990 = vld [vmem:[#allocation7 + $0x8a8] sm:$0xff]
        %v991 = vld [vmem:[#allocation7 + $0x8b0] sm:$0xff]
        %v992 = vld [vmem:[#allocation7 + $0x8b8] sm:$0xff]
        %v993 = vld [vmem:[#allocation7 + $0x8c0] sm:$0xff]
        %v994 = vld [vmem:[#allocation7 + $0x8c8] sm:$0xff]
        %v995 = vld [vmem:[#allocation7 + $0x8d0] sm:$0xff]
        %v996 = vld [vmem:[#allocation7 + $0x8d8] sm:$0xff]
        %v997 = vld [vmem:[#allocation7 + $0x8e0] sm:$0xff]
        %v998 = vld [vmem:[#allocation7 + $0x8e8] sm:$0xff]
        %v999 = vld [vmem:[#allocation7 + $0x8f0] sm:$0xff]
        %v1000 = vld [vmem:[#allocation7 + $0x8f8] sm:$0xff]
        %v1001 = vld [vmem:[#allocation7 + $0x900] sm:$0xff]
        %v1002 = vld [vmem:[#allocation7 + $0x908] sm:$0xff]
        %v1003 = vld [vmem:[#allocation7 + $0x910] sm:$0xff]
        %v1004 = vld [vmem:[#allocation7 + $0x918] sm:$0xff]
        %v1005 = vld [vmem:[#allocation7 + $0x920] sm:$0xff]
        %v1006 = vld [vmem:[#allocation7 + $0x928] sm:$0xff]
        %v1007 = vld [vmem:[#allocation7 + $0x930] sm:$0xff]
        %v1008 = vld [vmem:[#allocation7 + $0x938] sm:$0xff]
        %v1009 = vld [vmem:[#allocation7 + $0x940] sm:$0xff]
        %v1010 = vld [vmem:[#allocation7 + $0x948] sm:$0xff]
        %v1011 = vld [vmem:[#allocation7 + $0x950] sm:$0xff]
        %v1012 = vld [vmem:[#allocation7 + $0x958] sm:$0xff]
        %v1013 = vld [vmem:[#allocation7 + $0x960] sm:$0xff]
        %v1014 = vld [vmem:[#allocation7 + $0x968] sm:$0xff]
        %v1015 = vld [vmem:[#allocation7 + $0x970] sm:$0xff]
        %v1016 = vld [vmem:[#allocation7 + $0x978] sm:$0xff]
        %v1017 = vld [vmem:[#allocation7 + $0x980] sm:$0xff]
        %v1018 = vld [vmem:[#allocation7 + $0x988] sm:$0xff]
        %v1019 = vld [vmem:[#allocation7 + $0x990] sm:$0xff]
        %v1020 = vld [vmem:[#allocation7 + $0x998] sm:$0xff]
        %v1021 = vld [vmem:[#allocation7 + $0x9a0] sm:$0xff]
        %v1022 = vld [vmem:[#allocation7 + $0x9a8] sm:$0xff]
        %v1023 = vld [vmem:[#allocation7 + $0x9b0] sm:$0xff]
        %v1024 = vld [vmem:[#allocation7 + $0x9b8] sm:$0xff]
        %v1025 = vld [vmem:[#allocation7 + $0x9c0] sm:$0xff]
        %v1026 = vld [vmem:[#allocation7 + $0x9c8] sm:$0xff]
        %v1027 = vld [vmem:[#allocation7 + $0x9d0] sm:$0xff]
        %v1028 = vld [vmem:[#allocation7 + $0x9d8] sm:$0xff]
        %v1029 = vld [vmem:[#allocation7 + $0x9e0] sm:$0xff]
        %v1030 = vld [vmem:[#allocation7 + $0x9e8] sm:$0xff]
        %v1031 = vld [vmem:[#allocation7 + $0x9f0] sm:$0xff]
        %v1032 = vld [vmem:[#allocation7 + $0x9f8] sm:$0xff]
        %v1033 = vld [vmem:[#allocation7 + $0xa00] sm:$0xff]
        %v1034 = vld [vmem:[#allocation7 + $0xa08] sm:$0xff]
        %v1035 = vld [vmem:[#allocation7 + $0xa10] sm:$0xff]
        %v1036 = vld [vmem:[#allocation7 + $0xa18] sm:$0xff]
        %v1037 = vld [vmem:[#allocation7 + $0xa20] sm:$0xff]
        %v1038 = vld [vmem:[#allocation7 + $0xa28] sm:$0xff]
        %v1039 = vld [vmem:[#allocation7 + $0xa30] sm:$0xff]
        %v1040 = vld [vmem:[#allocation7 + $0xa38] sm:$0xff]
        %v1041 = vld [vmem:[#allocation7 + $0xa40] sm:$0xff]
        %v1042 = vld [vmem:[#allocation7 + $0xa48] sm:$0xff]
        %v1043 = vld [vmem:[#allocation7 + $0xa50] sm:$0xff]
        %v1044 = vld [vmem:[#allocation7 + $0xa58] sm:$0xff]
        %v1045 = vld [vmem:[#allocation7 + $0xa60] sm:$0xff]
        %v1046 = vld [vmem:[#allocation7 + $0xa68] sm:$0xff]
        %v1047 = vld [vmem:[#allocation7 + $0xa70] sm:$0xff]
        %v1048 = vld [vmem:[#allocation7 + $0xa78] sm:$0xff]
        %v1049 = vld [vmem:[#allocation7 + $0xa80] sm:$0xff]
        %v1050 = vld [vmem:[#allocation7 + $0xa88] sm:$0xff]
        %v1051 = vld [vmem:[#allocation7 + $0xa90] sm:$0xff]
        %v1052 = vld [vmem:[#allocation7 + $0xa98] sm:$0xff]
        %v1053 = vld [vmem:[#allocation7 + $0xaa0] sm:$0xff]
        %v1054 = vld [vmem:[#allocation7 + $0xaa8] sm:$0xff]
        %v1055 = vld [vmem:[#allocation7 + $0xab0] sm:$0xff]
        %v1056 = vld [vmem:[#allocation7 + $0xab8] sm:$0xff]
        %v1057 = vld [vmem:[#allocation7 + $0xac0] sm:$0xff]
        %v1058 = vld [vmem:[#allocation7 + $0xac8] sm:$0xff]
        %v1059 = vld [vmem:[#allocation7 + $0xad0] sm:$0xff]
        %v1060 = vld [vmem:[#allocation7 + $0xad8] sm:$0xff]
        %v1061 = vld [vmem:[#allocation7 + $0xae0] sm:$0xff]
        %v1062 = vld [vmem:[#allocation7 + $0xae8] sm:$0xff]
        %v1063 = vld [vmem:[#allocation7 + $0xaf0] sm:$0xff]
        %v1064 = vld [vmem:[#allocation7 + $0xaf8] sm:$0xff]
        %v1065 = vld [vmem:[#allocation7 + $0xb00] sm:$0xff]
        %v1066 = vld [vmem:[#allocation7 + $0xb08] sm:$0xff]
        %v1067 = vld [vmem:[#allocation7 + $0xb10] sm:$0xff]
        %v1068 = vld [vmem:[#allocation7 + $0xb18] sm:$0xff]
        %v1069 = vld [vmem:[#allocation7 + $0xb20] sm:$0xff]
        %v1070 = vld [vmem:[#allocation7 + $0xb28] sm:$0xff]
        %v1071 = vld [vmem:[#allocation7 + $0xb30] sm:$0xff]
        %v1072 = vld [vmem:[#allocation7 + $0xb38] sm:$0xff]
        %v1073 = vld [vmem:[#allocation7 + $0xb40] sm:$0xff]
        %v1074 = vld [vmem:[#allocation7 + $0xb48] sm:$0xff]
        %v1075 = vld [vmem:[#allocation7 + $0xb50] sm:$0xff]
        %v1076 = vld [vmem:[#allocation7 + $0xb58] sm:$0xff]
        %v1077 = vld [vmem:[#allocation7 + $0xb60] sm:$0xff]
        %v1078 = vld [vmem:[#allocation7 + $0xb68] sm:$0xff]
        %v1079 = vld [vmem:[#allocation7 + $0xb70] sm:$0xff]
        %v1080 = vld [vmem:[#allocation7 + $0xb78] sm:$0xff]
        %v1081 = vld [vmem:[#allocation7 + $0xb80] sm:$0xff]
        %v1082 = vld [vmem:[#allocation7 + $0xb88] sm:$0xff]
        %v1083 = vld [vmem:[#allocation7 + $0xb90] sm:$0xff]
        %v1084 = vld [vmem:[#allocation7 + $0xb98] sm:$0xff]
        %v1085 = vld [vmem:[#allocation7 + $0xba0] sm:$0xff]
        %v1086 = vld [vmem:[#allocation7 + $0xba8] sm:$0xff]
        %v1087 = vld [vmem:[#allocation7 + $0xbb0] sm:$0xff]
        %v1088 = vld [vmem:[#allocation7 + $0xbb8] sm:$0xff]
        %v1089 = vld [vmem:[#allocation7 + $0xbc0] sm:$0xff]
        %v1090 = vld [vmem:[#allocation7 + $0xbc8] sm:$0xff]
        %v1091 = vld [vmem:[#allocation7 + $0xbd0] sm:$0xff]
        %v1092 = vld [vmem:[#allocation7 + $0xbd8] sm:$0xff]
        %v1093 = vld [vmem:[#allocation7 + $0xbe0] sm:$0xff]
        %v1094 = vld [vmem:[#allocation7 + $0xbe8] sm:$0xff]
        %v1095 = vld [vmem:[#allocation7 + $0xbf0] sm:$0xff]
        %v1096 = vld [vmem:[#allocation7 + $0xbf8] sm:$0xff]
        %v1097 = vld [vmem:[#allocation7 + $0xc00] sm:$0xff]
        %v1098 = vld [vmem:[#allocation7 + $0xc08] sm:$0xff]
        %v1099 = vld [vmem:[#allocation7 + $0xc10] sm:$0xff]
        %v1100 = vld [vmem:[#allocation7 + $0xc18] sm:$0xff]
        %v1101 = vld [vmem:[#allocation7 + $0xc20] sm:$0xff]
        %v1102 = vld [vmem:[#allocation7 + $0xc28] sm:$0xff]
        %v1103 = vld [vmem:[#allocation7 + $0xc30] sm:$0xff]
        %v1104 = vld [vmem:[#allocation7 + $0xc38] sm:$0xff]
        %v1105 = vld [vmem:[#allocation8] sm:$0xff]
        %v1107 = vlaneseq
        %v1108 = vshrl.u32 %v1107, 7
        %v1109 = vsub.s32 0, %v1108
        %v1110 = vrot.slane %v1105, %v1109
        %v1111 = vlaneseq
        %v1112 = vshrl.u32 %v1111, 7
        %v1113 = vsub.s32 1, %v1112
        %v1114 = vrot.slane %v1105, %v1113
        %v1115 = vlaneseq
        %v1116 = vshrl.u32 %v1115, 7
        %v1117 = vsub.s32 2, %v1116
        %v1118 = vrot.slane %v1105, %v1117
        %v1119 = vlaneseq
        %v1120 = vshrl.u32 %v1119, 7
        %v1121 = vsub.s32 3, %v1120
        %v1122 = vrot.slane %v1105, %v1121
        %v1123 = vlaneseq
        %v1124 = vshrl.u32 %v1123, 7
        %v1125 = vsub.s32 4, %v1124
        %v1126 = vrot.slane %v1105, %v1125
        %v1127 = vlaneseq
        %v1128 = vshrl.u32 %v1127, 7
        %v1129 = vsub.s32 5, %v1128
        %v1130 = vrot.slane %v1105, %v1129
        %v1131 = vlaneseq
        %v1132 = vshrl.u32 %v1131, 7
        %v1133 = vsub.s32 6, %v1132
        %v1134 = vrot.slane %v1105, %v1133
        %v1135 = vlaneseq
        %v1136 = vshrl.u32 %v1135, 7
        %v1137 = vsub.s32 7, %v1136
        %v1138 = vrot.slane %v1105, %v1137
        %v1151 = vunpack.c.l.b16 %v709
        %v1152 = vunpack.c.h.b16 %v709
        %v1153 = vunpack.c.l.b16 %v710
        %v1154 = vunpack.c.h.b16 %v710
        %v1155 = vunpack.c.l.b16 %v711
        %v1156 = vunpack.c.h.b16 %v711
        %v1157 = vunpack.c.l.b16 %v712
        %v1158 = vpack.c.b16 %v1151, %v1151
        %v1159 = vpack.c.b16 %v1152, %v1152
        %v1160 = vpack.c.b16 %v1153, %v1153
        %v1161 = vpack.c.b16 %v1154, %v1154
        %v1162 = vpack.c.b16 %v1155, %v1155
        %v1163 = vpack.c.b16 %v1156, %v1156
        %v1164 = vpack.c.b16 %v1157, %v1157
        %v1563 = vunpack.c.l.b16 %v713
        %v1564 = vunpack.c.h.b16 %v713
        %v1565 = vunpack.c.l.b16 %v714
        %v1566 = vunpack.c.h.b16 %v714
        %v1567 = vunpack.c.l.b16 %v715
        %v1568 = vunpack.c.h.b16 %v715
        %v1569 = vunpack.c.l.b16 %v716
        %v1570 = vunpack.c.h.b16 %v716
        %v1571 = vunpack.c.l.b16 %v717
        %v1572 = vunpack.c.h.b16 %v717
        %v1573 = vunpack.c.l.b16 %v718
        %v1574 = vunpack.c.h.b16 %v718
        %v1575 = vunpack.c.l.b16 %v719
        %v1576 = vunpack.c.h.b16 %v719
        %v1577 = vunpack.c.l.b16 %v720
        %v1578 = vunpack.c.h.b16 %v720
        %v1579 = vunpack.c.l.b16 %v721
        %v1580 = vunpack.c.h.b16 %v721
        %v1581 = vunpack.c.l.b16 %v722
        %v1582 = vunpack.c.h.b16 %v722
        %v1583 = vunpack.c.l.b16 %v723
        %v1584 = vunpack.c.h.b16 %v723
        %v1585 = vunpack.c.l.b16 %v724
        %v1586 = vunpack.c.h.b16 %v724
        %v1587 = vunpack.c.l.b16 %v725
        %v1588 = vunpack.c.h.b16 %v725
        %v1589 = vunpack.c.l.b16 %v726
        %v1590 = vunpack.c.h.b16 %v726
        %v1591 = vunpack.c.l.b16 %v727
        %v1592 = vunpack.c.h.b16 %v727
        %v1593 = vunpack.c.l.b16 %v728
        %v1594 = vunpack.c.h.b16 %v728
        %v1595 = vunpack.c.l.b16 %v729
        %v1596 = vunpack.c.h.b16 %v729
        %v1597 = vunpack.c.l.b16 %v730
        %v1598 = vunpack.c.h.b16 %v730
        %v1599 = vunpack.c.l.b16 %v731
        %v1600 = vunpack.c.h.b16 %v731
        %v1601 = vunpack.c.l.b16 %v732
        %v1602 = vunpack.c.h.b16 %v732
        %v1603 = vunpack.c.l.b16 %v733
        %v1604 = vunpack.c.h.b16 %v733
        %v1605 = vunpack.c.l.b16 %v734
        %v1606 = vunpack.c.h.b16 %v734
        %v1607 = vunpack.c.l.b16 %v735
        %v1608 = vunpack.c.h.b16 %v735
        %v1609 = vunpack.c.l.b16 %v736
        %v1610 = vunpack.c.h.b16 %v736
        %v1611 = vunpack.c.l.b16 %v737
        %v1612 = vunpack.c.h.b16 %v737
        %v1613 = vunpack.c.l.b16 %v738
        %v1614 = vunpack.c.h.b16 %v738
        %v1615 = vunpack.c.l.b16 %v739
        %v1616 = vunpack.c.h.b16 %v739
        %v1617 = vunpack.c.l.b16 %v740
        %v1618 = vunpack.c.h.b16 %v740
        %v1619 = vunpack.c.l.b16 %v741
        %v1620 = vunpack.c.h.b16 %v741
        %v1621 = vunpack.c.l.b16 %v742
        %v1622 = vunpack.c.h.b16 %v742
        %v1623 = vunpack.c.l.b16 %v743
        %v1624 = vunpack.c.h.b16 %v743
        %v1625 = vunpack.c.l.b16 %v744
        %v1626 = vunpack.c.h.b16 %v744
        %v1627 = vunpack.c.l.b16 %v745
        %v1628 = vunpack.c.h.b16 %v745
        %v1629 = vunpack.c.l.b16 %v746
        %v1630 = vunpack.c.h.b16 %v746
        %v1631 = vunpack.c.l.b16 %v747
        %v1632 = vunpack.c.h.b16 %v747
        %v1633 = vunpack.c.l.b16 %v748
        %v1634 = vunpack.c.h.b16 %v748
        %v1635 = vunpack.c.l.b16 %v749
        %v1636 = vunpack.c.h.b16 %v749
        %v1637 = vunpack.c.l.b16 %v750
        %v1638 = vunpack.c.h.b16 %v750
        %v1639 = vunpack.c.l.b16 %v751
        %v1640 = vunpack.c.h.b16 %v751
        %v1641 = vunpack.c.l.b16 %v752
        %v1642 = vunpack.c.h.b16 %v752
        %v1643 = vunpack.c.l.b16 %v753
        %v1644 = vunpack.c.h.b16 %v753
        %v1645 = vunpack.c.l.b16 %v754
        %v1646 = vunpack.c.h.b16 %v754
        %v1647 = vunpack.c.l.b16 %v755
        %v1648 = vunpack.c.h.b16 %v755
        %v1649 = vunpack.c.l.b16 %v756
        %v1650 = vunpack.c.h.b16 %v756
        %v1651 = vunpack.c.l.b16 %v757
        %v1652 = vunpack.c.h.b16 %v757
        %v1653 = vunpack.c.l.b16 %v758
        %v1654 = vunpack.c.h.b16 %v758
        %v1655 = vunpack.c.l.b16 %v759
        %v1656 = vunpack.c.h.b16 %v759
        %v1657 = vunpack.c.l.b16 %v760
        %v1658 = vunpack.c.h.b16 %v760
        %v1659 = vunpack.c.l.b16 %v761
        %v1660 = vunpack.c.h.b16 %v761
        %v1661 = vunpack.c.l.b16 %v762
        %v1662 = vunpack.c.h.b16 %v762
        %v1663 = vunpack.c.l.b16 %v763
        %v1664 = vunpack.c.h.b16 %v763
        %v1665 = vunpack.c.l.b16 %v764
        %v1666 = vunpack.c.h.b16 %v764
        %v1667 = vunpack.c.l.b16 %v765
        %v1668 = vunpack.c.h.b16 %v765
        %v1669 = vunpack.c.l.b16 %v766
        %v1670 = vunpack.c.h.b16 %v766
        %v1671 = vunpack.c.l.b16 %v767
        %v1672 = vunpack.c.h.b16 %v767
        %v1673 = vunpack.c.l.b16 %v768
        %v1674 = vunpack.c.h.b16 %v768
        %v1675 = vunpack.c.l.b16 %v769
        %v1676 = vunpack.c.h.b16 %v769
        %v1677 = vunpack.c.l.b16 %v770
        %v1678 = vunpack.c.h.b16 %v770
        %v1679 = vunpack.c.l.b16 %v771
        %v1680 = vunpack.c.h.b16 %v771
        %v1681 = vunpack.c.l.b16 %v772
        %v1682 = vunpack.c.h.b16 %v772
        %v1683 = vunpack.c.l.b16 %v773
        %v1684 = vunpack.c.h.b16 %v773
        %v1685 = vunpack.c.l.b16 %v774
        %v1686 = vunpack.c.h.b16 %v774
        %v1687 = vunpack.c.l.b16 %v775
        %v1688 = vunpack.c.h.b16 %v775
        %v1689 = vunpack.c.l.b16 %v776
        %v1690 = vunpack.c.h.b16 %v776
        %v1691 = vunpack.c.l.b16 %v777
        %v1692 = vunpack.c.h.b16 %v777
        %v1693 = vunpack.c.l.b16 %v778
        %v1694 = vunpack.c.h.b16 %v778
        %v1695 = vunpack.c.l.b16 %v779
        %v1696 = vunpack.c.h.b16 %v779
        %v1697 = vunpack.c.l.b16 %v780
        %v1698 = vunpack.c.h.b16 %v780
        %v1699 = vunpack.c.l.b16 %v781
        %v1700 = vunpack.c.h.b16 %v781
        %v1701 = vunpack.c.l.b16 %v782
        %v1702 = vunpack.c.h.b16 %v782
        %v1703 = vunpack.c.l.b16 %v783
        %v1704 = vunpack.c.h.b16 %v783
        %v1705 = vunpack.c.l.b16 %v784
        %v1706 = vunpack.c.h.b16 %v784
        %v1707 = vunpack.c.l.b16 %v785
        %v1708 = vunpack.c.h.b16 %v785
        %v1709 = vunpack.c.l.b16 %v786
        %v1710 = vunpack.c.h.b16 %v786
        %v1711 = vunpack.c.l.b16 %v787
        %v1712 = vunpack.c.h.b16 %v787
        %v1713 = vunpack.c.l.b16 %v788
        %v1714 = vunpack.c.h.b16 %v788
        %v1715 = vunpack.c.l.b16 %v789
        %v1716 = vunpack.c.h.b16 %v789
        %v1717 = vunpack.c.l.b16 %v790
        %v1718 = vunpack.c.h.b16 %v790
        %v1719 = vunpack.c.l.b16 %v791
        %v1720 = vunpack.c.h.b16 %v791
        %v1721 = vunpack.c.l.b16 %v792
        %v1722 = vunpack.c.h.b16 %v792
        %v1723 = vunpack.c.l.b16 %v793
        %v1724 = vunpack.c.h.b16 %v793
        %v1725 = vunpack.c.l.b16 %v794
        %v1726 = vunpack.c.h.b16 %v794
        %v1727 = vunpack.c.l.b16 %v795
        %v1728 = vunpack.c.h.b16 %v795
        %v1729 = vunpack.c.l.b16 %v796
        %v1730 = vunpack.c.h.b16 %v796
        %v1731 = vunpack.c.l.b16 %v797
        %v1732 = vunpack.c.h.b16 %v797
        %v1733 = vunpack.c.l.b16 %v798
        %v1734 = vunpack.c.h.b16 %v798
        %v1735 = vunpack.c.l.b16 %v799
        %v1736 = vunpack.c.h.b16 %v799
        %v1737 = vunpack.c.l.b16 %v800
        %v1738 = vunpack.c.h.b16 %v800
        %v1739 = vunpack.c.l.b16 %v801
        %v1740 = vunpack.c.h.b16 %v801
        %v1741 = vunpack.c.l.b16 %v802
        %v1742 = vunpack.c.h.b16 %v802
        %v1743 = vunpack.c.l.b16 %v803
        %v1744 = vunpack.c.h.b16 %v803
        %v1745 = vunpack.c.l.b16 %v804
        %v1746 = vunpack.c.h.b16 %v804
        %v1747 = vunpack.c.l.b16 %v805
        %v1748 = vunpack.c.h.b16 %v805
        %v1749 = vunpack.c.l.b16 %v806
        %v1750 = vunpack.c.h.b16 %v806
        %v1751 = vunpack.c.l.b16 %v807
        %v1752 = vunpack.c.h.b16 %v807
        %v1753 = vunpack.c.l.b16 %v808
        %v1754 = vunpack.c.h.b16 %v808
        %v1755 = vunpack.c.l.b16 %v809
        %v1756 = vunpack.c.h.b16 %v809
        %v1757 = vunpack.c.l.b16 %v810
        %v1758 = vunpack.c.h.b16 %v810
        %v1759 = vunpack.c.l.b16 %v811
        %v1760 = vunpack.c.h.b16 %v811
        %v1761 = vunpack.c.l.b16 %v812
        %v1762 = vunpack.c.h.b16 %v812
        %v1763 = vunpack.c.l.b16 %v813
        %v1764 = vunpack.c.h.b16 %v813
        %v1765 = vunpack.c.l.b16 %v814
        %v1766 = vunpack.c.h.b16 %v814
        %v1767 = vunpack.c.l.b16 %v815
        %v1768 = vunpack.c.h.b16 %v815
        %v1769 = vunpack.c.l.b16 %v816
        %v1770 = vunpack.c.h.b16 %v816
        %v1771 = vunpack.c.l.b16 %v817
        %v1772 = vunpack.c.h.b16 %v817
        %v1773 = vunpack.c.l.b16 %v818
        %v1774 = vunpack.c.h.b16 %v818
        %v1775 = vunpack.c.l.b16 %v819
        %v1776 = vunpack.c.h.b16 %v819
        %v1777 = vunpack.c.l.b16 %v820
        %v1778 = vunpack.c.h.b16 %v820
        %v1779 = vunpack.c.l.b16 %v821
        %v1780 = vunpack.c.h.b16 %v821
        %v1781 = vunpack.c.l.b16 %v822
        %v1782 = vunpack.c.h.b16 %v822
        %v1783 = vunpack.c.l.b16 %v823
        %v1784 = vunpack.c.h.b16 %v823
        %v1785 = vunpack.c.l.b16 %v824
        %v1786 = vunpack.c.h.b16 %v824
        %v1787 = vunpack.c.l.b16 %v825
        %v1788 = vunpack.c.h.b16 %v825
        %v1789 = vunpack.c.l.b16 %v826
        %v1790 = vunpack.c.h.b16 %v826
        %v1791 = vunpack.c.l.b16 %v827
        %v1792 = vunpack.c.h.b16 %v827
        %v1793 = vunpack.c.l.b16 %v828
        %v1794 = vunpack.c.h.b16 %v828
        %v1795 = vunpack.c.l.b16 %v829
        %v1796 = vunpack.c.h.b16 %v829
        %v1797 = vunpack.c.l.b16 %v830
        %v1798 = vunpack.c.h.b16 %v830
        %v1799 = vunpack.c.l.b16 %v831
        %v1800 = vunpack.c.h.b16 %v831
        %v1801 = vunpack.c.l.b16 %v832
        %v1802 = vunpack.c.h.b16 %v832
        %v1803 = vunpack.c.l.b16 %v833
        %v1804 = vunpack.c.h.b16 %v833
        %v1805 = vunpack.c.l.b16 %v834
        %v1806 = vunpack.c.h.b16 %v834
        %v1807 = vunpack.c.l.b16 %v835
        %v1808 = vunpack.c.h.b16 %v835
        %v1809 = vunpack.c.l.b16 %v836
        %v1810 = vunpack.c.h.b16 %v836
        %v1811 = vunpack.c.l.b16 %v837
        %v1812 = vunpack.c.h.b16 %v837
        %v1813 = vunpack.c.l.b16 %v838
        %v1814 = vunpack.c.h.b16 %v838
        %v1815 = vunpack.c.l.b16 %v839
        %v1816 = vunpack.c.h.b16 %v839
        %v1817 = vunpack.c.l.b16 %v840
        %v1818 = vunpack.c.h.b16 %v840
        %v1819 = vunpack.c.l.b16 %v841
        %v1820 = vunpack.c.h.b16 %v841
        %v1821 = vunpack.c.l.b16 %v842
        %v1822 = vunpack.c.h.b16 %v842
        %v1823 = vunpack.c.l.b16 %v843
        %v1824 = vunpack.c.h.b16 %v843
        %v1825 = vunpack.c.l.b16 %v844
        %v1826 = vunpack.c.h.b16 %v844
        %v1827 = vunpack.c.l.b16 %v845
        %v1828 = vunpack.c.h.b16 %v845
        %v1829 = vunpack.c.l.b16 %v846
        %v1830 = vunpack.c.h.b16 %v846
        %v1831 = vunpack.c.l.b16 %v847
        %v1832 = vunpack.c.h.b16 %v847
        %v1833 = vunpack.c.l.b16 %v848
        %v1834 = vunpack.c.h.b16 %v848
        %v1835 = vunpack.c.l.b16 %v849
        %v1836 = vunpack.c.h.b16 %v849
        %v1837 = vunpack.c.l.b16 %v850
        %v1838 = vunpack.c.h.b16 %v850
        %v1839 = vunpack.c.l.b16 %v851
        %v1840 = vunpack.c.h.b16 %v851
        %v1841 = vunpack.c.l.b16 %v852
        %v1842 = vunpack.c.h.b16 %v852
        %v1843 = vunpack.c.l.b16 %v853
        %v1844 = vunpack.c.h.b16 %v853
        %v1845 = vunpack.c.l.b16 %v854
        %v1846 = vunpack.c.h.b16 %v854
        %v1847 = vunpack.c.l.b16 %v855
        %v1848 = vunpack.c.h.b16 %v855
        %v1849 = vunpack.c.l.b16 %v856
        %v1850 = vunpack.c.h.b16 %v856
        %v1851 = vunpack.c.l.b16 %v857
        %v1852 = vunpack.c.h.b16 %v857
        %v1853 = vunpack.c.l.b16 %v858
        %v1854 = vunpack.c.h.b16 %v858
        %v1855 = vunpack.c.l.b16 %v859
        %v1856 = vunpack.c.h.b16 %v859
        %v1857 = vunpack.c.l.b16 %v860
        %v1858 = vunpack.c.h.b16 %v860
        %v1859 = vunpack.c.l.b16 %v861
        %v1860 = vunpack.c.h.b16 %v861
        %v1861 = vunpack.c.l.b16 %v862
        %v1862 = vunpack.c.h.b16 %v862
        %v1863 = vunpack.c.l.b16 %v863
        %v1864 = vunpack.c.h.b16 %v863
        %v1865 = vunpack.c.l.b16 %v864
        %v1866 = vunpack.c.h.b16 %v864
        %v1867 = vunpack.c.l.b16 %v865
        %v1868 = vunpack.c.h.b16 %v865
        %v1869 = vunpack.c.l.b16 %v866
        %v1870 = vunpack.c.h.b16 %v866
        %v1871 = vunpack.c.l.b16 %v867
        %v1872 = vunpack.c.h.b16 %v867
        %v1873 = vunpack.c.l.b16 %v868
        %v1874 = vunpack.c.h.b16 %v868
        %v1875 = vunpack.c.l.b16 %v869
        %v1876 = vunpack.c.h.b16 %v869
        %v1877 = vunpack.c.l.b16 %v870
        %v1878 = vunpack.c.h.b16 %v870
        %v1879 = vunpack.c.l.b16 %v871
        %v1880 = vunpack.c.h.b16 %v871
        %v1881 = vunpack.c.l.b16 %v872
        %v1882 = vunpack.c.h.b16 %v872
        %v1883 = vunpack.c.l.b16 %v873
        %v1884 = vunpack.c.h.b16 %v873
        %v1885 = vunpack.c.l.b16 %v874
        %v1886 = vunpack.c.h.b16 %v874
        %v1887 = vunpack.c.l.b16 %v875
        %v1888 = vunpack.c.h.b16 %v875
        %v1889 = vunpack.c.l.b16 %v876
        %v1890 = vunpack.c.h.b16 %v876
        %v1891 = vunpack.c.l.b16 %v877
        %v1892 = vunpack.c.h.b16 %v877
        %v1893 = vunpack.c.l.b16 %v878
        %v1894 = vunpack.c.h.b16 %v878
        %v1895 = vunpack.c.l.b16 %v879
        %v1896 = vunpack.c.h.b16 %v879
        %v1897 = vunpack.c.l.b16 %v880
        %v1898 = vunpack.c.h.b16 %v880
        %v1899 = vunpack.c.l.b16 %v881
        %v1900 = vunpack.c.h.b16 %v881
        %v1901 = vunpack.c.l.b16 %v882
        %v1902 = vunpack.c.h.b16 %v882
        %v1903 = vunpack.c.l.b16 %v883
        %v1904 = vunpack.c.h.b16 %v883
        %v1905 = vunpack.c.l.b16 %v884
        %v1906 = vunpack.c.h.b16 %v884
        %v1907 = vunpack.c.l.b16 %v885
        %v1908 = vunpack.c.h.b16 %v885
        %v1909 = vunpack.c.l.b16 %v886
        %v1910 = vunpack.c.h.b16 %v886
        %v1911 = vunpack.c.l.b16 %v887
        %v1912 = vunpack.c.h.b16 %v887
        %v1913 = vunpack.c.l.b16 %v888
        %v1914 = vunpack.c.h.b16 %v888
        %v1915 = vunpack.c.l.b16 %v889
        %v1916 = vunpack.c.h.b16 %v889
        %v1917 = vunpack.c.l.b16 %v890
        %v1918 = vunpack.c.h.b16 %v890
        %v1919 = vunpack.c.l.b16 %v891
        %v1920 = vunpack.c.h.b16 %v891
        %v1921 = vunpack.c.l.b16 %v892
        %v1922 = vunpack.c.h.b16 %v892
        %v1923 = vunpack.c.l.b16 %v893
        %v1924 = vunpack.c.h.b16 %v893
        %v1925 = vunpack.c.l.b16 %v894
        %v1926 = vunpack.c.h.b16 %v894
        %v1927 = vunpack.c.l.b16 %v895
        %v1928 = vunpack.c.h.b16 %v895
        %v1929 = vunpack.c.l.b16 %v896
        %v1930 = vunpack.c.h.b16 %v896
        %v1931 = vunpack.c.l.b16 %v897
        %v1932 = vunpack.c.h.b16 %v897
        %v1933 = vunpack.c.l.b16 %v898
        %v1934 = vunpack.c.h.b16 %v898
        %v1935 = vunpack.c.l.b16 %v899
        %v1936 = vunpack.c.h.b16 %v899
        %v1937 = vunpack.c.l.b16 %v900
        %v1938 = vunpack.c.h.b16 %v900
        %v1939 = vunpack.c.l.b16 %v901
        %v1940 = vunpack.c.h.b16 %v901
        %v1941 = vunpack.c.l.b16 %v902
        %v1942 = vunpack.c.h.b16 %v902
        %v1943 = vunpack.c.l.b16 %v903
        %v1944 = vunpack.c.h.b16 %v903
        %v1945 = vunpack.c.l.b16 %v904
        %v1946 = vunpack.c.h.b16 %v904
        %v1947 = vunpack.c.l.b16 %v905
        %v1948 = vunpack.c.h.b16 %v905
        %v1949 = vunpack.c.l.b16 %v906
        %v1950 = vunpack.c.h.b16 %v906
        %v1951 = vunpack.c.l.b16 %v907
        %v1952 = vunpack.c.h.b16 %v907
        %v1953 = vunpack.c.l.b16 %v908
        %v1954 = vunpack.c.h.b16 %v908
        %v1955 = vunpack.c.l.b16 %v909
        %v1956 = vunpack.c.h.b16 %v909
        %v1957 = vunpack.c.l.b16 %v910
        %v1958 = vunpack.c.h.b16 %v910
        %v1959 = vunpack.c.l.b16 %v911
        %v1960 = vunpack.c.h.b16 %v911
        %v1961 = vunpack.c.l.b16 %v912
        %v1962 = vunpack.c.h.b16 %v912
        %v1963 = vunpack.c.l.b16 %v913
        %v1964 = vunpack.c.h.b16 %v913
        %v1965 = vunpack.c.l.b16 %v914
        %v1966 = vunpack.c.h.b16 %v914
        %v1967 = vunpack.c.l.b16 %v915
        %v1968 = vunpack.c.h.b16 %v915
        %v1969 = vunpack.c.l.b16 %v916
        %v1970 = vunpack.c.h.b16 %v916
        %v1971 = vunpack.c.l.b16 %v917
        %v1972 = vunpack.c.h.b16 %v917
        %v1973 = vunpack.c.l.b16 %v918
        %v1974 = vunpack.c.h.b16 %v918
        %v1975 = vunpack.c.l.b16 %v919
        %v1976 = vunpack.c.h.b16 %v919
        %v1977 = vunpack.c.l.b16 %v920
        %v1978 = vunpack.c.h.b16 %v920
        %v1979 = vunpack.c.l.b16 %v921
        %v1980 = vunpack.c.h.b16 %v921
        %v1981 = vunpack.c.l.b16 %v922
        %v1982 = vunpack.c.h.b16 %v922
        %v1983 = vunpack.c.l.b16 %v923
        %v1984 = vunpack.c.h.b16 %v923
        %v1985 = vunpack.c.l.b16 %v924
        %v1986 = vunpack.c.h.b16 %v924
        %v1987 = vunpack.c.l.b16 %v925
        %v1988 = vunpack.c.h.b16 %v925
        %v1989 = vunpack.c.l.b16 %v926
        %v1990 = vunpack.c.h.b16 %v926
        %v1991 = vunpack.c.l.b16 %v927
        %v1992 = vunpack.c.h.b16 %v927
        %v1993 = vunpack.c.l.b16 %v928
        %v1994 = vunpack.c.h.b16 %v928
        %v1995 = vunpack.c.l.b16 %v929
        %v1996 = vunpack.c.h.b16 %v929
        %v1997 = vunpack.c.l.b16 %v930
        %v1998 = vunpack.c.h.b16 %v930
        %v1999 = vunpack.c.l.b16 %v931
        %v2000 = vunpack.c.h.b16 %v931
        %v2001 = vunpack.c.l.b16 %v932
        %v2002 = vunpack.c.h.b16 %v932
        %v2003 = vunpack.c.l.b16 %v933
        %v2004 = vunpack.c.h.b16 %v933
        %v2005 = vunpack.c.l.b16 %v934
        %v2006 = vunpack.c.h.b16 %v934
        %v2007 = vunpack.c.l.b16 %v935
        %v2008 = vunpack.c.h.b16 %v935
        %v2009 = vunpack.c.l.b16 %v936
        %v2010 = vunpack.c.h.b16 %v936
        %v2011 = vunpack.c.l.b16 %v937
        %v2012 = vunpack.c.h.b16 %v937
        %v2013 = vunpack.c.l.b16 %v938
        %v2014 = vunpack.c.h.b16 %v938
        %v2015 = vunpack.c.l.b16 %v939
        %v2016 = vunpack.c.h.b16 %v939
        %v2017 = vunpack.c.l.b16 %v940
        %v2018 = vunpack.c.h.b16 %v940
        %v2019 = vunpack.c.l.b16 %v941
        %v2020 = vunpack.c.h.b16 %v941
        %v2021 = vunpack.c.l.b16 %v942
        %v2022 = vunpack.c.h.b16 %v942
        %v2023 = vunpack.c.l.b16 %v943
        %v2024 = vunpack.c.h.b16 %v943
        %v2025 = vunpack.c.l.b16 %v944
        %v2026 = vunpack.c.h.b16 %v944
        %v2027 = vunpack.c.l.b16 %v945
        %v2028 = vunpack.c.h.b16 %v945
        %v2029 = vunpack.c.l.b16 %v946
        %v2030 = vunpack.c.h.b16 %v946
        %v2031 = vunpack.c.l.b16 %v947
        %v2032 = vunpack.c.h.b16 %v947
        %v2033 = vunpack.c.l.b16 %v948
        %v2034 = vunpack.c.h.b16 %v948
        %v2035 = vunpack.c.l.b16 %v949
        %v2036 = vunpack.c.h.b16 %v949
        %v2037 = vunpack.c.l.b16 %v950
        %v2038 = vunpack.c.h.b16 %v950
        %v2039 = vunpack.c.l.b16 %v951
        %v2040 = vunpack.c.h.b16 %v951
        %v2041 = vunpack.c.l.b16 %v952
        %v2042 = vunpack.c.h.b16 %v952
        %v2043 = vunpack.c.l.b16 %v953
        %v2044 = vunpack.c.h.b16 %v953
        %v2045 = vunpack.c.l.b16 %v954
        %v2046 = vunpack.c.h.b16 %v954
        %v2047 = vunpack.c.l.b16 %v955
        %v2048 = vunpack.c.h.b16 %v955
        %v2049 = vunpack.c.l.b16 %v956
        %v2050 = vunpack.c.h.b16 %v956
        %v2051 = vunpack.c.l.b16 %v957
        %v2052 = vunpack.c.h.b16 %v957
        %v2053 = vunpack.c.l.b16 %v958
        %v2054 = vunpack.c.h.b16 %v958
        %v2055 = vunpack.c.l.b16 %v959
        %v2056 = vunpack.c.h.b16 %v959
        %v2057 = vunpack.c.l.b16 %v960
        %v2058 = vunpack.c.h.b16 %v960
        %v2059 = vunpack.c.l.b16 %v961
        %v2060 = vunpack.c.h.b16 %v961
        %v2061 = vunpack.c.l.b16 %v962
        %v2062 = vunpack.c.h.b16 %v962
        %v2063 = vunpack.c.l.b16 %v963
        %v2064 = vunpack.c.h.b16 %v963
        %v2065 = vunpack.c.l.b16 %v964
        %v2066 = vunpack.c.h.b16 %v964
        %v2067 = vunpack.c.l.b16 %v965
        %v2068 = vunpack.c.h.b16 %v965
        %v2069 = vunpack.c.l.b16 %v966
        %v2070 = vunpack.c.h.b16 %v966
        %v2071 = vunpack.c.l.b16 %v967
        %v2072 = vunpack.c.h.b16 %v967
        %v2073 = vunpack.c.l.b16 %v968
        %v2074 = vunpack.c.h.b16 %v968
        %v2075 = vunpack.c.l.b16 %v969
        %v2076 = vunpack.c.h.b16 %v969
        %v2077 = vunpack.c.l.b16 %v970
        %v2078 = vunpack.c.h.b16 %v970
        %v2079 = vunpack.c.l.b16 %v971
        %v2080 = vunpack.c.h.b16 %v971
        %v2081 = vunpack.c.l.b16 %v972
        %v2082 = vunpack.c.h.b16 %v972
        %v2083 = vunpack.c.l.b16 %v973
        %v2084 = vunpack.c.h.b16 %v973
        %v2085 = vunpack.c.l.b16 %v974
        %v2086 = vunpack.c.h.b16 %v974
        %v2087 = vunpack.c.l.b16 %v975
        %v2088 = vunpack.c.h.b16 %v975
        %v2089 = vunpack.c.l.b16 %v976
        %v2090 = vunpack.c.h.b16 %v976
        %v2091 = vunpack.c.l.b16 %v977
        %v2092 = vunpack.c.h.b16 %v977
        %v2093 = vunpack.c.l.b16 %v978
        %v2094 = vunpack.c.h.b16 %v978
        %v2095 = vunpack.c.l.b16 %v979
        %v2096 = vunpack.c.h.b16 %v979
        %v2097 = vunpack.c.l.b16 %v980
        %v2098 = vunpack.c.h.b16 %v980
        %v2099 = vunpack.c.l.b16 %v981
        %v2100 = vunpack.c.h.b16 %v981
        %v2101 = vunpack.c.l.b16 %v982
        %v2102 = vunpack.c.h.b16 %v982
        %v2103 = vunpack.c.l.b16 %v983
        %v2104 = vunpack.c.h.b16 %v983
        %v2105 = vunpack.c.l.b16 %v984
        %v2106 = vunpack.c.h.b16 %v984
        %v2107 = vunpack.c.l.b16 %v985
        %v2108 = vunpack.c.h.b16 %v985
        %v2109 = vunpack.c.l.b16 %v986
        %v2110 = vunpack.c.h.b16 %v986
        %v2111 = vunpack.c.l.b16 %v987
        %v2112 = vunpack.c.h.b16 %v987
        %v2113 = vunpack.c.l.b16 %v988
        %v2114 = vunpack.c.h.b16 %v988
        %v2115 = vunpack.c.l.b16 %v989
        %v2116 = vunpack.c.h.b16 %v989
        %v2117 = vunpack.c.l.b16 %v990
        %v2118 = vunpack.c.h.b16 %v990
        %v2119 = vunpack.c.l.b16 %v991
        %v2120 = vunpack.c.h.b16 %v991
        %v2121 = vunpack.c.l.b16 %v992
        %v2122 = vunpack.c.h.b16 %v992
        %v2123 = vunpack.c.l.b16 %v993
        %v2124 = vunpack.c.h.b16 %v993
        %v2125 = vunpack.c.l.b16 %v994
        %v2126 = vunpack.c.h.b16 %v994
        %v2127 = vunpack.c.l.b16 %v995
        %v2128 = vunpack.c.h.b16 %v995
        %v2129 = vunpack.c.l.b16 %v996
        %v2130 = vunpack.c.h.b16 %v996
        %v2131 = vunpack.c.l.b16 %v997
        %v2132 = vunpack.c.h.b16 %v997
        %v2133 = vunpack.c.l.b16 %v998
        %v2134 = vunpack.c.h.b16 %v998
        %v2135 = vunpack.c.l.b16 %v999
        %v2136 = vunpack.c.h.b16 %v999
        %v2137 = vunpack.c.l.b16 %v1000
        %v2138 = vunpack.c.h.b16 %v1000
        %v2139 = vunpack.c.l.b16 %v1001
        %v2140 = vunpack.c.h.b16 %v1001
        %v2141 = vunpack.c.l.b16 %v1002
        %v2142 = vunpack.c.h.b16 %v1002
        %v2143 = vunpack.c.l.b16 %v1003
        %v2144 = vunpack.c.h.b16 %v1003
        %v2145 = vunpack.c.l.b16 %v1004
        %v2146 = vunpack.c.h.b16 %v1004
        %v2147 = vunpack.c.l.b16 %v1005
        %v2148 = vunpack.c.h.b16 %v1005
        %v2149 = vunpack.c.l.b16 %v1006
        %v2150 = vunpack.c.h.b16 %v1006
        %v2151 = vunpack.c.l.b16 %v1007
        %v2152 = vunpack.c.h.b16 %v1007
        %v2153 = vunpack.c.l.b16 %v1008
        %v2154 = vunpack.c.h.b16 %v1008
        %v2155 = vunpack.c.l.b16 %v1009
        %v2156 = vunpack.c.h.b16 %v1009
        %v2157 = vunpack.c.l.b16 %v1010
        %v2158 = vunpack.c.h.b16 %v1010
        %v2159 = vunpack.c.l.b16 %v1011
        %v2160 = vunpack.c.h.b16 %v1011
        %v2161 = vunpack.c.l.b16 %v1012
        %v2162 = vunpack.c.h.b16 %v1012
        %v2163 = vunpack.c.l.b16 %v1013
        %v2164 = vunpack.c.h.b16 %v1013
        %v2165 = vunpack.c.l.b16 %v1014
        %v2166 = vunpack.c.h.b16 %v1014
        %v2167 = vunpack.c.l.b16 %v1015
        %v2168 = vunpack.c.h.b16 %v1015
        %v2169 = vunpack.c.l.b16 %v1016
        %v2170 = vunpack.c.h.b16 %v1016
        %v2171 = vunpack.c.l.b16 %v1017
        %v2172 = vunpack.c.h.b16 %v1017
        %v2173 = vunpack.c.l.b16 %v1018
        %v2174 = vunpack.c.h.b16 %v1018
        %v2175 = vunpack.c.l.b16 %v1019
        %v2176 = vunpack.c.h.b16 %v1019
        %v2177 = vunpack.c.l.b16 %v1020
        %v2178 = vunpack.c.h.b16 %v1020
        %v2179 = vunpack.c.l.b16 %v1021
        %v2180 = vunpack.c.h.b16 %v1021
        %v2181 = vunpack.c.l.b16 %v1022
        %v2182 = vunpack.c.h.b16 %v1022
        %v2183 = vunpack.c.l.b16 %v1023
        %v2184 = vunpack.c.h.b16 %v1023
        %v2185 = vunpack.c.l.b16 %v1024
        %v2186 = vunpack.c.h.b16 %v1024
        %v2187 = vunpack.c.l.b16 %v1025
        %v2188 = vunpack.c.h.b16 %v1025
        %v2189 = vunpack.c.l.b16 %v1026
        %v2190 = vunpack.c.h.b16 %v1026
        %v2191 = vunpack.c.l.b16 %v1027
        %v2192 = vunpack.c.h.b16 %v1027
        %v2193 = vunpack.c.l.b16 %v1028
        %v2194 = vunpack.c.h.b16 %v1028
        %v2195 = vunpack.c.l.b16 %v1029
        %v2196 = vunpack.c.h.b16 %v1029
        %v2197 = vunpack.c.l.b16 %v1030
        %v2198 = vunpack.c.h.b16 %v1030
        %v2199 = vunpack.c.l.b16 %v1031
        %v2200 = vunpack.c.h.b16 %v1031
        %v2201 = vunpack.c.l.b16 %v1032
        %v2202 = vunpack.c.h.b16 %v1032
        %v2203 = vunpack.c.l.b16 %v1033
        %v2204 = vunpack.c.h.b16 %v1033
        %v2205 = vunpack.c.l.b16 %v1034
        %v2206 = vunpack.c.h.b16 %v1034
        %v2207 = vunpack.c.l.b16 %v1035
        %v2208 = vunpack.c.h.b16 %v1035
        %v2209 = vunpack.c.l.b16 %v1036
        %v2210 = vunpack.c.h.b16 %v1036
        %v2211 = vunpack.c.l.b16 %v1037
        %v2212 = vunpack.c.h.b16 %v1037
        %v2213 = vunpack.c.l.b16 %v1038
        %v2214 = vunpack.c.h.b16 %v1038
        %v2215 = vunpack.c.l.b16 %v1039
        %v2216 = vunpack.c.h.b16 %v1039
        %v2217 = vunpack.c.l.b16 %v1040
        %v2218 = vunpack.c.h.b16 %v1040
        %v2219 = vunpack.c.l.b16 %v1041
        %v2220 = vunpack.c.h.b16 %v1041
        %v2221 = vunpack.c.l.b16 %v1042
        %v2222 = vunpack.c.h.b16 %v1042
        %v2223 = vunpack.c.l.b16 %v1043
        %v2224 = vunpack.c.h.b16 %v1043
        %v2225 = vunpack.c.l.b16 %v1044
        %v2226 = vunpack.c.h.b16 %v1044
        %v2227 = vunpack.c.l.b16 %v1045
        %v2228 = vunpack.c.h.b16 %v1045
        %v2229 = vunpack.c.l.b16 %v1046
        %v2230 = vunpack.c.h.b16 %v1046
        %v2231 = vunpack.c.l.b16 %v1047
        %v2232 = vunpack.c.h.b16 %v1047
        %v2233 = vunpack.c.l.b16 %v1048
        %v2234 = vunpack.c.h.b16 %v1048
        %v2235 = vunpack.c.l.b16 %v1049
        %v2236 = vunpack.c.h.b16 %v1049
        %v2237 = vunpack.c.l.b16 %v1050
        %v2238 = vunpack.c.h.b16 %v1050
        %v2239 = vunpack.c.l.b16 %v1051
        %v2240 = vunpack.c.h.b16 %v1051
        %v2241 = vunpack.c.l.b16 %v1052
        %v2242 = vunpack.c.h.b16 %v1052
        %v2243 = vunpack.c.l.b16 %v1053
        %v2244 = vunpack.c.h.b16 %v1053
        %v2245 = vunpack.c.l.b16 %v1054
        %v2246 = vunpack.c.h.b16 %v1054
        %v2247 = vunpack.c.l.b16 %v1055
        %v2248 = vunpack.c.h.b16 %v1055
        %v2249 = vunpack.c.l.b16 %v1056
        %v2250 = vunpack.c.h.b16 %v1056
        %v2251 = vunpack.c.l.b16 %v1057
        %v2252 = vunpack.c.h.b16 %v1057
        %v2253 = vunpack.c.l.b16 %v1058
        %v2254 = vunpack.c.h.b16 %v1058
        %v2255 = vunpack.c.l.b16 %v1059
        %v2256 = vunpack.c.h.b16 %v1059
        %v2257 = vunpack.c.l.b16 %v1060
        %v2258 = vunpack.c.h.b16 %v1060
        %v2259 = vunpack.c.l.b16 %v1061
        %v2260 = vunpack.c.h.b16 %v1061
        %v2261 = vunpack.c.l.b16 %v1062
        %v2262 = vunpack.c.h.b16 %v1062
        %v2263 = vunpack.c.l.b16 %v1063
        %v2264 = vunpack.c.h.b16 %v1063
        %v2265 = vunpack.c.l.b16 %v1064
        %v2266 = vunpack.c.h.b16 %v1064
        %v2267 = vunpack.c.l.b16 %v1065
        %v2268 = vunpack.c.h.b16 %v1065
        %v2269 = vunpack.c.l.b16 %v1066
        %v2270 = vunpack.c.h.b16 %v1066
        %v2271 = vunpack.c.l.b16 %v1067
        %v2272 = vunpack.c.h.b16 %v1067
        %v2273 = vunpack.c.l.b16 %v1068
        %v2274 = vunpack.c.h.b16 %v1068
        %v2275 = vunpack.c.l.b16 %v1069
        %v2276 = vunpack.c.h.b16 %v1069
        %v2277 = vunpack.c.l.b16 %v1070
        %v2278 = vunpack.c.h.b16 %v1070
        %v2279 = vunpack.c.l.b16 %v1071
        %v2280 = vunpack.c.h.b16 %v1071
        %v2281 = vunpack.c.l.b16 %v1072
        %v2282 = vunpack.c.h.b16 %v1072
        %v2283 = vunpack.c.l.b16 %v1073
        %v2284 = vunpack.c.h.b16 %v1073
        %v2285 = vunpack.c.l.b16 %v1074
        %v2286 = vunpack.c.h.b16 %v1074
        %v2287 = vunpack.c.l.b16 %v1075
        %v2288 = vunpack.c.h.b16 %v1075
        %v2289 = vunpack.c.l.b16 %v1076
        %v2290 = vunpack.c.h.b16 %v1076
        %v2291 = vunpack.c.l.b16 %v1077
        %v2292 = vunpack.c.h.b16 %v1077
        %v2293 = vunpack.c.l.b16 %v1078
        %v2294 = vunpack.c.h.b16 %v1078
        %v2295 = vunpack.c.l.b16 %v1079
        %v2296 = vunpack.c.h.b16 %v1079
        %v2297 = vunpack.c.l.b16 %v1080
        %v2298 = vunpack.c.h.b16 %v1080
        %v2299 = vunpack.c.l.b16 %v1081
        %v2300 = vunpack.c.h.b16 %v1081
        %v2301 = vunpack.c.l.b16 %v1082
        %v2302 = vunpack.c.h.b16 %v1082
        %v2303 = vunpack.c.l.b16 %v1083
        %v2304 = vunpack.c.h.b16 %v1083
        %v2305 = vunpack.c.l.b16 %v1084
        %v2306 = vunpack.c.h.b16 %v1084
        %v2307 = vunpack.c.l.b16 %v1085
        %v2308 = vunpack.c.h.b16 %v1085
        %v2309 = vunpack.c.l.b16 %v1086
        %v2310 = vunpack.c.h.b16 %v1086
        %v2311 = vunpack.c.l.b16 %v1087
        %v2312 = vunpack.c.h.b16 %v1087
        %v2313 = vunpack.c.l.b16 %v1088
        %v2314 = vunpack.c.h.b16 %v1088
        %v2315 = vunpack.c.l.b16 %v1089
        %v2316 = vunpack.c.h.b16 %v1089
        %v2317 = vunpack.c.l.b16 %v1090
        %v2318 = vunpack.c.h.b16 %v1090
        %v2319 = vunpack.c.l.b16 %v1091
        %v2320 = vunpack.c.h.b16 %v1091
        %v2321 = vunpack.c.l.b16 %v1092
        %v2322 = vunpack.c.h.b16 %v1092
        %v2323 = vunpack.c.l.b16 %v1093
        %v2324 = vunpack.c.h.b16 %v1093
        %v2325 = vunpack.c.l.b16 %v1094
        %v2326 = vunpack.c.h.b16 %v1094
        %v2327 = vunpack.c.l.b16 %v1095
        %v2328 = vunpack.c.h.b16 %v1095
        %v2329 = vunpack.c.l.b16 %v1096
        %v2330 = vunpack.c.h.b16 %v1096
        %v2331 = vunpack.c.l.b16 %v1097
        %v2332 = vunpack.c.h.b16 %v1097
        %v2333 = vunpack.c.l.b16 %v1098
        %v2334 = vunpack.c.h.b16 %v1098
        %v2335 = vunpack.c.l.b16 %v1099
        %v2336 = vunpack.c.h.b16 %v1099
        %v2337 = vunpack.c.l.b16 %v1100
        %v2338 = vunpack.c.h.b16 %v1100
        %v2339 = vunpack.c.l.b16 %v1101
        %v2340 = vunpack.c.h.b16 %v1101
        %v2341 = vunpack.c.l.b16 %v1102
        %v2342 = vunpack.c.h.b16 %v1102
        %v2343 = vunpack.c.l.b16 %v1103
        %v2344 = vunpack.c.h.b16 %v1103
        %v2345 = vunpack.c.l.b16 %v1104
        %v2346 = vunpack.c.h.b16 %v1104
        %v2347 = vpack.c.b16 %v1571, %v1563
        %v2348 = vpack.c.b16 %v1572, %v1564
        %v2349 = vpack.c.b16 %v1573, %v1565
        %v2350 = vpack.c.b16 %v1574, %v1566
        %v2351 = vpack.c.b16 %v1575, %v1567
        %v2352 = vpack.c.b16 %v1576, %v1568
        %v2353 = vpack.c.b16 %v1577, %v1569
        %v2354 = vpack.c.b16 %v1578, %v1570
        %v2355 = vpack.c.b16 %v1587, %v1579
        %v2356 = vpack.c.b16 %v1588, %v1580
        %v2357 = vpack.c.b16 %v1589, %v1581
        %v2358 = vpack.c.b16 %v1590, %v1582
        %v2359 = vpack.c.b16 %v1591, %v1583
        %v2360 = vpack.c.b16 %v1592, %v1584
        %v2361 = vpack.c.b16 %v1593, %v1585
        %v2362 = vpack.c.b16 %v1594, %v1586
        %v2363 = vpack.c.b16 %v1603, %v1595
        %v2364 = vpack.c.b16 %v1604, %v1596
        %v2365 = vpack.c.b16 %v1605, %v1597
        %v2366 = vpack.c.b16 %v1606, %v1598
        %v2367 = vpack.c.b16 %v1607, %v1599
        %v2368 = vpack.c.b16 %v1608, %v1600
        %v2369 = vpack.c.b16 %v1609, %v1601
        %v2370 = vpack.c.b16 %v1610, %v1602
        %v2371 = vpack.c.b16 %v1619, %v1611
        %v2372 = vpack.c.b16 %v1620, %v1612
        %v2373 = vpack.c.b16 %v1621, %v1613
        %v2374 = vpack.c.b16 %v1622, %v1614
        %v2375 = vpack.c.b16 %v1623, %v1615
        %v2376 = vpack.c.b16 %v1624, %v1616
        %v2377 = vpack.c.b16 %v1625, %v1617
        %v2378 = vpack.c.b16 %v1626, %v1618
        %v2379 = vpack.c.b16 %v1635, %v1627
        %v2380 = vpack.c.b16 %v1636, %v1628
        %v2381 = vpack.c.b16 %v1637, %v1629
        %v2382 = vpack.c.b16 %v1638, %v1630
        %v2383 = vpack.c.b16 %v1639, %v1631
        %v2384 = vpack.c.b16 %v1640, %v1632
        %v2385 = vpack.c.b16 %v1641, %v1633
        %v2386 = vpack.c.b16 %v1642, %v1634
        %v2387 = vpack.c.b16 %v1651, %v1643
        %v2388 = vpack.c.b16 %v1652, %v1644
        %v2389 = vpack.c.b16 %v1653, %v1645
        %v2390 = vpack.c.b16 %v1654, %v1646
        %v2391 = vpack.c.b16 %v1655, %v1647
        %v2392 = vpack.c.b16 %v1656, %v1648
        %v2393 = vpack.c.b16 %v1657, %v1649
        %v2394 = vpack.c.b16 %v1658, %v1650
        %v2395 = vpack.c.b16 %v1667, %v1659
        %v2396 = vpack.c.b16 %v1668, %v1660
        %v2397 = vpack.c.b16 %v1669, %v1661
        %v2398 = vpack.c.b16 %v1670, %v1662
        %v2399 = vpack.c.b16 %v1671, %v1663
        %v2400 = vpack.c.b16 %v1672, %v1664
        %v2401 = vpack.c.b16 %v1673, %v1665
        %v2402 = vpack.c.b16 %v1674, %v1666
        %v2403 = vpack.c.b16 %v1683, %v1675
        %v2404 = vpack.c.b16 %v1684, %v1676
        %v2405 = vpack.c.b16 %v1685, %v1677
        %v2406 = vpack.c.b16 %v1686, %v1678
        %v2407 = vpack.c.b16 %v1687, %v1679
        %v2408 = vpack.c.b16 %v1688, %v1680
        %v2409 = vpack.c.b16 %v1689, %v1681
        %v2410 = vpack.c.b16 %v1690, %v1682
        %v2411 = vpack.c.b16 %v1699, %v1691
        %v2412 = vpack.c.b16 %v1700, %v1692
        %v2413 = vpack.c.b16 %v1701, %v1693
        %v2414 = vpack.c.b16 %v1702, %v1694
        %v2415 = vpack.c.b16 %v1703, %v1695
        %v2416 = vpack.c.b16 %v1704, %v1696
        %v2417 = vpack.c.b16 %v1705, %v1697
        %v2418 = vpack.c.b16 %v1706, %v1698
        %v2419 = vpack.c.b16 %v1715, %v1707
        %v2420 = vpack.c.b16 %v1716, %v1708
        %v2421 = vpack.c.b16 %v1717, %v1709
        %v2422 = vpack.c.b16 %v1718, %v1710
        %v2423 = vpack.c.b16 %v1719, %v1711
        %v2424 = vpack.c.b16 %v1720, %v1712
        %v2425 = vpack.c.b16 %v1721, %v1713
        %v2426 = vpack.c.b16 %v1722, %v1714
        %v2427 = vpack.c.b16 %v1731, %v1723
        %v2428 = vpack.c.b16 %v1732, %v1724
        %v2429 = vpack.c.b16 %v1733, %v1725
        %v2430 = vpack.c.b16 %v1734, %v1726
        %v2431 = vpack.c.b16 %v1735, %v1727
        %v2432 = vpack.c.b16 %v1736, %v1728
        %v2433 = vpack.c.b16 %v1737, %v1729
        %v2434 = vpack.c.b16 %v1738, %v1730
        %v2435 = vpack.c.b16 %v1747, %v1739
        %v2436 = vpack.c.b16 %v1748, %v1740
        %v2437 = vpack.c.b16 %v1749, %v1741
        %v2438 = vpack.c.b16 %v1750, %v1742
        %v2439 = vpack.c.b16 %v1751, %v1743
        %v2440 = vpack.c.b16 %v1752, %v1744
        %v2441 = vpack.c.b16 %v1753, %v1745
        %v2442 = vpack.c.b16 %v1754, %v1746
        %v2443 = vpack.c.b16 %v1763, %v1755
        %v2444 = vpack.c.b16 %v1764, %v1756
        %v2445 = vpack.c.b16 %v1765, %v1757
        %v2446 = vpack.c.b16 %v1766, %v1758
        %v2447 = vpack.c.b16 %v1767, %v1759
        %v2448 = vpack.c.b16 %v1768, %v1760
        %v2449 = vpack.c.b16 %v1769, %v1761
        %v2450 = vpack.c.b16 %v1770, %v1762
        %v2451 = vpack.c.b16 %v1779, %v1771
        %v2452 = vpack.c.b16 %v1780, %v1772
        %v2453 = vpack.c.b16 %v1781, %v1773
        %v2454 = vpack.c.b16 %v1782, %v1774
        %v2455 = vpack.c.b16 %v1783, %v1775
        %v2456 = vpack.c.b16 %v1784, %v1776
        %v2457 = vpack.c.b16 %v1785, %v1777
        %v2458 = vpack.c.b16 %v1786, %v1778
        %v2459 = vpack.c.b16 %v1795, %v1787
        %v2460 = vpack.c.b16 %v1796, %v1788
        %v2461 = vpack.c.b16 %v1797, %v1789
        %v2462 = vpack.c.b16 %v1798, %v1790
        %v2463 = vpack.c.b16 %v1799, %v1791
        %v2464 = vpack.c.b16 %v1800, %v1792
        %v2465 = vpack.c.b16 %v1801, %v1793
        %v2466 = vpack.c.b16 %v1802, %v1794
        %v2467 = vpack.c.b16 %v1811, %v1803
        %v2468 = vpack.c.b16 %v1812, %v1804
        %v2469 = vpack.c.b16 %v1813, %v1805
        %v2470 = vpack.c.b16 %v1814, %v1806
        %v2471 = vpack.c.b16 %v1815, %v1807
        %v2472 = vpack.c.b16 %v1816, %v1808
        %v2473 = vpack.c.b16 %v1817, %v1809
        %v2474 = vpack.c.b16 %v1818, %v1810
        %v2475 = vpack.c.b16 %v1827, %v1819
        %v2476 = vpack.c.b16 %v1828, %v1820
        %v2477 = vpack.c.b16 %v1829, %v1821
        %v2478 = vpack.c.b16 %v1830, %v1822
        %v2479 = vpack.c.b16 %v1831, %v1823
        %v2480 = vpack.c.b16 %v1832, %v1824
        %v2481 = vpack.c.b16 %v1833, %v1825
        %v2482 = vpack.c.b16 %v1834, %v1826
        %v2483 = vpack.c.b16 %v1843, %v1835
        %v2484 = vpack.c.b16 %v1844, %v1836
        %v2485 = vpack.c.b16 %v1845, %v1837
        %v2486 = vpack.c.b16 %v1846, %v1838
        %v2487 = vpack.c.b16 %v1847, %v1839
        %v2488 = vpack.c.b16 %v1848, %v1840
        %v2489 = vpack.c.b16 %v1849, %v1841
        %v2490 = vpack.c.b16 %v1850, %v1842
        %v2491 = vpack.c.b16 %v1859, %v1851
        %v2492 = vpack.c.b16 %v1860, %v1852
        %v2493 = vpack.c.b16 %v1861, %v1853
        %v2494 = vpack.c.b16 %v1862, %v1854
        %v2495 = vpack.c.b16 %v1863, %v1855
        %v2496 = vpack.c.b16 %v1864, %v1856
        %v2497 = vpack.c.b16 %v1865, %v1857
        %v2498 = vpack.c.b16 %v1866, %v1858
        %v2499 = vpack.c.b16 %v1875, %v1867
        %v2500 = vpack.c.b16 %v1876, %v1868
        %v2501 = vpack.c.b16 %v1877, %v1869
        %v2502 = vpack.c.b16 %v1878, %v1870
        %v2503 = vpack.c.b16 %v1879, %v1871
        %v2504 = vpack.c.b16 %v1880, %v1872
        %v2505 = vpack.c.b16 %v1881, %v1873
        %v2506 = vpack.c.b16 %v1882, %v1874
        %v2507 = vpack.c.b16 %v1891, %v1883
        %v2508 = vpack.c.b16 %v1892, %v1884
        %v2509 = vpack.c.b16 %v1893, %v1885
        %v2510 = vpack.c.b16 %v1894, %v1886
        %v2511 = vpack.c.b16 %v1895, %v1887
        %v2512 = vpack.c.b16 %v1896, %v1888
        %v2513 = vpack.c.b16 %v1897, %v1889
        %v2514 = vpack.c.b16 %v1898, %v1890
        %v2515 = vpack.c.b16 %v1907, %v1899
        %v2516 = vpack.c.b16 %v1908, %v1900
        %v2517 = vpack.c.b16 %v1909, %v1901
        %v2518 = vpack.c.b16 %v1910, %v1902
        %v2519 = vpack.c.b16 %v1911, %v1903
        %v2520 = vpack.c.b16 %v1912, %v1904
        %v2521 = vpack.c.b16 %v1913, %v1905
        %v2522 = vpack.c.b16 %v1914, %v1906
        %v2523 = vpack.c.b16 %v1923, %v1915
        %v2524 = vpack.c.b16 %v1924, %v1916
        %v2525 = vpack.c.b16 %v1925, %v1917
        %v2526 = vpack.c.b16 %v1926, %v1918
        %v2527 = vpack.c.b16 %v1927, %v1919
        %v2528 = vpack.c.b16 %v1928, %v1920
        %v2529 = vpack.c.b16 %v1929, %v1921
        %v2530 = vpack.c.b16 %v1930, %v1922
        %v2531 = vpack.c.b16 %v1939, %v1931
        %v2532 = vpack.c.b16 %v1940, %v1932
        %v2533 = vpack.c.b16 %v1941, %v1933
        %v2534 = vpack.c.b16 %v1942, %v1934
        %v2535 = vpack.c.b16 %v1943, %v1935
        %v2536 = vpack.c.b16 %v1944, %v1936
        %v2537 = vpack.c.b16 %v1945, %v1937
        %v2538 = vpack.c.b16 %v1946, %v1938
        %v2539 = vpack.c.b16 %v1955, %v1947
        %v2540 = vpack.c.b16 %v1956, %v1948
        %v2541 = vpack.c.b16 %v1957, %v1949
        %v2542 = vpack.c.b16 %v1958, %v1950
        %v2543 = vpack.c.b16 %v1959, %v1951
        %v2544 = vpack.c.b16 %v1960, %v1952
        %v2545 = vpack.c.b16 %v1961, %v1953
        %v2546 = vpack.c.b16 %v1962, %v1954
        %v2547 = vpack.c.b16 %v1971, %v1963
        %v2548 = vpack.c.b16 %v1972, %v1964
        %v2549 = vpack.c.b16 %v1973, %v1965
        %v2550 = vpack.c.b16 %v1974, %v1966
        %v2551 = vpack.c.b16 %v1975, %v1967
        %v2552 = vpack.c.b16 %v1976, %v1968
        %v2553 = vpack.c.b16 %v1977, %v1969
        %v2554 = vpack.c.b16 %v1978, %v1970
        %v2555 = vpack.c.b16 %v1987, %v1979
        %v2556 = vpack.c.b16 %v1988, %v1980
        %v2557 = vpack.c.b16 %v1989, %v1981
        %v2558 = vpack.c.b16 %v1990, %v1982
        %v2559 = vpack.c.b16 %v1991, %v1983
        %v2560 = vpack.c.b16 %v1992, %v1984
        %v2561 = vpack.c.b16 %v1993, %v1985
        %v2562 = vpack.c.b16 %v1994, %v1986
        %v2563 = vpack.c.b16 %v2003, %v1995
        %v2564 = vpack.c.b16 %v2004, %v1996
        %v2565 = vpack.c.b16 %v2005, %v1997
        %v2566 = vpack.c.b16 %v2006, %v1998
        %v2567 = vpack.c.b16 %v2007, %v1999
        %v2568 = vpack.c.b16 %v2008, %v2000
        %v2569 = vpack.c.b16 %v2009, %v2001
        %v2570 = vpack.c.b16 %v2010, %v2002
        %v2571 = vpack.c.b16 %v2019, %v2011
        %v2572 = vpack.c.b16 %v2020, %v2012
        %v2573 = vpack.c.b16 %v2021, %v2013
        %v2574 = vpack.c.b16 %v2022, %v2014
        %v2575 = vpack.c.b16 %v2023, %v2015
        %v2576 = vpack.c.b16 %v2024, %v2016
        %v2577 = vpack.c.b16 %v2025, %v2017
        %v2578 = vpack.c.b16 %v2026, %v2018
        %v2579 = vpack.c.b16 %v2035, %v2027
        %v2580 = vpack.c.b16 %v2036, %v2028
        %v2581 = vpack.c.b16 %v2037, %v2029
        %v2582 = vpack.c.b16 %v2038, %v2030
        %v2583 = vpack.c.b16 %v2039, %v2031
        %v2584 = vpack.c.b16 %v2040, %v2032
        %v2585 = vpack.c.b16 %v2041, %v2033
        %v2586 = vpack.c.b16 %v2042, %v2034
        %v2587 = vpack.c.b16 %v2051, %v2043
        %v2588 = vpack.c.b16 %v2052, %v2044
        %v2589 = vpack.c.b16 %v2053, %v2045
        %v2590 = vpack.c.b16 %v2054, %v2046
        %v2591 = vpack.c.b16 %v2055, %v2047
        %v2592 = vpack.c.b16 %v2056, %v2048
        %v2593 = vpack.c.b16 %v2057, %v2049
        %v2594 = vpack.c.b16 %v2058, %v2050
        %v2595 = vpack.c.b16 %v2067, %v2059
        %v2596 = vpack.c.b16 %v2068, %v2060
        %v2597 = vpack.c.b16 %v2069, %v2061
        %v2598 = vpack.c.b16 %v2070, %v2062
        %v2599 = vpack.c.b16 %v2071, %v2063
        %v2600 = vpack.c.b16 %v2072, %v2064
        %v2601 = vpack.c.b16 %v2073, %v2065
        %v2602 = vpack.c.b16 %v2074, %v2066
        %v2603 = vpack.c.b16 %v2083, %v2075
        %v2604 = vpack.c.b16 %v2084, %v2076
        %v2605 = vpack.c.b16 %v2085, %v2077
        %v2606 = vpack.c.b16 %v2086, %v2078
        %v2607 = vpack.c.b16 %v2087, %v2079
        %v2608 = vpack.c.b16 %v2088, %v2080
        %v2609 = vpack.c.b16 %v2089, %v2081
        %v2610 = vpack.c.b16 %v2090, %v2082
        %v2611 = vpack.c.b16 %v2099, %v2091
        %v2612 = vpack.c.b16 %v2100, %v2092
        %v2613 = vpack.c.b16 %v2101, %v2093
        %v2614 = vpack.c.b16 %v2102, %v2094
        %v2615 = vpack.c.b16 %v2103, %v2095
        %v2616 = vpack.c.b16 %v2104, %v2096
        %v2617 = vpack.c.b16 %v2105, %v2097
        %v2618 = vpack.c.b16 %v2106, %v2098
        %v2619 = vpack.c.b16 %v2115, %v2107
        %v2620 = vpack.c.b16 %v2116, %v2108
        %v2621 = vpack.c.b16 %v2117, %v2109
        %v2622 = vpack.c.b16 %v2118, %v2110
        %v2623 = vpack.c.b16 %v2119, %v2111
        %v2624 = vpack.c.b16 %v2120, %v2112
        %v2625 = vpack.c.b16 %v2121, %v2113
        %v2626 = vpack.c.b16 %v2122, %v2114
        %v2627 = vpack.c.b16 %v2131, %v2123
        %v2628 = vpack.c.b16 %v2132, %v2124
        %v2629 = vpack.c.b16 %v2133, %v2125
        %v2630 = vpack.c.b16 %v2134, %v2126
        %v2631 = vpack.c.b16 %v2135, %v2127
        %v2632 = vpack.c.b16 %v2136, %v2128
        %v2633 = vpack.c.b16 %v2137, %v2129
        %v2634 = vpack.c.b16 %v2138, %v2130
        %v2635 = vpack.c.b16 %v2147, %v2139
        %v2636 = vpack.c.b16 %v2148, %v2140
        %v2637 = vpack.c.b16 %v2149, %v2141
        %v2638 = vpack.c.b16 %v2150, %v2142
        %v2639 = vpack.c.b16 %v2151, %v2143
        %v2640 = vpack.c.b16 %v2152, %v2144
        %v2641 = vpack.c.b16 %v2153, %v2145
        %v2642 = vpack.c.b16 %v2154, %v2146
        %v2643 = vpack.c.b16 %v2163, %v2155
        %v2644 = vpack.c.b16 %v2164, %v2156
        %v2645 = vpack.c.b16 %v2165, %v2157
        %v2646 = vpack.c.b16 %v2166, %v2158
        %v2647 = vpack.c.b16 %v2167, %v2159
        %v2648 = vpack.c.b16 %v2168, %v2160
        %v2649 = vpack.c.b16 %v2169, %v2161
        %v2650 = vpack.c.b16 %v2170, %v2162
        %v2651 = vpack.c.b16 %v2179, %v2171
        %v2652 = vpack.c.b16 %v2180, %v2172
        %v2653 = vpack.c.b16 %v2181, %v2173
        %v2654 = vpack.c.b16 %v2182, %v2174
        %v2655 = vpack.c.b16 %v2183, %v2175
        %v2656 = vpack.c.b16 %v2184, %v2176
        %v2657 = vpack.c.b16 %v2185, %v2177
        %v2658 = vpack.c.b16 %v2186, %v2178
        %v2659 = vpack.c.b16 %v2195, %v2187
        %v2660 = vpack.c.b16 %v2196, %v2188
        %v2661 = vpack.c.b16 %v2197, %v2189
        %v2662 = vpack.c.b16 %v2198, %v2190
        %v2663 = vpack.c.b16 %v2199, %v2191
        %v2664 = vpack.c.b16 %v2200, %v2192
        %v2665 = vpack.c.b16 %v2201, %v2193
        %v2666 = vpack.c.b16 %v2202, %v2194
        %v2667 = vpack.c.b16 %v2211, %v2203
        %v2668 = vpack.c.b16 %v2212, %v2204
        %v2669 = vpack.c.b16 %v2213, %v2205
        %v2670 = vpack.c.b16 %v2214, %v2206
        %v2671 = vpack.c.b16 %v2215, %v2207
        %v2672 = vpack.c.b16 %v2216, %v2208
        %v2673 = vpack.c.b16 %v2217, %v2209
        %v2674 = vpack.c.b16 %v2218, %v2210
        %v2675 = vpack.c.b16 %v2227, %v2219
        %v2676 = vpack.c.b16 %v2228, %v2220
        %v2677 = vpack.c.b16 %v2229, %v2221
        %v2678 = vpack.c.b16 %v2230, %v2222
        %v2679 = vpack.c.b16 %v2231, %v2223
        %v2680 = vpack.c.b16 %v2232, %v2224
        %v2681 = vpack.c.b16 %v2233, %v2225
        %v2682 = vpack.c.b16 %v2234, %v2226
        %v2683 = vpack.c.b16 %v2243, %v2235
        %v2684 = vpack.c.b16 %v2244, %v2236
        %v2685 = vpack.c.b16 %v2245, %v2237
        %v2686 = vpack.c.b16 %v2246, %v2238
        %v2687 = vpack.c.b16 %v2247, %v2239
        %v2688 = vpack.c.b16 %v2248, %v2240
        %v2689 = vpack.c.b16 %v2249, %v2241
        %v2690 = vpack.c.b16 %v2250, %v2242
        %v2691 = vpack.c.b16 %v2259, %v2251
        %v2692 = vpack.c.b16 %v2260, %v2252
        %v2693 = vpack.c.b16 %v2261, %v2253
        %v2694 = vpack.c.b16 %v2262, %v2254
        %v2695 = vpack.c.b16 %v2263, %v2255
        %v2696 = vpack.c.b16 %v2264, %v2256
        %v2697 = vpack.c.b16 %v2265, %v2257
        %v2698 = vpack.c.b16 %v2266, %v2258
        %v2699 = vpack.c.b16 %v2275, %v2267
        %v2700 = vpack.c.b16 %v2276, %v2268
        %v2701 = vpack.c.b16 %v2277, %v2269
        %v2702 = vpack.c.b16 %v2278, %v2270
        %v2703 = vpack.c.b16 %v2279, %v2271
        %v2704 = vpack.c.b16 %v2280, %v2272
        %v2705 = vpack.c.b16 %v2281, %v2273
        %v2706 = vpack.c.b16 %v2282, %v2274
        %v2707 = vpack.c.b16 %v2291, %v2283
        %v2708 = vpack.c.b16 %v2292, %v2284
        %v2709 = vpack.c.b16 %v2293, %v2285
        %v2710 = vpack.c.b16 %v2294, %v2286
        %v2711 = vpack.c.b16 %v2295, %v2287
        %v2712 = vpack.c.b16 %v2296, %v2288
        %v2713 = vpack.c.b16 %v2297, %v2289
        %v2714 = vpack.c.b16 %v2298, %v2290
        %v2715 = vpack.c.b16 %v2307, %v2299
        %v2716 = vpack.c.b16 %v2308, %v2300
        %v2717 = vpack.c.b16 %v2309, %v2301
        %v2718 = vpack.c.b16 %v2310, %v2302
        %v2719 = vpack.c.b16 %v2311, %v2303
        %v2720 = vpack.c.b16 %v2312, %v2304
        %v2721 = vpack.c.b16 %v2313, %v2305
        %v2722 = vpack.c.b16 %v2314, %v2306
        %v2723 = vpack.c.b16 %v2323, %v2315
        %v2724 = vpack.c.b16 %v2324, %v2316
        %v2725 = vpack.c.b16 %v2325, %v2317
        %v2726 = vpack.c.b16 %v2326, %v2318
        %v2727 = vpack.c.b16 %v2327, %v2319
        %v2728 = vpack.c.b16 %v2328, %v2320
        %v2729 = vpack.c.b16 %v2329, %v2321
        %v2730 = vpack.c.b16 %v2330, %v2322
        %v2731 = vpack.c.b16 %v2339, %v2331
        %v2732 = vpack.c.b16 %v2340, %v2332
        %v2733 = vpack.c.b16 %v2341, %v2333
        %v2734 = vpack.c.b16 %v2342, %v2334
        %v2735 = vpack.c.b16 %v2343, %v2335
        %v2736 = vpack.c.b16 %v2344, %v2336
        %v2737 = vpack.c.b16 %v2345, %v2337
        %v2738 = vpack.c.b16 %v2346, %v2338
        %vm3131 = vcmask 130048
        %v3133 = vsel %vm3131, %v1164, 0
        %3135 = vmatprep.subr.bf16.mxu0 %v2348
        %3136 = vmatpush1.bf16.msra.mxu0 %v2347
        %3137 = vmatprep.subr.bf16.mxu0 %v2356
        %3138 = vmatpush1.bf16.msra.mxu0 %v2355
        %3139 = vmatprep.subr.bf16.mxu0 %v2364
        %3140 = vmatpush1.bf16.msra.mxu0 %v2363
        %3141 = vmatprep.subr.bf16.mxu0 %v2372
        %3142 = vmatpush1.bf16.msra.mxu0 %v2371
        %3143 = vmatprep.subr.bf16.mxu0 %v2380
        %3144 = vmatpush1.bf16.msra.mxu0 %v2379
        %3145 = vmatprep.subr.bf16.mxu0 %v2388
        %3146 = vmatpush1.bf16.msra.mxu0 %v2387
        %3147 = vmatprep.subr.bf16.mxu0 %v2396
        %3148 = vmatpush1.bf16.msra.mxu0 %v2395
        %3149 = vmatprep.subr.bf16.mxu0 %v2404
        %3150 = vmatpush1.bf16.msra.mxu0 %v2403
        %3151 = vmatprep.subr.bf16.mxu0 %v2412
        %3152 = vmatpush1.bf16.msra.mxu0 %v2411
        %3153 = vmatprep.subr.bf16.mxu0 %v2420
        %3154 = vmatpush1.bf16.msra.mxu0 %v2419
        %3155 = vmatprep.subr.bf16.mxu0 %v2428
        %3156 = vmatpush1.bf16.msra.mxu0 %v2427
        %3157 = vmatprep.subr.bf16.mxu0 %v2436
        %3158 = vmatpush1.bf16.msra.mxu0 %v2435
        %3159 = vmatprep.subr.bf16.mxu0 %v2444
        %3160 = vmatpush1.bf16.msra.mxu0 %v2443
        %3161 = vmatprep.subr.bf16.mxu0 %v2452
        %3162 = vmatpush1.bf16.msra.mxu0 %v2451
        %3163 = vmatprep.subr.bf16.mxu0 %v2460
        %3164 = vmatpush1.bf16.msra.mxu0 %v2459
        %3165 = vmatprep.subr.bf16.mxu0 %v2468
        %3166 = vmatpush1.bf16.msra.mxu0 %v2467
        %3167 = vmatprep.mubr.bf16.mxu0 %v1159
        %3168 = vmatmul.mubr.bf16.gmra.mrb[0].mxu0 %v1158
        %v3169 = vpop.f32.mrb[0].mxu0
        %v3170 = vadd.f32 %v1110, %v3169
        %v3171 = vpop.f32.mrb[0].mxu0
        %v3172 = vadd.f32 %v1114, %v3171
        %v3173 = vpop.f32.mrb[0].mxu0
        %v3174 = vpop.f32.mrb[0].mxu0
        %3175 = vdwg.mxu0
        %3176 = vmatprep.subr.bf16.mxu0 %v2476
        %3177 = vmatpush1.bf16.msra.mxu0 %v2475
        %3178 = vmatprep.subr.bf16.mxu0 %v2484
        %3179 = vmatpush1.bf16.msra.mxu0 %v2483
        %3180 = vmatprep.subr.bf16.mxu0 %v2492
        %3181 = vmatpush1.bf16.msra.mxu0 %v2491
        %3182 = vmatprep.subr.bf16.mxu0 %v2500
        %3183 = vmatpush1.bf16.msra.mxu0 %v2499
        %3184 = vmatprep.subr.bf16.mxu0 %v2508
        %3185 = vmatpush1.bf16.msra.mxu0 %v2507
        %3186 = vmatprep.subr.bf16.mxu0 %v2516
        %3187 = vmatpush1.bf16.msra.mxu0 %v2515
        %3188 = vmatprep.subr.bf16.mxu0 %v2524
        %3189 = vmatpush1.bf16.msra.mxu0 %v2523
        %3190 = vmatprep.subr.bf16.mxu0 %v2532
        %3191 = vmatpush1.bf16.msra.mxu0 %v2531
        %3192 = vmatprep.subr.bf16.mxu0 %v2540
        %3193 = vmatpush1.bf16.msra.mxu0 %v2539
        %3194 = vmatprep.subr.bf16.mxu0 %v2548
        %3195 = vmatpush1.bf16.msra.mxu0 %v2547
        %3196 = vmatprep.subr.bf16.mxu0 %v2556
        %3197 = vmatpush1.bf16.msra.mxu0 %v2555
        %3198 = vmatprep.subr.bf16.mxu0 %v2564
        %3199 = vmatpush1.bf16.msra.mxu0 %v2563
        %3200 = vmatprep.subr.bf16.mxu0 %v2572
        %3201 = vmatpush1.bf16.msra.mxu0 %v2571
        %3202 = vmatprep.subr.bf16.mxu0 %v2580
        %3203 = vmatpush1.bf16.msra.mxu0 %v2579
        %3204 = vmatprep.subr.bf16.mxu0 %v2588
        %3205 = vmatpush1.bf16.msra.mxu0 %v2587
        %3206 = vmatprep.subr.bf16.mxu0 %v2596
        %3207 = vmatpush1.bf16.msra.mxu0 %v2595
        %3208 = vmatprep.mubr.bf16.mxu0 %v1161
        %3209 = vmatmul.mubr.bf16.gmra.mrb[0].mxu0 %v1160
        %v3210 = vpop.f32.mrb[0].mxu0
        %v3211 = vadd.f32 %v3170, %v3210
        %v3212 = vpop.f32.mrb[0].mxu0
        %v3213 = vadd.f32 %v3172, %v3212
        %v3214 = vpop.f32.mrb[0].mxu0
        %v3215 = vpop.f32.mrb[0].mxu0
        %3216 = vdwg.mxu0
        %3217 = vmatprep.subr.bf16.mxu0 %v2604
        %3218 = vmatpush1.bf16.msra.mxu0 %v2603
        %3219 = vmatprep.subr.bf16.mxu0 %v2612
        %3220 = vmatpush1.bf16.msra.mxu0 %v2611
        %3221 = vmatprep.subr.bf16.mxu0 %v2620
        %3222 = vmatpush1.bf16.msra.mxu0 %v2619
        %3223 = vmatprep.subr.bf16.mxu0 %v2628
        %3224 = vmatpush1.bf16.msra.mxu0 %v2627
        %3225 = vmatprep.subr.bf16.mxu0 %v2636
        %3226 = vmatpush1.bf16.msra.mxu0 %v2635
        %3227 = vmatprep.subr.bf16.mxu0 %v2644
        %3228 = vmatpush1.bf16.msra.mxu0 %v2643
        %3229 = vmatprep.subr.bf16.mxu0 %v2652
        %3230 = vmatpush1.bf16.msra.mxu0 %v2651
        %3231 = vmatprep.subr.bf16.mxu0 %v2660
        %3232 = vmatpush1.bf16.msra.mxu0 %v2659
        %3233 = vmatprep.subr.bf16.mxu0 %v2668
        %3234 = vmatpush1.bf16.msra.mxu0 %v2667
        %3235 = vmatprep.subr.bf16.mxu0 %v2676
        %3236 = vmatpush1.bf16.msra.mxu0 %v2675
        %3237 = vmatprep.subr.bf16.mxu0 %v2684
        %3238 = vmatpush1.bf16.msra.mxu0 %v2683
        %3239 = vmatprep.subr.bf16.mxu0 %v2692
        %3240 = vmatpush1.bf16.msra.mxu0 %v2691
        %3241 = vmatprep.subr.bf16.mxu0 %v2700
        %3242 = vmatpush1.bf16.msra.mxu0 %v2699
        %3243 = vmatprep.subr.bf16.mxu0 %v2708
        %3244 = vmatpush1.bf16.msra.mxu0 %v2707
        %3245 = vmatprep.subr.bf16.mxu0 %v2716
        %3246 = vmatpush1.bf16.msra.mxu0 %v2715
        %3247 = vmatprep.subr.bf16.mxu0 %v2724
        %3248 = vmatpush1.bf16.msra.mxu0 %v2723
        %3249 = vmatprep.mubr.bf16.mxu0 %v1163
        %3250 = vmatmul.mubr.bf16.gmra.mrb[0].mxu0 %v1162
        %v3251 = vpop.f32.mrb[0].mxu0
        %v3252 = vadd.f32 %v3211, %v3251
        %v3253 = vpop.f32.mrb[0].mxu0
        %v3254 = vadd.f32 %v3213, %v3253
        %v3255 = vpop.f32.mrb[0].mxu0
        %v3256 = vpop.f32.mrb[0].mxu0
        %3257 = vdwg.mxu0
        %3258 = vmatprep.subr.bf16.mxu0 %v2732
        %3259 = vmatpush1.bf16.msra.mxu0 %v2731
        %3260 = vmatprep.subr.bf16.mxu0 0
        %3261 = vmatpush1.bf16.msra.mxu0 0
        %3262 = vmatprep.subr.bf16.mxu0 0
        %3263 = vmatpush1.bf16.msra.mxu0 0
        %3264 = vmatprep.subr.bf16.mxu0 0
        %3265 = vmatpush1.bf16.msra.mxu0 0
        %3266 = vmatprep.subr.bf16.mxu0 0
        %3267 = vmatpush1.bf16.msra.mxu0 0
        %3268 = vmatprep.subr.bf16.mxu0 0
        %3269 = vmatpush1.bf16.msra.mxu0 0
        %3270 = vmatprep.subr.bf16.mxu0 0
        %3271 = vmatpush1.bf16.msra.mxu0 0
        %3272 = vmatprep.subr.bf16.mxu0 0
        %3273 = vmatpush1.bf16.msra.mxu0 0
        %3274 = vmatprep.subr.bf16.mxu0 0
        %3275 = vmatpush1.bf16.msra.mxu0 0
        %3276 = vmatprep.subr.bf16.mxu0 0
        %3277 = vmatpush1.bf16.msra.mxu0 0
        %3278 = vmatprep.subr.bf16.mxu0 0
        %3279 = vmatpush1.bf16.msra.mxu0 0
        %3280 = vmatprep.subr.bf16.mxu0 0
        %3281 = vmatpush1.bf16.msra.mxu0 0
        %3282 = vmatprep.subr.bf16.mxu0 0
        %3283 = vmatpush1.bf16.msra.mxu0 0
        %3284 = vmatprep.subr.bf16.mxu0 0
        %3285 = vmatpush1.bf16.msra.mxu0 0
        %3286 = vmatprep.subr.bf16.mxu0 0
        %3287 = vmatpush1.bf16.msra.mxu0 0
        %3288 = vmatprep.subr.bf16.mxu0 0
        %3289 = vmatpush1.bf16.msra.mxu0 0
        %3290 = vmatprep.mubr.bf16.mxu0 0
        %3291 = vmatmul.mubr.bf16.gmra.mrb[0].mxu0 %v3133
        %v3292 = vpop.f32.mrb[0].mxu0
        %v3293 = vadd.f32 %v3252, %v3292
        %v3294 = vpop.f32.mrb[0].mxu0
        %v3295 = vadd.f32 %v3254, %v3294
        %v3296 = vpop.f32.mrb[0].mxu0
        %v3297 = vpop.f32.mrb[0].mxu0
        %3298 = vdwg.mxu0
        %3299 = vmatprep.subr.bf16.mxu0 %v2350
        %3300 = vmatpush1.bf16.msra.mxu0 %v2349
        %3301 = vmatprep.subr.bf16.mxu0 %v2358
        %3302 = vmatpush1.bf16.msra.mxu0 %v2357
        %3303 = vmatprep.subr.bf16.mxu0 %v2366
        %3304 = vmatpush1.bf16.msra.mxu0 %v2365
        %3305 = vmatprep.subr.bf16.mxu0 %v2374
        %3306 = vmatpush1.bf16.msra.mxu0 %v2373
        %3307 = vmatprep.subr.bf16.mxu0 %v2382
        %3308 = vmatpush1.bf16.msra.mxu0 %v2381
        %3309 = vmatprep.subr.bf16.mxu0 %v2390
        %3310 = vmatpush1.bf16.msra.mxu0 %v2389
        %3311 = vmatprep.subr.bf16.mxu0 %v2398
        %3312 = vmatpush1.bf16.msra.mxu0 %v2397
        %3313 = vmatprep.subr.bf16.mxu0 %v2406
        %3314 = vmatpush1.bf16.msra.mxu0 %v2405
        %3315 = vmatprep.subr.bf16.mxu0 %v2414
        %3316 = vmatpush1.bf16.msra.mxu0 %v2413
        %3317 = vmatprep.subr.bf16.mxu0 %v2422
        %3318 = vmatpush1.bf16.msra.mxu0 %v2421
        %3319 = vmatprep.subr.bf16.mxu0 %v2430
        %3320 = vmatpush1.bf16.msra.mxu0 %v2429
        %3321 = vmatprep.subr.bf16.mxu0 %v2438
        %3322 = vmatpush1.bf16.msra.mxu0 %v2437
        %3323 = vmatprep.subr.bf16.mxu0 %v2446
        %3324 = vmatpush1.bf16.msra.mxu0 %v2445
        %3325 = vmatprep.subr.bf16.mxu0 %v2454
        %3326 = vmatpush1.bf16.msra.mxu0 %v2453
        %3327 = vmatprep.subr.bf16.mxu0 %v2462
        %3328 = vmatpush1.bf16.msra.mxu0 %v2461
        %3329 = vmatprep.subr.bf16.mxu0 %v2470
        %3330 = vmatpush1.bf16.msra.mxu0 %v2469
        %3331 = vmatprep.mubr.bf16.mxu0 %v1159
        %3332 = vmatmul.mubr.bf16.gmra.mrb[0].mxu0 %v1158
        %v3333 = vpop.f32.mrb[0].mxu0
        %v3334 = vadd.f32 %v1118, %v3333
        %v3335 = vpop.f32.mrb[0].mxu0
        %v3336 = vadd.f32 %v1122, %v3335
        %v3337 = vpop.f32.mrb[0].mxu0
        %v3338 = vpop.f32.mrb[0].mxu0
        %3339 = vdwg.mxu0
        %3340 = vmatprep.subr.bf16.mxu0 %v2478
        %3341 = vmatpush1.bf16.msra.mxu0 %v2477
        %3342 = vmatprep.subr.bf16.mxu0 %v2486
        %3343 = vmatpush1.bf16.msra.mxu0 %v2485
        %3344 = vmatprep.subr.bf16.mxu0 %v2494
        %3345 = vmatpush1.bf16.msra.mxu0 %v2493
        %3346 = vmatprep.subr.bf16.mxu0 %v2502
        %3347 = vmatpush1.bf16.msra.mxu0 %v2501
        %3348 = vmatprep.subr.bf16.mxu0 %v2510
        %3349 = vmatpush1.bf16.msra.mxu0 %v2509
        %3350 = vmatprep.subr.bf16.mxu0 %v2518
        %3351 = vmatpush1.bf16.msra.mxu0 %v2517
        %3352 = vmatprep.subr.bf16.mxu0 %v2526
        %3353 = vmatpush1.bf16.msra.mxu0 %v2525
        %3354 = vmatprep.subr.bf16.mxu0 %v2534
        %3355 = vmatpush1.bf16.msra.mxu0 %v2533
        %3356 = vmatprep.subr.bf16.mxu0 %v2542
        %3357 = vmatpush1.bf16.msra.mxu0 %v2541
        %3358 = vmatprep.subr.bf16.mxu0 %v2550
        %3359 = vmatpush1.bf16.msra.mxu0 %v2549
        %3360 = vmatprep.subr.bf16.mxu0 %v2558
        %3361 = vmatpush1.bf16.msra.mxu0 %v2557
        %3362 = vmatprep.subr.bf16.mxu0 %v2566
        %3363 = vmatpush1.bf16.msra.mxu0 %v2565
        %3364 = vmatprep.subr.bf16.mxu0 %v2574
        %3365 = vmatpush1.bf16.msra.mxu0 %v2573
        %3366 = vmatprep.subr.bf16.mxu0 %v2582
        %3367 = vmatpush1.bf16.msra.mxu0 %v2581
        %3368 = vmatprep.subr.bf16.mxu0 %v2590
        %3369 = vmatpush1.bf16.msra.mxu0 %v2589
        %3370 = vmatprep.subr.bf16.mxu0 %v2598
        %3371 = vmatpush1.bf16.msra.mxu0 %v2597
        %3372 = vmatprep.mubr.bf16.mxu0 %v1161
        %3373 = vmatmul.mubr.bf16.gmra.mrb[0].mxu0 %v1160
        %v3374 = vpop.f32.mrb[0].mxu0
        %v3375 = vadd.f32 %v3334, %v3374
        %v3376 = vpop.f32.mrb[0].mxu0
        %v3377 = vadd.f32 %v3336, %v3376
        %v3378 = vpop.f32.mrb[0].mxu0
        %v3379 = vpop.f32.mrb[0].mxu0
        %3380 = vdwg.mxu0
        %3381 = vmatprep.subr.bf16.mxu0 %v2606
        %3382 = vmatpush1.bf16.msra.mxu0 %v2605
        %3383 = vmatprep.subr.bf16.mxu0 %v2614
        %3384 = vmatpush1.bf16.msra.mxu0 %v2613
        %3385 = vmatprep.subr.bf16.mxu0 %v2622
        %3386 = vmatpush1.bf16.msra.mxu0 %v2621
        %3387 = vmatprep.subr.bf16.mxu0 %v2630
        %3388 = vmatpush1.bf16.msra.mxu0 %v2629
        %3389 = vmatprep.subr.bf16.mxu0 %v2638
        %3390 = vmatpush1.bf16.msra.mxu0 %v2637
        %3391 = vmatprep.subr.bf16.mxu0 %v2646
        %3392 = vmatpush1.bf16.msra.mxu0 %v2645
        %3393 = vmatprep.subr.bf16.mxu0 %v2654
        %3394 = vmatpush1.bf16.msra.mxu0 %v2653
        %3395 = vmatprep.subr.bf16.mxu0 %v2662
        %3396 = vmatpush1.bf16.msra.mxu0 %v2661
        %3397 = vmatprep.subr.bf16.mxu0 %v2670
        %3398 = vmatpush1.bf16.msra.mxu0 %v2669
        %3399 = vmatprep.subr.bf16.mxu0 %v2678
        %3400 = vmatpush1.bf16.msra.mxu0 %v2677
        %3401 = vmatprep.subr.bf16.mxu0 %v2686
        %3402 = vmatpush1.bf16.msra.mxu0 %v2685
        %3403 = vmatprep.subr.bf16.mxu0 %v2694
        %3404 = vmatpush1.bf16.msra.mxu0 %v2693
        %3405 = vmatprep.subr.bf16.mxu0 %v2702
        %3406 = vmatpush1.bf16.msra.mxu0 %v2701
        %3407 = vmatprep.subr.bf16.mxu0 %v2710
        %3408 = vmatpush1.bf16.msra.mxu0 %v2709
        %3409 = vmatprep.subr.bf16.mxu0 %v2718
        %3410 = vmatpush1.bf16.msra.mxu0 %v2717
        %3411 = vmatprep.subr.bf16.mxu0 %v2726
        %3412 = vmatpush1.bf16.msra.mxu0 %v2725
        %3413 = vmatprep.mubr.bf16.mxu0 %v1163
        %3414 = vmatmul.mubr.bf16.gmra.mrb[0].mxu0 %v1162
        %v3415 = vpop.f32.mrb[0].mxu0
        %v3416 = vadd.f32 %v3375, %v3415
        %v3417 = vpop.f32.mrb[0].mxu0
        %v3418 = vadd.f32 %v3377, %v3417
        %v3419 = vpop.f32.mrb[0].mxu0
        %v3420 = vpop.f32.mrb[0].mxu0
        %3421 = vdwg.mxu0
        %3422 = vmatprep.subr.bf16.mxu0 %v2734
        %3423 = vmatpush1.bf16.msra.mxu0 %v2733
        %3424 = vmatprep.subr.bf16.mxu0 0
        %3425 = vmatpush1.bf16.msra.mxu0 0
        %3426 = vmatprep.subr.bf16.mxu0 0
        %3427 = vmatpush1.bf16.msra.mxu0 0
        %3428 = vmatprep.subr.bf16.mxu0 0
        %3429 = vmatpush1.bf16.msra.mxu0 0
        %3430 = vmatprep.subr.bf16.mxu0 0
        %3431 = vmatpush1.bf16.msra.mxu0 0
        %3432 = vmatprep.subr.bf16.mxu0 0
        %3433 = vmatpush1.bf16.msra.mxu0 0
        %3434 = vmatprep.subr.bf16.mxu0 0
        %3435 = vmatpush1.bf16.msra.mxu0 0
        %3436 = vmatprep.subr.bf16.mxu0 0
        %3437 = vmatpush1.bf16.msra.mxu0 0
        %3438 = vmatprep.subr.bf16.mxu0 0
        %3439 = vmatpush1.bf16.msra.mxu0 0
        %3440 = vmatprep.subr.bf16.mxu0 0
        %3441 = vmatpush1.bf16.msra.mxu0 0
        %3442 = vmatprep.subr.bf16.mxu0 0
        %3443 = vmatpush1.bf16.msra.mxu0 0
        %3444 = vmatprep.subr.bf16.mxu0 0
        %3445 = vmatpush1.bf16.msra.mxu0 0
        %3446 = vmatprep.subr.bf16.mxu0 0
        %3447 = vmatpush1.bf16.msra.mxu0 0
        %3448 = vmatprep.subr.bf16.mxu0 0
        %3449 = vmatpush1.bf16.msra.mxu0 0
        %3450 = vmatprep.subr.bf16.mxu0 0
        %3451 = vmatpush1.bf16.msra.mxu0 0
        %3452 = vmatprep.subr.bf16.mxu0 0
        %3453 = vmatpush1.bf16.msra.mxu0 0
        %3454 = vmatprep.mubr.bf16.mxu0 0
        %3455 = vmatmul.mubr.bf16.gmra.mrb[0].mxu0 %v3133
        %v3456 = vpop.f32.mrb[0].mxu0
        %v3457 = vadd.f32 %v3416, %v3456
        %v3458 = vpop.f32.mrb[0].mxu0
        %v3459 = vadd.f32 %v3418, %v3458
        %v3460 = vpop.f32.mrb[0].mxu0
        %v3461 = vpop.f32.mrb[0].mxu0
        %3462 = vdwg.mxu0
        %3463 = vmatprep.subr.bf16.mxu0 %v2352
        %3464 = vmatpush1.bf16.msra.mxu0 %v2351
        %3465 = vmatprep.subr.bf16.mxu0 %v2360
        %3466 = vmatpush1.bf16.msra.mxu0 %v2359
        %3467 = vmatprep.subr.bf16.mxu0 %v2368
        %3468 = vmatpush1.bf16.msra.mxu0 %v2367
        %3469 = vmatprep.subr.bf16.mxu0 %v2376
        %3470 = vmatpush1.bf16.msra.mxu0 %v2375
        %3471 = vmatprep.subr.bf16.mxu0 %v2384
        %3472 = vmatpush1.bf16.msra.mxu0 %v2383
        %3473 = vmatprep.subr.bf16.mxu0 %v2392
        %3474 = vmatpush1.bf16.msra.mxu0 %v2391
        %3475 = vmatprep.subr.bf16.mxu0 %v2400
        %3476 = vmatpush1.bf16.msra.mxu0 %v2399
        %3477 = vmatprep.subr.bf16.mxu0 %v2408
        %3478 = vmatpush1.bf16.msra.mxu0 %v2407
        %3479 = vmatprep.subr.bf16.mxu0 %v2416
        %3480 = vmatpush1.bf16.msra.mxu0 %v2415
        %3481 = vmatprep.subr.bf16.mxu0 %v2424
        %3482 = vmatpush1.bf16.msra.mxu0 %v2423
        %3483 = vmatprep.subr.bf16.mxu0 %v2432
        %3484 = vmatpush1.bf16.msra.mxu0 %v2431
        %3485 = vmatprep.subr.bf16.mxu0 %v2440
        %3486 = vmatpush1.bf16.msra.mxu0 %v2439
        %3487 = vmatprep.subr.bf16.mxu0 %v2448
        %3488 = vmatpush1.bf16.msra.mxu0 %v2447
        %3489 = vmatprep.subr.bf16.mxu0 %v2456
        %3490 = vmatpush1.bf16.msra.mxu0 %v2455
        %3491 = vmatprep.subr.bf16.mxu0 %v2464
        %3492 = vmatpush1.bf16.msra.mxu0 %v2463
        %3493 = vmatprep.subr.bf16.mxu0 %v2472
        %3494 = vmatpush1.bf16.msra.mxu0 %v2471
        %3495 = vmatprep.mubr.bf16.mxu0 %v1159
        %3496 = vmatmul.mubr.bf16.gmra.mrb[0].mxu0 %v1158
        %v3497 = vpop.f32.mrb[0].mxu0
        %v3498 = vadd.f32 %v1126, %v3497
        %v3499 = vpop.f32.mrb[0].mxu0
        %v3500 = vadd.f32 %v1130, %v3499
        %v3501 = vpop.f32.mrb[0].mxu0
        %v3502 = vpop.f32.mrb[0].mxu0
        %3503 = vdwg.mxu0
        %3504 = vmatprep.subr.bf16.mxu0 %v2480
        %3505 = vmatpush1.bf16.msra.mxu0 %v2479
        %3506 = vmatprep.subr.bf16.mxu0 %v2488
        %3507 = vmatpush1.bf16.msra.mxu0 %v2487
        %3508 = vmatprep.subr.bf16.mxu0 %v2496
        %3509 = vmatpush1.bf16.msra.mxu0 %v2495
        %3510 = vmatprep.subr.bf16.mxu0 %v2504
        %3511 = vmatpush1.bf16.msra.mxu0 %v2503
        %3512 = vmatprep.subr.bf16.mxu0 %v2512
        %3513 = vmatpush1.bf16.msra.mxu0 %v2511
        %3514 = vmatprep.subr.bf16.mxu0 %v2520
        %3515 = vmatpush1.bf16.msra.mxu0 %v2519
        %3516 = vmatprep.subr.bf16.mxu0 %v2528
        %3517 = vmatpush1.bf16.msra.mxu0 %v2527
        %3518 = vmatprep.subr.bf16.mxu0 %v2536
        %3519 = vmatpush1.bf16.msra.mxu0 %v2535
        %3520 = vmatprep.subr.bf16.mxu0 %v2544
        %3521 = vmatpush1.bf16.msra.mxu0 %v2543
        %3522 = vmatprep.subr.bf16.mxu0 %v2552
        %3523 = vmatpush1.bf16.msra.mxu0 %v2551
        %3524 = vmatprep.subr.bf16.mxu0 %v2560
        %3525 = vmatpush1.bf16.msra.mxu0 %v2559
        %3526 = vmatprep.subr.bf16.mxu0 %v2568
        %3527 = vmatpush1.bf16.msra.mxu0 %v2567
        %3528 = vmatprep.subr.bf16.mxu0 %v2576
        %3529 = vmatpush1.bf16.msra.mxu0 %v2575
        %3530 = vmatprep.subr.bf16.mxu0 %v2584
        %3531 = vmatpush1.bf16.msra.mxu0 %v2583
        %3532 = vmatprep.subr.bf16.mxu0 %v2592
        %3533 = vmatpush1.bf16.msra.mxu0 %v2591
        %3534 = vmatprep.subr.bf16.mxu0 %v2600
        %3535 = vmatpush1.bf16.msra.mxu0 %v2599
        %3536 = vmatprep.mubr.bf16.mxu0 %v1161
        %3537 = vmatmul.mubr.bf16.gmra.mrb[0].mxu0 %v1160
        %v3538 = vpop.f32.mrb[0].mxu0
        %v3539 = vadd.f32 %v3498, %v3538
        %v3540 = vpop.f32.mrb[0].mxu0
        %v3541 = vadd.f32 %v3500, %v3540
        %v3542 = vpop.f32.mrb[0].mxu0
        %v3543 = vpop.f32.mrb[0].mxu0
        %3544 = vdwg.mxu0
        %3545 = vmatprep.subr.bf16.mxu0 %v2608
        %3546 = vmatpush1.bf16.msra.mxu0 %v2607
        %3547 = vmatprep.subr.bf16.mxu0 %v2616
        %3548 = vmatpush1.bf16.msra.mxu0 %v2615
        %3549 = vmatprep.subr.bf16.mxu0 %v2624
        %3550 = vmatpush1.bf16.msra.mxu0 %v2623
        %3551 = vmatprep.subr.bf16.mxu0 %v2632
        %3552 = vmatpush1.bf16.msra.mxu0 %v2631
        %3553 = vmatprep.subr.bf16.mxu0 %v2640
        %3554 = vmatpush1.bf16.msra.mxu0 %v2639
        %3555 = vmatprep.subr.bf16.mxu0 %v2648
        %3556 = vmatpush1.bf16.msra.mxu0 %v2647
        %3557 = vmatprep.subr.bf16.mxu0 %v2656
        %3558 = vmatpush1.bf16.msra.mxu0 %v2655
        %3559 = vmatprep.subr.bf16.mxu0 %v2664
        %3560 = vmatpush1.bf16.msra.mxu0 %v2663
        %3561 = vmatprep.subr.bf16.mxu0 %v2672
        %3562 = vmatpush1.bf16.msra.mxu0 %v2671
        %3563 = vmatprep.subr.bf16.mxu0 %v2680
        %3564 = vmatpush1.bf16.msra.mxu0 %v2679
        %3565 = vmatprep.subr.bf16.mxu0 %v2688
        %3566 = vmatpush1.bf16.msra.mxu0 %v2687
        %3567 = vmatprep.subr.bf16.mxu0 %v2696
        %3568 = vmatpush1.bf16.msra.mxu0 %v2695
        %3569 = vmatprep.subr.bf16.mxu0 %v2704
        %3570 = vmatpush1.bf16.msra.mxu0 %v2703
        %3571 = vmatprep.subr.bf16.mxu0 %v2712
        %3572 = vmatpush1.bf16.msra.mxu0 %v2711
        %3573 = vmatprep.subr.bf16.mxu0 %v2720
        %3574 = vmatpush1.bf16.msra.mxu0 %v2719
        %3575 = vmatprep.subr.bf16.mxu0 %v2728
        %3576 = vmatpush1.bf16.msra.mxu0 %v2727
        %3577 = vmatprep.mubr.bf16.mxu0 %v1163
        %3578 = vmatmul.mubr.bf16.gmra.mrb[0].mxu0 %v1162
        %v3579 = vpop.f32.mrb[0].mxu0
        %v3580 = vadd.f32 %v3539, %v3579
        %v3581 = vpop.f32.mrb[0].mxu0
        %v3582 = vadd.f32 %v3541, %v3581
        %v3583 = vpop.f32.mrb[0].mxu0
        %v3584 = vpop.f32.mrb[0].mxu0
        %3585 = vdwg.mxu0
        %3586 = vmatprep.subr.bf16.mxu0 %v2736
        %3587 = vmatpush1.bf16.msra.mxu0 %v2735
        %3588 = vmatprep.subr.bf16.mxu0 0
        %3589 = vmatpush1.bf16.msra.mxu0 0
        %3590 = vmatprep.subr.bf16.mxu0 0
        %3591 = vmatpush1.bf16.msra.mxu0 0
        %3592 = vmatprep.subr.bf16.mxu0 0
        %3593 = vmatpush1.bf16.msra.mxu0 0
        %3594 = vmatprep.subr.bf16.mxu0 0
        %3595 = vmatpush1.bf16.msra.mxu0 0
        %3596 = vmatprep.subr.bf16.mxu0 0
        %3597 = vmatpush1.bf16.msra.mxu0 0
        %3598 = vmatprep.subr.bf16.mxu0 0
        %3599 = vmatpush1.bf16.msra.mxu0 0
        %3600 = vmatprep.subr.bf16.mxu0 0
        %3601 = vmatpush1.bf16.msra.mxu0 0
        %3602 = vmatprep.subr.bf16.mxu0 0
        %3603 = vmatpush1.bf16.msra.mxu0 0
        %3604 = vmatprep.subr.bf16.mxu0 0
        %3605 = vmatpush1.bf16.msra.mxu0 0
        %3606 = vmatprep.subr.bf16.mxu0 0
        %3607 = vmatpush1.bf16.msra.mxu0 0
        %3608 = vmatprep.subr.bf16.mxu0 0
        %3609 = vmatpush1.bf16.msra.mxu0 0
        %3610 = vmatprep.subr.bf16.mxu0 0
        %3611 = vmatpush1.bf16.msra.mxu0 0
        %3612 = vmatprep.subr.bf16.mxu0 0
        %3613 = vmatpush1.bf16.msra.mxu0 0
        %3614 = vmatprep.subr.bf16.mxu0 0
        %3615 = vmatpush1.bf16.msra.mxu0 0
        %3616 = vmatprep.subr.bf16.mxu0 0
        %3617 = vmatpush1.bf16.msra.mxu0 0
        %3618 = vmatprep.mubr.bf16.mxu0 0
        %3619 = vmatmul.mubr.bf16.gmra.mrb[0].mxu0 %v3133
        %v3620 = vpop.f32.mrb[0].mxu0
        %v3621 = vadd.f32 %v3580, %v3620
        %v3622 = vpop.f32.mrb[0].mxu0
        %v3623 = vadd.f32 %v3582, %v3622
        %v3624 = vpop.f32.mrb[0].mxu0
        %v3625 = vpop.f32.mrb[0].mxu0
        %3626 = vdwg.mxu0
        %3627 = vmatprep.subr.bf16.mxu0 %v2354
        %3628 = vmatpush1.bf16.msra.mxu0 %v2353
        %3629 = vmatprep.subr.bf16.mxu0 %v2362
        %3630 = vmatpush1.bf16.msra.mxu0 %v2361
        %3631 = vmatprep.subr.bf16.mxu0 %v2370
        %3632 = vmatpush1.bf16.msra.mxu0 %v2369
        %3633 = vmatprep.subr.bf16.mxu0 %v2378
        %3634 = vmatpush1.bf16.msra.mxu0 %v2377
        %3635 = vmatprep.subr.bf16.mxu0 %v2386
        %3636 = vmatpush1.bf16.msra.mxu0 %v2385
        %3637 = vmatprep.subr.bf16.mxu0 %v2394
        %3638 = vmatpush1.bf16.msra.mxu0 %v2393
        %3639 = vmatprep.subr.bf16.mxu0 %v2402
        %3640 = vmatpush1.bf16.msra.mxu0 %v2401
        %3641 = vmatprep.subr.bf16.mxu0 %v2410
        %3642 = vmatpush1.bf16.msra.mxu0 %v2409
        %3643 = vmatprep.subr.bf16.mxu0 %v2418
        %3644 = vmatpush1.bf16.msra.mxu0 %v2417
        %3645 = vmatprep.subr.bf16.mxu0 %v2426
        %3646 = vmatpush1.bf16.msra.mxu0 %v2425
        %3647 = vmatprep.subr.bf16.mxu0 %v2434
        %3648 = vmatpush1.bf16.msra.mxu0 %v2433
        %3649 = vmatprep.subr.bf16.mxu0 %v2442
        %3650 = vmatpush1.bf16.msra.mxu0 %v2441
        %3651 = vmatprep.subr.bf16.mxu0 %v2450
        %3652 = vmatpush1.bf16.msra.mxu0 %v2449
        %3653 = vmatprep.subr.bf16.mxu0 %v2458
        %3654 = vmatpush1.bf16.msra.mxu0 %v2457
        %3655 = vmatprep.subr.bf16.mxu0 %v2466
        %3656 = vmatpush1.bf16.msra.mxu0 %v2465
        %3657 = vmatprep.subr.bf16.mxu0 %v2474
        %3658 = vmatpush1.bf16.msra.mxu0 %v2473
        %3659 = vmatprep.mubr.bf16.mxu0 %v1159
        %3660 = vmatmul.mubr.bf16.gmra.mrb[0].mxu0 %v1158
        %v3661 = vpop.f32.mrb[0].mxu0
        %v3662 = vadd.f32 %v1134, %v3661
        %v3663 = vpop.f32.mrb[0].mxu0
        %v3664 = vadd.f32 %v1138, %v3663
        %v3665 = vpop.f32.mrb[0].mxu0
        %v3666 = vpop.f32.mrb[0].mxu0
        %3667 = vdwg.mxu0
        %3668 = vmatprep.subr.bf16.mxu0 %v2482
        %3669 = vmatpush1.bf16.msra.mxu0 %v2481
        %3670 = vmatprep.subr.bf16.mxu0 %v2490
        %3671 = vmatpush1.bf16.msra.mxu0 %v2489
        %3672 = vmatprep.subr.bf16.mxu0 %v2498
        %3673 = vmatpush1.bf16.msra.mxu0 %v2497
        %3674 = vmatprep.subr.bf16.mxu0 %v2506
        %3675 = vmatpush1.bf16.msra.mxu0 %v2505
        %3676 = vmatprep.subr.bf16.mxu0 %v2514
        %3677 = vmatpush1.bf16.msra.mxu0 %v2513
        %3678 = vmatprep.subr.bf16.mxu0 %v2522
        %3679 = vmatpush1.bf16.msra.mxu0 %v2521
        %3680 = vmatprep.subr.bf16.mxu0 %v2530
        %3681 = vmatpush1.bf16.msra.mxu0 %v2529
        %3682 = vmatprep.subr.bf16.mxu0 %v2538
        %3683 = vmatpush1.bf16.msra.mxu0 %v2537
        %3684 = vmatprep.subr.bf16.mxu0 %v2546
        %3685 = vmatpush1.bf16.msra.mxu0 %v2545
        %3686 = vmatprep.subr.bf16.mxu0 %v2554
        %3687 = vmatpush1.bf16.msra.mxu0 %v2553
        %3688 = vmatprep.subr.bf16.mxu0 %v2562
        %3689 = vmatpush1.bf16.msra.mxu0 %v2561
        %3690 = vmatprep.subr.bf16.mxu0 %v2570
        %3691 = vmatpush1.bf16.msra.mxu0 %v2569
        %3692 = vmatprep.subr.bf16.mxu0 %v2578
        %3693 = vmatpush1.bf16.msra.mxu0 %v2577
        %3694 = vmatprep.subr.bf16.mxu0 %v2586
        %3695 = vmatpush1.bf16.msra.mxu0 %v2585
        %3696 = vmatprep.subr.bf16.mxu0 %v2594
        %3697 = vmatpush1.bf16.msra.mxu0 %v2593
        %3698 = vmatprep.subr.bf16.mxu0 %v2602
        %3699 = vmatpush1.bf16.msra.mxu0 %v2601
        %3700 = vmatprep.mubr.bf16.mxu0 %v1161
        %3701 = vmatmul.mubr.bf16.gmra.mrb[0].mxu0 %v1160
        %v3702 = vpop.f32.mrb[0].mxu0
        %v3703 = vadd.f32 %v3662, %v3702
        %v3704 = vpop.f32.mrb[0].mxu0
        %v3705 = vadd.f32 %v3664, %v3704
        %v3706 = vpop.f32.mrb[0].mxu0
        %v3707 = vpop.f32.mrb[0].mxu0
        %3708 = vdwg.mxu0
        %3709 = vmatprep.subr.bf16.mxu0 %v2610
        %3710 = vmatpush1.bf16.msra.mxu0 %v2609
        %3711 = vmatprep.subr.bf16.mxu0 %v2618
        %3712 = vmatpush1.bf16.msra.mxu0 %v2617
        %3713 = vmatprep.subr.bf16.mxu0 %v2626
        %3714 = vmatpush1.bf16.msra.mxu0 %v2625
        %3715 = vmatprep.subr.bf16.mxu0 %v2634
        %3716 = vmatpush1.bf16.msra.mxu0 %v2633
        %3717 = vmatprep.subr.bf16.mxu0 %v2642
        %3718 = vmatpush1.bf16.msra.mxu0 %v2641
        %3719 = vmatprep.subr.bf16.mxu0 %v2650
        %3720 = vmatpush1.bf16.msra.mxu0 %v2649
        %3721 = vmatprep.subr.bf16.mxu0 %v2658
        %3722 = vmatpush1.bf16.msra.mxu0 %v2657
        %3723 = vmatprep.subr.bf16.mxu0 %v2666
        %3724 = vmatpush1.bf16.msra.mxu0 %v2665
        %3725 = vmatprep.subr.bf16.mxu0 %v2674
        %3726 = vmatpush1.bf16.msra.mxu0 %v2673
        %3727 = vmatprep.subr.bf16.mxu0 %v2682
        %3728 = vmatpush1.bf16.msra.mxu0 %v2681
        %3729 = vmatprep.subr.bf16.mxu0 %v2690
        %3730 = vmatpush1.bf16.msra.mxu0 %v2689
        %3731 = vmatprep.subr.bf16.mxu0 %v2698
        %3732 = vmatpush1.bf16.msra.mxu0 %v2697
        %3733 = vmatprep.subr.bf16.mxu0 %v2706
        %3734 = vmatpush1.bf16.msra.mxu0 %v2705
        %3735 = vmatprep.subr.bf16.mxu0 %v2714
        %3736 = vmatpush1.bf16.msra.mxu0 %v2713
        %3737 = vmatprep.subr.bf16.mxu0 %v2722
        %3738 = vmatpush1.bf16.msra.mxu0 %v2721
        %3739 = vmatprep.subr.bf16.mxu0 %v2730
        %3740 = vmatpush1.bf16.msra.mxu0 %v2729
        %3741 = vmatprep.mubr.bf16.mxu0 %v1163
        %3742 = vmatmul.mubr.bf16.gmra.mrb[0].mxu0 %v1162
        %v3743 = vpop.f32.mrb[0].mxu0
        %v3744 = vadd.f32 %v3703, %v3743
        %v3745 = vpop.f32.mrb[0].mxu0
        %v3746 = vadd.f32 %v3705, %v3745
        %v3747 = vpop.f32.mrb[0].mxu0
        %v3748 = vpop.f32.mrb[0].mxu0
        %3749 = vdwg.mxu0
        %3750 = vmatprep.subr.bf16.mxu0 %v2738
        %3751 = vmatpush1.bf16.msra.mxu0 %v2737
        %3752 = vmatprep.subr.bf16.mxu0 0
        %3753 = vmatpush1.bf16.msra.mxu0 0
        %3754 = vmatprep.subr.bf16.mxu0 0
        %3755 = vmatpush1.bf16.msra.mxu0 0
        %3756 = vmatprep.subr.bf16.mxu0 0
        %3757 = vmatpush1.bf16.msra.mxu0 0
        %3758 = vmatprep.subr.bf16.mxu0 0
        %3759 = vmatpush1.bf16.msra.mxu0 0
        %3760 = vmatprep.subr.bf16.mxu0 0
        %3761 = vmatpush1.bf16.msra.mxu0 0
        %3762 = vmatprep.subr.bf16.mxu0 0
        %3763 = vmatpush1.bf16.msra.mxu0 0
        %3764 = vmatprep.subr.bf16.mxu0 0
        %3765 = vmatpush1.bf16.msra.mxu0 0
        %3766 = vmatprep.subr.bf16.mxu0 0
        %3767 = vmatpush1.bf16.msra.mxu0 0
        %3768 = vmatprep.subr.bf16.mxu0 0
        %3769 = vmatpush1.bf16.msra.mxu0 0
        %3770 = vmatprep.subr.bf16.mxu0 0
        %3771 = vmatpush1.bf16.msra.mxu0 0
        %3772 = vmatprep.subr.bf16.mxu0 0
        %3773 = vmatpush1.bf16.msra.mxu0 0
        %3774 = vmatprep.subr.bf16.mxu0 0
        %3775 = vmatpush1.bf16.msra.mxu0 0
        %3776 = vmatprep.subr.bf16.mxu0 0
        %3777 = vmatpush1.bf16.msra.mxu0 0
        %3778 = vmatprep.subr.bf16.mxu0 0
        %3779 = vmatpush1.bf16.msra.mxu0 0
        %3780 = vmatprep.subr.bf16.mxu0 0
        %3781 = vmatpush1.bf16.msra.mxu0 0
        %3782 = vmatprep.mubr.bf16.mxu0 0
        %3783 = vmatmul.mubr.bf16.gmra.mrb[0].mxu0 %v3133
        %v3784 = vpop.f32.mrb[0].mxu0
        %v3785 = vadd.f32 %v3744, %v3784
        %v3786 = vpop.f32.mrb[0].mxu0
        %v3787 = vadd.f32 %v3746, %v3786
        %v3788 = vpop.f32.mrb[0].mxu0
        %v3789 = vpop.f32.mrb[0].mxu0
        %3790 = vdwg.mxu0
        %vm3791 = vcmp.gt.f32.partialorder %v3293, 0.0
        %vm3792 = vcmp.gt.f32.partialorder %v3295, 0.0
        %vm3793 = vcmp.gt.f32.partialorder %v3457, 0.0
        %vm3794 = vcmp.gt.f32.partialorder %v3459, 0.0
        %vm3795 = vcmp.gt.f32.partialorder %v3621, 0.0
        %vm3796 = vcmp.gt.f32.partialorder %v3623, 0.0
        %vm3797 = vcmp.gt.f32.partialorder %v3785, 0.0
        %vm3798 = vcmp.gt.f32.partialorder %v3787, 0.0
        %v3799 = vmul.f32 %v3293, 0.2
        %v3800 = vmul.f32 %v3295, 0.2
        %v3801 = vmul.f32 %v3457, 0.2
        %v3802 = vmul.f32 %v3459, 0.2
        %v3803 = vmul.f32 %v3621, 0.2
        %v3804 = vmul.f32 %v3623, 0.2
        %v3805 = vmul.f32 %v3785, 0.2
        %v3806 = vmul.f32 %v3787, 0.2
        %v3807 = vsel %vm3791, %v3293, %v3799
        %v3808 = vsel %vm3792, %v3295, %v3800
        %v3809 = vsel %vm3793, %v3457, %v3801
        %v3810 = vsel %vm3794, %v3459, %v3802
        %v3811 = vsel %vm3795, %v3621, %v3803
        %v3812 = vsel %vm3796, %v3623, %v3804
        %v3813 = vsel %vm3797, %v3785, %v3805
        %v3814 = vsel %vm3798, %v3787, %v3806
        %v3815 = vld [vmem:[%s605] sm:$0xff]
        %v3816 = vld [vmem:[#allocation10] sm:$0xff]
        %v3817 = vld [vmem:[#allocation10 + $0x8] sm:$0xff]
        %v3818 = vld [vmem:[#allocation10 + $0x10] sm:$0xff]
        %v3819 = vld [vmem:[#allocation10 + $0x18] sm:$0xff]
        %v3820 = vld [vmem:[#allocation10 + $0x20] sm:$0x3]
        %v3821 = vld [vmem:[#allocation10 + $0x28] sm:$0x3]
        %v3822 = vld [vmem:[#allocation10 + $0x30] sm:$0x3]
        %v3823 = vld [vmem:[#allocation10 + $0x38] sm:$0x3]
        %vm3824 = vcmask 80896
        %v3826 = vsel %vm3824, %v3815, 0
        %vm3828 = vcmask 1041408
        %v3830 = vsel %vm3828, %v3820, 0
        %v3833 = vsel %vm3828, %v3821, 0
        %v3836 = vsel %vm3828, %v3822, 0
        %v3839 = vsel %vm3828, %v3823, 0
        %3841 = vmatprep.subr.mxu0 %v3817
        %3842 = vmatpush1.msra.mxu0 %v3816
        %3843 = vmatprep.subr.mxu0 %v3833
        %3844 = vmatpush1.msra.mxu0 %v3830
        %3845 = vmatprep.subr.mxu0 0.0
        %3846 = vmatpush1.msra.mxu0 0.0
        %3847 = vmatprep.subr.mxu0 0.0
        %3848 = vmatpush1.msra.mxu0 0.0
        %3849 = vmatprep.subr.mxu0 0.0
        %3850 = vmatpush1.msra.mxu0 0.0
        %3851 = vmatprep.subr.mxu0 0.0
        %3852 = vmatpush1.msra.mxu0 0.0
        %3853 = vmatprep.subr.mxu0 0.0
        %3854 = vmatpush1.msra.mxu0 0.0
        %3855 = vmatprep.subr.mxu0 0.0
        %3856 = vmatpush1.msra.mxu0 0.0
        %3857 = vmatprep.subr.mxu0 0.0
        %3858 = vmatpush1.msra.mxu0 0.0
        %3859 = vmatprep.subr.mxu0 0.0
        %3860 = vmatpush1.msra.mxu0 0.0
        %3861 = vmatprep.subr.mxu0 0.0
        %3862 = vmatpush1.msra.mxu0 0.0
        %3863 = vmatprep.subr.mxu0 0.0
        %3864 = vmatpush1.msra.mxu0 0.0
        %3865 = vmatprep.subr.mxu0 0.0
        %3866 = vmatpush1.msra.mxu0 0.0
        %3867 = vmatprep.subr.mxu0 0.0
        %3868 = vmatpush1.msra.mxu0 0.0
        %3869 = vmatprep.subr.mxu0 0.0
        %3870 = vmatpush1.msra.mxu0 0.0
        %3871 = vmatprep.subr.mxu0 0.0
        %3872 = vmatpush1.msra.mxu0 0.0
        %3873 = vmatprep.subr.mxu0 0.0
        %3874 = vmatpush1.msra.mxu0 0.0
        %3875 = vmatprep.subr.mxu0 0.0
        %3876 = vmatpush1.msra.mxu0 0.0
        %3877 = vmatprep.subr.mxu0 0.0
        %3878 = vmatpush1.msra.mxu0 0.0
        %3879 = vmatprep.subr.mxu0 0.0
        %3880 = vmatpush1.msra.mxu0 0.0
        %3881 = vmatprep.subr.mxu0 0.0
        %3882 = vmatpush1.msra.mxu0 0.0
        %3883 = vmatprep.subr.mxu0 0.0
        %3884 = vmatpush1.msra.mxu0 0.0
        %3885 = vmatprep.subr.mxu0 0.0
        %3886 = vmatpush1.msra.mxu0 0.0
        %3887 = vmatprep.subr.mxu0 0.0
        %3888 = vmatpush1.msra.mxu0 0.0
        %3889 = vmatprep.subr.mxu0 0.0
        %3890 = vmatpush1.msra.mxu0 0.0
        %3891 = vmatprep.subr.mxu0 0.0
        %3892 = vmatpush1.msra.mxu0 0.0
        %3893 = vmatprep.subr.mxu0 0.0
        %3894 = vmatpush1.msra.mxu0 0.0
        %3895 = vmatprep.subr.mxu0 0.0
        %3896 = vmatpush1.msra.mxu0 0.0
        %3897 = vmatprep.subr.mxu0 0.0
        %3898 = vmatpush1.msra.mxu0 0.0
        %3899 = vmatprep.subr.mxu0 0.0
        %3900 = vmatpush1.msra.mxu0 0.0
        %3901 = vmatprep.subr.mxu0 0.0
        %3902 = vmatpush1.msra.mxu0 0.0
        %3903 = vmatprep.subr.mxu0 0.0
        %3904 = vmatpush1.msra.mxu0 0.0
        %3905 = vmatprep.mubr.f32.mxu0 0.0
        %3906 = vmatmul.mubr.f32.gmra.mrb[0].mxu0 %v3826
        %v3907 = vpop.f32.mrb[0].mxu0
        %v3908 = vadd.f32 0.0, %v3907
        %v3909 = vpop.f32.mrb[0].mxu0
        %v3910 = vadd.f32 0.0, %v3909
        %3911 = vdwg.mxu0
        %3912 = vmatprep.subr.mxu0 %v3819
        %3913 = vmatpush1.msra.mxu0 %v3818
        %3914 = vmatprep.subr.mxu0 %v3839
        %3915 = vmatpush1.msra.mxu0 %v3836
        %3916 = vmatprep.subr.mxu0 0.0
        %3917 = vmatpush1.msra.mxu0 0.0
        %3918 = vmatprep.subr.mxu0 0.0
        %3919 = vmatpush1.msra.mxu0 0.0
        %3920 = vmatprep.subr.mxu0 0.0
        %3921 = vmatpush1.msra.mxu0 0.0
        %3922 = vmatprep.subr.mxu0 0.0
        %3923 = vmatpush1.msra.mxu0 0.0
        %3924 = vmatprep.subr.mxu0 0.0
        %3925 = vmatpush1.msra.mxu0 0.0
        %3926 = vmatprep.subr.mxu0 0.0
        %3927 = vmatpush1.msra.mxu0 0.0
        %3928 = vmatprep.subr.mxu0 0.0
        %3929 = vmatpush1.msra.mxu0 0.0
        %3930 = vmatprep.subr.mxu0 0.0
        %3931 = vmatpush1.msra.mxu0 0.0
        %3932 = vmatprep.subr.mxu0 0.0
        %3933 = vmatpush1.msra.mxu0 0.0
        %3934 = vmatprep.subr.mxu0 0.0
        %3935 = vmatpush1.msra.mxu0 0.0
        %3936 = vmatprep.subr.mxu0 0.0
        %3937 = vmatpush1.msra.mxu0 0.0
        %3938 = vmatprep.subr.mxu0 0.0
        %3939 = vmatpush1.msra.mxu0 0.0
        %3940 = vmatprep.subr.mxu0 0.0
        %3941 = vmatpush1.msra.mxu0 0.0
        %3942 = vmatprep.subr.mxu0 0.0
        %3943 = vmatpush1.msra.mxu0 0.0
        %3944 = vmatprep.subr.mxu0 0.0
        %3945 = vmatpush1.msra.mxu0 0.0
        %3946 = vmatprep.subr.mxu0 0.0
        %3947 = vmatpush1.msra.mxu0 0.0
        %3948 = vmatprep.subr.mxu0 0.0
        %3949 = vmatpush1.msra.mxu0 0.0
        %3950 = vmatprep.subr.mxu0 0.0
        %3951 = vmatpush1.msra.mxu0 0.0
        %3952 = vmatprep.subr.mxu0 0.0
        %3953 = vmatpush1.msra.mxu0 0.0
        %3954 = vmatprep.subr.mxu0 0.0
        %3955 = vmatpush1.msra.mxu0 0.0
        %3956 = vmatprep.subr.mxu0 0.0
        %3957 = vmatpush1.msra.mxu0 0.0
        %3958 = vmatprep.subr.mxu0 0.0
        %3959 = vmatpush1.msra.mxu0 0.0
        %3960 = vmatprep.subr.mxu0 0.0
        %3961 = vmatpush1.msra.mxu0 0.0
        %3962 = vmatprep.subr.mxu0 0.0
        %3963 = vmatpush1.msra.mxu0 0.0
        %3964 = vmatprep.subr.mxu0 0.0
        %3965 = vmatpush1.msra.mxu0 0.0
        %3966 = vmatprep.subr.mxu0 0.0
        %3967 = vmatpush1.msra.mxu0 0.0
        %3968 = vmatprep.subr.mxu0 0.0
        %3969 = vmatpush1.msra.mxu0 0.0
        %3970 = vmatprep.subr.mxu0 0.0
        %3971 = vmatpush1.msra.mxu0 0.0
        %3972 = vmatprep.subr.mxu0 0.0
        %3973 = vmatpush1.msra.mxu0 0.0
        %3974 = vmatprep.subr.mxu0 0.0
        %3975 = vmatpush1.msra.mxu0 0.0
        %3976 = vmatprep.mubr.f32.mxu0 0.0
        %3977 = vmatmul.mubr.f32.gmra.mrb[0].mxu0 %v3826
        %v3978 = vpop.f32.mrb[0].mxu0
        %v3979 = vadd.f32 0.0, %v3978
        %v3980 = vpop.f32.mrb[0].mxu0
        %v3981 = vadd.f32 0.0, %v3980
        %3982 = vdwg.mxu0
        %v3983 = vpack.c.bf16 %v3807, %v3807
        %v3984 = vpack.c.bf16 %v3808, %v3808
        %v3985 = vpack.c.bf16 %v3809, %v3809
        %v3986 = vpack.c.bf16 %v3810, %v3810
        %v3987 = vpack.c.bf16 %v3811, %v3811
        %v3988 = vpack.c.bf16 %v3812, %v3812
        %v3989 = vpack.c.bf16 %v3813, %v3813
        %v3990 = vpack.c.bf16 %v3814, %v3814
        %v3991 = vld [vmem:[#allocation11] sm:$0xff]
        %v3992 = vld [vmem:[#allocation11 + $0x8] sm:$0xff]
        %v3993 = vld [vmem:[#allocation11 + $0x10] sm:$0xff]
        %v3994 = vld [vmem:[#allocation11 + $0x18] sm:$0xff]
        %v3995 = vld [vmem:[#allocation11 + $0x20] sm:$0xff]
        %v3996 = vld [vmem:[#allocation11 + $0x28] sm:$0xff]
        %v3997 = vld [vmem:[#allocation11 + $0x30] sm:$0xff]
        %v3998 = vld [vmem:[#allocation11 + $0x38] sm:$0xff]
        %v3999 = vld [vmem:[#allocation11 + $0x40] sm:$0xff]
        %v4000 = vld [vmem:[#allocation11 + $0x48] sm:$0xff]
        %v4001 = vld [vmem:[#allocation11 + $0x50] sm:$0xff]
        %v4002 = vld [vmem:[#allocation11 + $0x58] sm:$0xff]
        %v4003 = vld [vmem:[#allocation11 + $0x60] sm:$0xff]
        %v4004 = vld [vmem:[#allocation11 + $0x68] sm:$0xff]
        %v4005 = vld [vmem:[#allocation11 + $0x70] sm:$0xff]
        %v4006 = vld [vmem:[#allocation11 + $0x78] sm:$0xff]
        %v4007 = vld [vmem:[#allocation11 + $0x80] sm:$0xff]
        %v4008 = vld [vmem:[#allocation11 + $0x88] sm:$0xff]
        %v4009 = vld [vmem:[#allocation11 + $0x90] sm:$0xff]
        %v4010 = vld [vmem:[#allocation11 + $0x98] sm:$0xff]
        %v4011 = vld [vmem:[#allocation11 + $0xa0] sm:$0xff]
        %v4012 = vld [vmem:[#allocation11 + $0xa8] sm:$0xff]
        %v4013 = vld [vmem:[#allocation11 + $0xb0] sm:$0xff]
        %v4014 = vld [vmem:[#allocation11 + $0xb8] sm:$0xff]
        %v4015 = vld [vmem:[#allocation11 + $0xc0] sm:$0xff]
        %v4016 = vld [vmem:[#allocation11 + $0xc8] sm:$0xff]
        %v4017 = vld [vmem:[#allocation11 + $0xd0] sm:$0xff]
        %v4018 = vld [vmem:[#allocation11 + $0xd8] sm:$0xff]
        %v4019 = vld [vmem:[#allocation11 + $0xe0] sm:$0xff]
        %v4020 = vld [vmem:[#allocation11 + $0xe8] sm:$0xff]
        %v4021 = vld [vmem:[#allocation11 + $0xf0] sm:$0xff]
        %v4022 = vld [vmem:[#allocation11 + $0xf8] sm:$0xff]
        %v4023 = vld [vmem:[#allocation11 + $0x100] sm:$0xff]
        %v4024 = vld [vmem:[#allocation11 + $0x108] sm:$0xff]
        %v4025 = vld [vmem:[#allocation11 + $0x110] sm:$0xff]
        %v4026 = vld [vmem:[#allocation11 + $0x118] sm:$0xff]
        %v4027 = vld [vmem:[#allocation11 + $0x120] sm:$0xff]
        %v4028 = vld [vmem:[#allocation11 + $0x128] sm:$0xff]
        %v4029 = vld [vmem:[#allocation11 + $0x130] sm:$0xff]
        %v4030 = vld [vmem:[#allocation11 + $0x138] sm:$0xff]
        %v4031 = vld [vmem:[#allocation11 + $0x140] sm:$0xff]
        %v4032 = vld [vmem:[#allocation11 + $0x148] sm:$0xff]
        %v4033 = vld [vmem:[#allocation11 + $0x150] sm:$0xff]
        %v4034 = vld [vmem:[#allocation11 + $0x158] sm:$0xff]
        %v4035 = vld [vmem:[#allocation11 + $0x160] sm:$0xff]
        %v4036 = vld [vmem:[#allocation11 + $0x168] sm:$0xff]
        %v4037 = vld [vmem:[#allocation11 + $0x170] sm:$0xff]
        %v4038 = vld [vmem:[#allocation11 + $0x178] sm:$0xff]
        %v4039 = vld [vmem:[#allocation11 + $0x180] sm:$0xff]
        %v4040 = vld [vmem:[#allocation11 + $0x188] sm:$0xff]
        %v4041 = vld [vmem:[#allocation11 + $0x190] sm:$0xff]
        %v4042 = vld [vmem:[#allocation11 + $0x198] sm:$0xff]
        %v4043 = vld [vmem:[#allocation11 + $0x1a0] sm:$0xff]
        %v4044 = vld [vmem:[#allocation11 + $0x1a8] sm:$0xff]
        %v4045 = vld [vmem:[#allocation11 + $0x1b0] sm:$0xff]
        %v4046 = vld [vmem:[#allocation11 + $0x1b8] sm:$0xff]
        %v4047 = vld [vmem:[#allocation11 + $0x1c0] sm:$0xff]
        %v4048 = vld [vmem:[#allocation11 + $0x1c8] sm:$0xff]
        %v4049 = vld [vmem:[#allocation11 + $0x1d0] sm:$0xff]
        %v4050 = vld [vmem:[#allocation11 + $0x1d8] sm:$0xff]
        %v4051 = vld [vmem:[#allocation11 + $0x1e0] sm:$0xff]
        %v4052 = vld [vmem:[#allocation11 + $0x1e8] sm:$0xff]
        %v4053 = vld [vmem:[#allocation11 + $0x1f0] sm:$0xff]
        %v4054 = vld [vmem:[#allocation11 + $0x1f8] sm:$0xff]
        %v4055 = vld [vmem:[#allocation11 + $0x200] sm:$0xff]
        %v4056 = vld [vmem:[#allocation11 + $0x208] sm:$0xff]
        %v4057 = vld [vmem:[#allocation11 + $0x210] sm:$0xff]
        %v4058 = vld [vmem:[#allocation11 + $0x218] sm:$0xff]
        %v4059 = vld [vmem:[#allocation11 + $0x220] sm:$0xff]
        %v4060 = vld [vmem:[#allocation11 + $0x228] sm:$0xff]
        %v4061 = vld [vmem:[#allocation11 + $0x230] sm:$0xff]
        %v4062 = vld [vmem:[#allocation11 + $0x238] sm:$0xff]
        %v4063 = vld [vmem:[#allocation11 + $0x240] sm:$0xff]
        %v4064 = vld [vmem:[#allocation11 + $0x248] sm:$0xff]
        %v4065 = vld [vmem:[#allocation11 + $0x250] sm:$0xff]
        %v4066 = vld [vmem:[#allocation11 + $0x258] sm:$0xff]
        %v4067 = vld [vmem:[#allocation11 + $0x260] sm:$0xff]
        %v4068 = vld [vmem:[#allocation11 + $0x268] sm:$0xff]
        %v4069 = vld [vmem:[#allocation11 + $0x270] sm:$0xff]
        %v4070 = vld [vmem:[#allocation11 + $0x278] sm:$0xff]
        %v4071 = vld [vmem:[#allocation11 + $0x280] sm:$0xff]
        %v4072 = vld [vmem:[#allocation11 + $0x288] sm:$0xff]
        %v4073 = vld [vmem:[#allocation11 + $0x290] sm:$0xff]
        %v4074 = vld [vmem:[#allocation11 + $0x298] sm:$0xff]
        %v4075 = vld [vmem:[#allocation11 + $0x2a0] sm:$0xff]
        %v4076 = vld [vmem:[#allocation11 + $0x2a8] sm:$0xff]
        %v4077 = vld [vmem:[#allocation11 + $0x2b0] sm:$0xff]
        %v4078 = vld [vmem:[#allocation11 + $0x2b8] sm:$0xff]
        %v4079 = vld [vmem:[#allocation11 + $0x2c0] sm:$0xff]
        %v4080 = vld [vmem:[#allocation11 + $0x2c8] sm:$0xff]
        %v4081 = vld [vmem:[#allocation11 + $0x2d0] sm:$0xff]
        %v4082 = vld [vmem:[#allocation11 + $0x2d8] sm:$0xff]
        %v4083 = vld [vmem:[#allocation11 + $0x2e0] sm:$0xff]
        %v4084 = vld [vmem:[#allocation11 + $0x2e8] sm:$0xff]
        %v4085 = vld [vmem:[#allocation11 + $0x2f0] sm:$0xff]
        %v4086 = vld [vmem:[#allocation11 + $0x2f8] sm:$0xff]
        %v4087 = vld [vmem:[#allocation11 + $0x300] sm:$0xff]
        %v4088 = vld [vmem:[#allocation11 + $0x308] sm:$0xff]
        %v4089 = vld [vmem:[#allocation11 + $0x310] sm:$0xff]
        %v4090 = vld [vmem:[#allocation11 + $0x318] sm:$0xff]
        %v4091 = vld [vmem:[#allocation11 + $0x320] sm:$0xff]
        %v4092 = vld [vmem:[#allocation11 + $0x328] sm:$0xff]
        %v4093 = vld [vmem:[#allocation11 + $0x330] sm:$0xff]
        %v4094 = vld [vmem:[#allocation11 + $0x338] sm:$0xff]
        %v4095 = vld [vmem:[#allocation11 + $0x340] sm:$0xff]
        %v4096 = vld [vmem:[#allocation11 + $0x348] sm:$0xff]
        %v4097 = vld [vmem:[#allocation11 + $0x350] sm:$0xff]
        %v4098 = vld [vmem:[#allocation11 + $0x358] sm:$0xff]
        %v4099 = vld [vmem:[#allocation11 + $0x360] sm:$0xff]
        %v4100 = vld [vmem:[#allocation11 + $0x368] sm:$0xff]
        %v4101 = vld [vmem:[#allocation11 + $0x370] sm:$0xff]
        %v4102 = vld [vmem:[#allocation11 + $0x378] sm:$0xff]
        %v4103 = vld [vmem:[#allocation11 + $0x380] sm:$0xff]
        %v4104 = vld [vmem:[#allocation11 + $0x388] sm:$0xff]
        %v4105 = vld [vmem:[#allocation11 + $0x390] sm:$0xff]
        %v4106 = vld [vmem:[#allocation11 + $0x398] sm:$0xff]
        %v4107 = vld [vmem:[#allocation11 + $0x3a0] sm:$0xff]
        %v4108 = vld [vmem:[#allocation11 + $0x3a8] sm:$0xff]
        %v4109 = vld [vmem:[#allocation11 + $0x3b0] sm:$0xff]
        %v4110 = vld [vmem:[#allocation11 + $0x3b8] sm:$0xff]
        %v4111 = vld [vmem:[#allocation11 + $0x3c0] sm:$0xff]
        %v4112 = vld [vmem:[#allocation11 + $0x3c8] sm:$0xff]
        %v4113 = vld [vmem:[#allocation11 + $0x3d0] sm:$0xff]
        %v4114 = vld [vmem:[#allocation11 + $0x3d8] sm:$0xff]
        %v4115 = vld [vmem:[#allocation11 + $0x3e0] sm:$0xff]
        %v4116 = vld [vmem:[#allocation11 + $0x3e8] sm:$0xff]
        %v4117 = vld [vmem:[#allocation11 + $0x3f0] sm:$0xff]
        %v4118 = vld [vmem:[#allocation11 + $0x3f8] sm:$0xff]
        %v4119 = vld [vmem:[#allocation11 + $0x400] sm:$0xff]
        %v4120 = vld [vmem:[#allocation11 + $0x408] sm:$0xff]
        %v4121 = vld [vmem:[#allocation11 + $0x410] sm:$0xff]
        %v4122 = vld [vmem:[#allocation11 + $0x418] sm:$0xff]
        %v4123 = vld [vmem:[#allocation11 + $0x420] sm:$0xff]
        %v4124 = vld [vmem:[#allocation11 + $0x428] sm:$0xff]
        %v4125 = vld [vmem:[#allocation11 + $0x430] sm:$0xff]
        %v4126 = vld [vmem:[#allocation11 + $0x438] sm:$0xff]
        %v4127 = vld [vmem:[#allocation11 + $0x440] sm:$0xff]
        %v4128 = vld [vmem:[#allocation11 + $0x448] sm:$0xff]
        %v4129 = vld [vmem:[#allocation11 + $0x450] sm:$0xff]
        %v4130 = vld [vmem:[#allocation11 + $0x458] sm:$0xff]
        %v4131 = vld [vmem:[#allocation11 + $0x460] sm:$0xff]
        %v4132 = vld [vmem:[#allocation11 + $0x468] sm:$0xff]
        %v4133 = vld [vmem:[#allocation11 + $0x470] sm:$0xff]
        %v4134 = vld [vmem:[#allocation11 + $0x478] sm:$0xff]
        %v4135 = vld [vmem:[#allocation11 + $0x480] sm:$0xff]
        %v4136 = vld [vmem:[#allocation11 + $0x488] sm:$0xff]
        %v4137 = vld [vmem:[#allocation11 + $0x490] sm:$0xff]
        %v4138 = vld [vmem:[#allocation11 + $0x498] sm:$0xff]
        %v4139 = vld [vmem:[#allocation11 + $0x4a0] sm:$0xff]
        %v4140 = vld [vmem:[#allocation11 + $0x4a8] sm:$0xff]
        %v4141 = vld [vmem:[#allocation11 + $0x4b0] sm:$0xff]
        %v4142 = vld [vmem:[#allocation11 + $0x4b8] sm:$0xff]
        %v4143 = vld [vmem:[#allocation11 + $0x4c0] sm:$0xff]
        %v4144 = vld [vmem:[#allocation11 + $0x4c8] sm:$0xff]
        %v4145 = vld [vmem:[#allocation11 + $0x4d0] sm:$0xff]
        %v4146 = vld [vmem:[#allocation11 + $0x4d8] sm:$0xff]
        %v4147 = vld [vmem:[#allocation11 + $0x4e0] sm:$0xff]
        %v4148 = vld [vmem:[#allocation11 + $0x4e8] sm:$0xff]
        %v4149 = vld [vmem:[#allocation11 + $0x4f0] sm:$0xff]
        %v4150 = vld [vmem:[#allocation11 + $0x4f8] sm:$0xff]
        %v4151 = vld [vmem:[#allocation11 + $0x500] sm:$0xff]
        %v4152 = vld [vmem:[#allocation11 + $0x508] sm:$0xff]
        %v4153 = vld [vmem:[#allocation11 + $0x510] sm:$0xff]
        %v4154 = vld [vmem:[#allocation11 + $0x518] sm:$0xff]
        %v4155 = vld [vmem:[#allocation11 + $0x520] sm:$0xff]
        %v4156 = vld [vmem:[#allocation11 + $0x528] sm:$0xff]
        %v4157 = vld [vmem:[#allocation11 + $0x530] sm:$0xff]
        %v4158 = vld [vmem:[#allocation11 + $0x538] sm:$0xff]
        %v4159 = vld [vmem:[#allocation11 + $0x540] sm:$0xff]
        %v4160 = vld [vmem:[#allocation11 + $0x548] sm:$0xff]
        %v4161 = vld [vmem:[#allocation11 + $0x550] sm:$0xff]
        %v4162 = vld [vmem:[#allocation11 + $0x558] sm:$0xff]
        %v4163 = vld [vmem:[#allocation11 + $0x560] sm:$0xff]
        %v4164 = vld [vmem:[#allocation11 + $0x568] sm:$0xff]
        %v4165 = vld [vmem:[#allocation11 + $0x570] sm:$0xff]
        %v4166 = vld [vmem:[#allocation11 + $0x578] sm:$0xff]
        %v4167 = vld [vmem:[#allocation11 + $0x580] sm:$0xff]
        %v4168 = vld [vmem:[#allocation11 + $0x588] sm:$0xff]
        %v4169 = vld [vmem:[#allocation11 + $0x590] sm:$0xff]
        %v4170 = vld [vmem:[#allocation11 + $0x598] sm:$0xff]
        %v4171 = vld [vmem:[#allocation11 + $0x5a0] sm:$0xff]
        %v4172 = vld [vmem:[#allocation11 + $0x5a8] sm:$0xff]
        %v4173 = vld [vmem:[#allocation11 + $0x5b0] sm:$0xff]
        %v4174 = vld [vmem:[#allocation11 + $0x5b8] sm:$0xff]
        %v4175 = vld [vmem:[#allocation11 + $0x5c0] sm:$0xff]
        %v4176 = vld [vmem:[#allocation11 + $0x5c8] sm:$0xff]
        %v4177 = vld [vmem:[#allocation11 + $0x5d0] sm:$0xff]
        %v4178 = vld [vmem:[#allocation11 + $0x5d8] sm:$0xff]
        %v4179 = vld [vmem:[#allocation11 + $0x5e0] sm:$0xff]
        %v4180 = vld [vmem:[#allocation11 + $0x5e8] sm:$0xff]
        %v4181 = vld [vmem:[#allocation11 + $0x5f0] sm:$0xff]
        %v4182 = vld [vmem:[#allocation11 + $0x5f8] sm:$0xff]
        %v4183 = vld [vmem:[#allocation11 + $0x600] sm:$0xff]
        %v4184 = vld [vmem:[#allocation11 + $0x608] sm:$0xff]
        %v4185 = vld [vmem:[#allocation11 + $0x610] sm:$0xff]
        %v4186 = vld [vmem:[#allocation11 + $0x618] sm:$0xff]
        %v4187 = vld [vmem:[#allocation11 + $0x620] sm:$0xff]
        %v4188 = vld [vmem:[#allocation11 + $0x628] sm:$0xff]
        %v4189 = vld [vmem:[#allocation11 + $0x630] sm:$0xff]
        %v4190 = vld [vmem:[#allocation11 + $0x638] sm:$0xff]
        %v4191 = vld [vmem:[#allocation11 + $0x640] sm:$0xff]
        %v4192 = vld [vmem:[#allocation11 + $0x648] sm:$0xff]
        %v4193 = vld [vmem:[#allocation11 + $0x650] sm:$0xff]
        %v4194 = vld [vmem:[#allocation11 + $0x658] sm:$0xff]
        %v4195 = vld [vmem:[#allocation11 + $0x660] sm:$0xff]
        %v4196 = vld [vmem:[#allocation11 + $0x668] sm:$0xff]
        %v4197 = vld [vmem:[#allocation11 + $0x670] sm:$0xff]
        %v4198 = vld [vmem:[#allocation11 + $0x678] sm:$0xff]
        %v4199 = vld [vmem:[#allocation11 + $0x680] sm:$0xff]
        %v4200 = vld [vmem:[#allocation11 + $0x688] sm:$0xff]
        %v4201 = vld [vmem:[#allocation11 + $0x690] sm:$0xff]
        %v4202 = vld [vmem:[#allocation11 + $0x698] sm:$0xff]
        %v4203 = vld [vmem:[#allocation11 + $0x6a0] sm:$0xff]
        %v4204 = vld [vmem:[#allocation11 + $0x6a8] sm:$0xff]
        %v4205 = vld [vmem:[#allocation11 + $0x6b0] sm:$0xff]
        %v4206 = vld [vmem:[#allocation11 + $0x6b8] sm:$0xff]
        %v4207 = vld [vmem:[#allocation11 + $0x6c0] sm:$0xff]
        %v4208 = vld [vmem:[#allocation11 + $0x6c8] sm:$0xff]
        %v4209 = vld [vmem:[#allocation11 + $0x6d0] sm:$0xff]
        %v4210 = vld [vmem:[#allocation11 + $0x6d8] sm:$0xff]
        %v4211 = vld [vmem:[#allocation11 + $0x6e0] sm:$0xff]
        %v4212 = vld [vmem:[#allocation11 + $0x6e8] sm:$0xff]
        %v4213 = vld [vmem:[#allocation11 + $0x6f0] sm:$0xff]
        %v4214 = vld [vmem:[#allocation11 + $0x6f8] sm:$0xff]
        %v4215 = vld [vmem:[#allocation11 + $0x700] sm:$0xff]
        %v4216 = vld [vmem:[#allocation11 + $0x708] sm:$0xff]
        %v4217 = vld [vmem:[#allocation11 + $0x710] sm:$0xff]
        %v4218 = vld [vmem:[#allocation11 + $0x718] sm:$0xff]
        %v4219 = vld [vmem:[#allocation11 + $0x720] sm:$0xff]
        %v4220 = vld [vmem:[#allocation11 + $0x728] sm:$0xff]
        %v4221 = vld [vmem:[#allocation11 + $0x730] sm:$0xff]
        %v4222 = vld [vmem:[#allocation11 + $0x738] sm:$0xff]
        %v4223 = vld [vmem:[#allocation11 + $0x740] sm:$0xff]
        %v4224 = vld [vmem:[#allocation11 + $0x748] sm:$0xff]
        %v4225 = vld [vmem:[#allocation11 + $0x750] sm:$0xff]
        %v4226 = vld [vmem:[#allocation11 + $0x758] sm:$0xff]
        %v4227 = vld [vmem:[#allocation11 + $0x760] sm:$0xff]
        %v4228 = vld [vmem:[#allocation11 + $0x768] sm:$0xff]
        %v4229 = vld [vmem:[#allocation11 + $0x770] sm:$0xff]
        %v4230 = vld [vmem:[#allocation11 + $0x778] sm:$0xff]
        %v4231 = vld [vmem:[#allocation11 + $0x780] sm:$0xff]
        %v4232 = vld [vmem:[#allocation11 + $0x788] sm:$0xff]
        %v4233 = vld [vmem:[#allocation11 + $0x790] sm:$0xff]
        %v4234 = vld [vmem:[#allocation11 + $0x798] sm:$0xff]
        %v4235 = vld [vmem:[#allocation11 + $0x7a0] sm:$0xff]
        %v4236 = vld [vmem:[#allocation11 + $0x7a8] sm:$0xff]
        %v4237 = vld [vmem:[#allocation11 + $0x7b0] sm:$0xff]
        %v4238 = vld [vmem:[#allocation11 + $0x7b8] sm:$0xff]
        %v4239 = vld [vmem:[#allocation11 + $0x7c0] sm:$0xff]
        %v4240 = vld [vmem:[#allocation11 + $0x7c8] sm:$0xff]
        %v4241 = vld [vmem:[#allocation11 + $0x7d0] sm:$0xff]
        %v4242 = vld [vmem:[#allocation11 + $0x7d8] sm:$0xff]
        %v4243 = vld [vmem:[#allocation11 + $0x7e0] sm:$0xff]
        %v4244 = vld [vmem:[#allocation11 + $0x7e8] sm:$0xff]
        %v4245 = vld [vmem:[#allocation11 + $0x7f0] sm:$0xff]
        %v4246 = vld [vmem:[#allocation11 + $0x7f8] sm:$0xff]
        %v4503 = vunpack.c.l.b16 %v3991
        %v4504 = vunpack.c.h.b16 %v3991
        %v4505 = vunpack.c.l.b16 %v3992
        %v4506 = vunpack.c.h.b16 %v3992
        %v4507 = vunpack.c.l.b16 %v3993
        %v4508 = vunpack.c.h.b16 %v3993
        %v4509 = vunpack.c.l.b16 %v3994
        %v4510 = vunpack.c.h.b16 %v3994
        %v4511 = vunpack.c.l.b16 %v3995
        %v4512 = vunpack.c.h.b16 %v3995
        %v4513 = vunpack.c.l.b16 %v3996
        %v4514 = vunpack.c.h.b16 %v3996
        %v4515 = vunpack.c.l.b16 %v3997
        %v4516 = vunpack.c.h.b16 %v3997
        %v4517 = vunpack.c.l.b16 %v3998
        %v4518 = vunpack.c.h.b16 %v3998
        %v4519 = vunpack.c.l.b16 %v3999
        %v4520 = vunpack.c.h.b16 %v3999
        %v4521 = vunpack.c.l.b16 %v4000
        %v4522 = vunpack.c.h.b16 %v4000
        %v4523 = vunpack.c.l.b16 %v4001
        %v4524 = vunpack.c.h.b16 %v4001
        %v4525 = vunpack.c.l.b16 %v4002
        %v4526 = vunpack.c.h.b16 %v4002
        %v4527 = vunpack.c.l.b16 %v4003
        %v4528 = vunpack.c.h.b16 %v4003
        %v4529 = vunpack.c.l.b16 %v4004
        %v4530 = vunpack.c.h.b16 %v4004
        %v4531 = vunpack.c.l.b16 %v4005
        %v4532 = vunpack.c.h.b16 %v4005
        %v4533 = vunpack.c.l.b16 %v4006
        %v4534 = vunpack.c.h.b16 %v4006
        %v4535 = vunpack.c.l.b16 %v4007
        %v4536 = vunpack.c.h.b16 %v4007
        %v4537 = vunpack.c.l.b16 %v4008
        %v4538 = vunpack.c.h.b16 %v4008
        %v4539 = vunpack.c.l.b16 %v4009
        %v4540 = vunpack.c.h.b16 %v4009
        %v4541 = vunpack.c.l.b16 %v4010
        %v4542 = vunpack.c.h.b16 %v4010
        %v4543 = vunpack.c.l.b16 %v4011
        %v4544 = vunpack.c.h.b16 %v4011
        %v4545 = vunpack.c.l.b16 %v4012
        %v4546 = vunpack.c.h.b16 %v4012
        %v4547 = vunpack.c.l.b16 %v4013
        %v4548 = vunpack.c.h.b16 %v4013
        %v4549 = vunpack.c.l.b16 %v4014
        %v4550 = vunpack.c.h.b16 %v4014
        %v4551 = vunpack.c.l.b16 %v4015
        %v4552 = vunpack.c.h.b16 %v4015
        %v4553 = vunpack.c.l.b16 %v4016
        %v4554 = vunpack.c.h.b16 %v4016
        %v4555 = vunpack.c.l.b16 %v4017
        %v4556 = vunpack.c.h.b16 %v4017
        %v4557 = vunpack.c.l.b16 %v4018
        %v4558 = vunpack.c.h.b16 %v4018
        %v4559 = vunpack.c.l.b16 %v4019
        %v4560 = vunpack.c.h.b16 %v4019
        %v4561 = vunpack.c.l.b16 %v4020
        %v4562 = vunpack.c.h.b16 %v4020
        %v4563 = vunpack.c.l.b16 %v4021
        %v4564 = vunpack.c.h.b16 %v4021
        %v4565 = vunpack.c.l.b16 %v4022
        %v4566 = vunpack.c.h.b16 %v4022
        %v4567 = vunpack.c.l.b16 %v4023
        %v4568 = vunpack.c.h.b16 %v4023
        %v4569 = vunpack.c.l.b16 %v4024
        %v4570 = vunpack.c.h.b16 %v4024
        %v4571 = vunpack.c.l.b16 %v4025
        %v4572 = vunpack.c.h.b16 %v4025
        %v4573 = vunpack.c.l.b16 %v4026
        %v4574 = vunpack.c.h.b16 %v4026
        %v4575 = vunpack.c.l.b16 %v4027
        %v4576 = vunpack.c.h.b16 %v4027
        %v4577 = vunpack.c.l.b16 %v4028
        %v4578 = vunpack.c.h.b16 %v4028
        %v4579 = vunpack.c.l.b16 %v4029
        %v4580 = vunpack.c.h.b16 %v4029
        %v4581 = vunpack.c.l.b16 %v4030
        %v4582 = vunpack.c.h.b16 %v4030
        %v4583 = vunpack.c.l.b16 %v4031
        %v4584 = vunpack.c.h.b16 %v4031
        %v4585 = vunpack.c.l.b16 %v4032
        %v4586 = vunpack.c.h.b16 %v4032
        %v4587 = vunpack.c.l.b16 %v4033
        %v4588 = vunpack.c.h.b16 %v4033
        %v4589 = vunpack.c.l.b16 %v4034
        %v4590 = vunpack.c.h.b16 %v4034
        %v4591 = vunpack.c.l.b16 %v4035
        %v4592 = vunpack.c.h.b16 %v4035
        %v4593 = vunpack.c.l.b16 %v4036
        %v4594 = vunpack.c.h.b16 %v4036
        %v4595 = vunpack.c.l.b16 %v4037
        %v4596 = vunpack.c.h.b16 %v4037
        %v4597 = vunpack.c.l.b16 %v4038
        %v4598 = vunpack.c.h.b16 %v4038
        %v4599 = vunpack.c.l.b16 %v4039
        %v4600 = vunpack.c.h.b16 %v4039
        %v4601 = vunpack.c.l.b16 %v4040
        %v4602 = vunpack.c.h.b16 %v4040
        %v4603 = vunpack.c.l.b16 %v4041
        %v4604 = vunpack.c.h.b16 %v4041
        %v4605 = vunpack.c.l.b16 %v4042
        %v4606 = vunpack.c.h.b16 %v4042
        %v4607 = vunpack.c.l.b16 %v4043
        %v4608 = vunpack.c.h.b16 %v4043
        %v4609 = vunpack.c.l.b16 %v4044
        %v4610 = vunpack.c.h.b16 %v4044
        %v4611 = vunpack.c.l.b16 %v4045
        %v4612 = vunpack.c.h.b16 %v4045
        %v4613 = vunpack.c.l.b16 %v4046
        %v4614 = vunpack.c.h.b16 %v4046
        %v4615 = vunpack.c.l.b16 %v4047
        %v4616 = vunpack.c.h.b16 %v4047
        %v4617 = vunpack.c.l.b16 %v4048
        %v4618 = vunpack.c.h.b16 %v4048
        %v4619 = vunpack.c.l.b16 %v4049
        %v4620 = vunpack.c.h.b16 %v4049
        %v4621 = vunpack.c.l.b16 %v4050
        %v4622 = vunpack.c.h.b16 %v4050
        %v4623 = vunpack.c.l.b16 %v4051
        %v4624 = vunpack.c.h.b16 %v4051
        %v4625 = vunpack.c.l.b16 %v4052
        %v4626 = vunpack.c.h.b16 %v4052
        %v4627 = vunpack.c.l.b16 %v4053
        %v4628 = vunpack.c.h.b16 %v4053
        %v4629 = vunpack.c.l.b16 %v4054
        %v4630 = vunpack.c.h.b16 %v4054
        %v4631 = vunpack.c.l.b16 %v4055
        %v4632 = vunpack.c.h.b16 %v4055
        %v4633 = vunpack.c.l.b16 %v4056
        %v4634 = vunpack.c.h.b16 %v4056
        %v4635 = vunpack.c.l.b16 %v4057
        %v4636 = vunpack.c.h.b16 %v4057
        %v4637 = vunpack.c.l.b16 %v4058
        %v4638 = vunpack.c.h.b16 %v4058
        %v4639 = vunpack.c.l.b16 %v4059
        %v4640 = vunpack.c.h.b16 %v4059
        %v4641 = vunpack.c.l.b16 %v4060
        %v4642 = vunpack.c.h.b16 %v4060
        %v4643 = vunpack.c.l.b16 %v4061
        %v4644 = vunpack.c.h.b16 %v4061
        %v4645 = vunpack.c.l.b16 %v4062
        %v4646 = vunpack.c.h.b16 %v4062
        %v4647 = vunpack.c.l.b16 %v4063
        %v4648 = vunpack.c.h.b16 %v4063
        %v4649 = vunpack.c.l.b16 %v4064
        %v4650 = vunpack.c.h.b16 %v4064
        %v4651 = vunpack.c.l.b16 %v4065
        %v4652 = vunpack.c.h.b16 %v4065
        %v4653 = vunpack.c.l.b16 %v4066
        %v4654 = vunpack.c.h.b16 %v4066
        %v4655 = vunpack.c.l.b16 %v4067
        %v4656 = vunpack.c.h.b16 %v4067
        %v4657 = vunpack.c.l.b16 %v4068
        %v4658 = vunpack.c.h.b16 %v4068
        %v4659 = vunpack.c.l.b16 %v4069
        %v4660 = vunpack.c.h.b16 %v4069
        %v4661 = vunpack.c.l.b16 %v4070
        %v4662 = vunpack.c.h.b16 %v4070
        %v4663 = vunpack.c.l.b16 %v4071
        %v4664 = vunpack.c.h.b16 %v4071
        %v4665 = vunpack.c.l.b16 %v4072
        %v4666 = vunpack.c.h.b16 %v4072
        %v4667 = vunpack.c.l.b16 %v4073
        %v4668 = vunpack.c.h.b16 %v4073
        %v4669 = vunpack.c.l.b16 %v4074
        %v4670 = vunpack.c.h.b16 %v4074
        %v4671 = vunpack.c.l.b16 %v4075
        %v4672 = vunpack.c.h.b16 %v4075
        %v4673 = vunpack.c.l.b16 %v4076
        %v4674 = vunpack.c.h.b16 %v4076
        %v4675 = vunpack.c.l.b16 %v4077
        %v4676 = vunpack.c.h.b16 %v4077
        %v4677 = vunpack.c.l.b16 %v4078
        %v4678 = vunpack.c.h.b16 %v4078
        %v4679 = vunpack.c.l.b16 %v4079
        %v4680 = vunpack.c.h.b16 %v4079
        %v4681 = vunpack.c.l.b16 %v4080
        %v4682 = vunpack.c.h.b16 %v4080
        %v4683 = vunpack.c.l.b16 %v4081
        %v4684 = vunpack.c.h.b16 %v4081
        %v4685 = vunpack.c.l.b16 %v4082
        %v4686 = vunpack.c.h.b16 %v4082
        %v4687 = vunpack.c.l.b16 %v4083
        %v4688 = vunpack.c.h.b16 %v4083
        %v4689 = vunpack.c.l.b16 %v4084
        %v4690 = vunpack.c.h.b16 %v4084
        %v4691 = vunpack.c.l.b16 %v4085
        %v4692 = vunpack.c.h.b16 %v4085
        %v4693 = vunpack.c.l.b16 %v4086
        %v4694 = vunpack.c.h.b16 %v4086
        %v4695 = vunpack.c.l.b16 %v4087
        %v4696 = vunpack.c.h.b16 %v4087
        %v4697 = vunpack.c.l.b16 %v4088
        %v4698 = vunpack.c.h.b16 %v4088
        %v4699 = vunpack.c.l.b16 %v4089
        %v4700 = vunpack.c.h.b16 %v4089
        %v4701 = vunpack.c.l.b16 %v4090
        %v4702 = vunpack.c.h.b16 %v4090
        %v4703 = vunpack.c.l.b16 %v4091
        %v4704 = vunpack.c.h.b16 %v4091
        %v4705 = vunpack.c.l.b16 %v4092
        %v4706 = vunpack.c.h.b16 %v4092
        %v4707 = vunpack.c.l.b16 %v4093
        %v4708 = vunpack.c.h.b16 %v4093
        %v4709 = vunpack.c.l.b16 %v4094
        %v4710 = vunpack.c.h.b16 %v4094
        %v4711 = vunpack.c.l.b16 %v4095
        %v4712 = vunpack.c.h.b16 %v4095
        %v4713 = vunpack.c.l.b16 %v4096
        %v4714 = vunpack.c.h.b16 %v4096
        %v4715 = vunpack.c.l.b16 %v4097
        %v4716 = vunpack.c.h.b16 %v4097
        %v4717 = vunpack.c.l.b16 %v4098
        %v4718 = vunpack.c.h.b16 %v4098
        %v4719 = vunpack.c.l.b16 %v4099
        %v4720 = vunpack.c.h.b16 %v4099
        %v4721 = vunpack.c.l.b16 %v4100
        %v4722 = vunpack.c.h.b16 %v4100
        %v4723 = vunpack.c.l.b16 %v4101
        %v4724 = vunpack.c.h.b16 %v4101
        %v4725 = vunpack.c.l.b16 %v4102
        %v4726 = vunpack.c.h.b16 %v4102
        %v4727 = vunpack.c.l.b16 %v4103
        %v4728 = vunpack.c.h.b16 %v4103
        %v4729 = vunpack.c.l.b16 %v4104
        %v4730 = vunpack.c.h.b16 %v4104
        %v4731 = vunpack.c.l.b16 %v4105
        %v4732 = vunpack.c.h.b16 %v4105
        %v4733 = vunpack.c.l.b16 %v4106
        %v4734 = vunpack.c.h.b16 %v4106
        %v4735 = vunpack.c.l.b16 %v4107
        %v4736 = vunpack.c.h.b16 %v4107
        %v4737 = vunpack.c.l.b16 %v4108
        %v4738 = vunpack.c.h.b16 %v4108
        %v4739 = vunpack.c.l.b16 %v4109
        %v4740 = vunpack.c.h.b16 %v4109
        %v4741 = vunpack.c.l.b16 %v4110
        %v4742 = vunpack.c.h.b16 %v4110
        %v4743 = vunpack.c.l.b16 %v4111
        %v4744 = vunpack.c.h.b16 %v4111
        %v4745 = vunpack.c.l.b16 %v4112
        %v4746 = vunpack.c.h.b16 %v4112
        %v4747 = vunpack.c.l.b16 %v4113
        %v4748 = vunpack.c.h.b16 %v4113
        %v4749 = vunpack.c.l.b16 %v4114
        %v4750 = vunpack.c.h.b16 %v4114
        %v4751 = vunpack.c.l.b16 %v4115
        %v4752 = vunpack.c.h.b16 %v4115
        %v4753 = vunpack.c.l.b16 %v4116
        %v4754 = vunpack.c.h.b16 %v4116
        %v4755 = vunpack.c.l.b16 %v4117
        %v4756 = vunpack.c.h.b16 %v4117
        %v4757 = vunpack.c.l.b16 %v4118
        %v4758 = vunpack.c.h.b16 %v4118
        %v4759 = vunpack.c.l.b16 %v4119
        %v4760 = vunpack.c.h.b16 %v4119
        %v4761 = vunpack.c.l.b16 %v4120
        %v4762 = vunpack.c.h.b16 %v4120
        %v4763 = vunpack.c.l.b16 %v4121
        %v4764 = vunpack.c.h.b16 %v4121
        %v4765 = vunpack.c.l.b16 %v4122
        %v4766 = vunpack.c.h.b16 %v4122
        %v4767 = vunpack.c.l.b16 %v4123
        %v4768 = vunpack.c.h.b16 %v4123
        %v4769 = vunpack.c.l.b16 %v4124
        %v4770 = vunpack.c.h.b16 %v4124
        %v4771 = vunpack.c.l.b16 %v4125
        %v4772 = vunpack.c.h.b16 %v4125
        %v4773 = vunpack.c.l.b16 %v4126
        %v4774 = vunpack.c.h.b16 %v4126
        %v4775 = vunpack.c.l.b16 %v4127
        %v4776 = vunpack.c.h.b16 %v4127
        %v4777 = vunpack.c.l.b16 %v4128
        %v4778 = vunpack.c.h.b16 %v4128
        %v4779 = vunpack.c.l.b16 %v4129
        %v4780 = vunpack.c.h.b16 %v4129
        %v4781 = vunpack.c.l.b16 %v4130
        %v4782 = vunpack.c.h.b16 %v4130
        %v4783 = vunpack.c.l.b16 %v4131
        %v4784 = vunpack.c.h.b16 %v4131
        %v4785 = vunpack.c.l.b16 %v4132
        %v4786 = vunpack.c.h.b16 %v4132
        %v4787 = vunpack.c.l.b16 %v4133
        %v4788 = vunpack.c.h.b16 %v4133
        %v4789 = vunpack.c.l.b16 %v4134
        %v4790 = vunpack.c.h.b16 %v4134
        %v4791 = vunpack.c.l.b16 %v4135
        %v4792 = vunpack.c.h.b16 %v4135
        %v4793 = vunpack.c.l.b16 %v4136
        %v4794 = vunpack.c.h.b16 %v4136
        %v4795 = vunpack.c.l.b16 %v4137
        %v4796 = vunpack.c.h.b16 %v4137
        %v4797 = vunpack.c.l.b16 %v4138
        %v4798 = vunpack.c.h.b16 %v4138
        %v4799 = vunpack.c.l.b16 %v4139
        %v4800 = vunpack.c.h.b16 %v4139
        %v4801 = vunpack.c.l.b16 %v4140
        %v4802 = vunpack.c.h.b16 %v4140
        %v4803 = vunpack.c.l.b16 %v4141
        %v4804 = vunpack.c.h.b16 %v4141
        %v4805 = vunpack.c.l.b16 %v4142
        %v4806 = vunpack.c.h.b16 %v4142
        %v4807 = vunpack.c.l.b16 %v4143
        %v4808 = vunpack.c.h.b16 %v4143
        %v4809 = vunpack.c.l.b16 %v4144
        %v4810 = vunpack.c.h.b16 %v4144
        %v4811 = vunpack.c.l.b16 %v4145
        %v4812 = vunpack.c.h.b16 %v4145
        %v4813 = vunpack.c.l.b16 %v4146
        %v4814 = vunpack.c.h.b16 %v4146
        %v4815 = vunpack.c.l.b16 %v4147
        %v4816 = vunpack.c.h.b16 %v4147
        %v4817 = vunpack.c.l.b16 %v4148
        %v4818 = vunpack.c.h.b16 %v4148
        %v4819 = vunpack.c.l.b16 %v4149
        %v4820 = vunpack.c.h.b16 %v4149
        %v4821 = vunpack.c.l.b16 %v4150
        %v4822 = vunpack.c.h.b16 %v4150
        %v4823 = vunpack.c.l.b16 %v4151
        %v4824 = vunpack.c.h.b16 %v4151
        %v4825 = vunpack.c.l.b16 %v4152
        %v4826 = vunpack.c.h.b16 %v4152
        %v4827 = vunpack.c.l.b16 %v4153
        %v4828 = vunpack.c.h.b16 %v4153
        %v4829 = vunpack.c.l.b16 %v4154
        %v4830 = vunpack.c.h.b16 %v4154
        %v4831 = vunpack.c.l.b16 %v4155
        %v4832 = vunpack.c.h.b16 %v4155
        %v4833 = vunpack.c.l.b16 %v4156
        %v4834 = vunpack.c.h.b16 %v4156
        %v4835 = vunpack.c.l.b16 %v4157
        %v4836 = vunpack.c.h.b16 %v4157
        %v4837 = vunpack.c.l.b16 %v4158
        %v4838 = vunpack.c.h.b16 %v4158
        %v4839 = vunpack.c.l.b16 %v4159
        %v4840 = vunpack.c.h.b16 %v4159
        %v4841 = vunpack.c.l.b16 %v4160
        %v4842 = vunpack.c.h.b16 %v4160
        %v4843 = vunpack.c.l.b16 %v4161
        %v4844 = vunpack.c.h.b16 %v4161
        %v4845 = vunpack.c.l.b16 %v4162
        %v4846 = vunpack.c.h.b16 %v4162
        %v4847 = vunpack.c.l.b16 %v4163
        %v4848 = vunpack.c.h.b16 %v4163
        %v4849 = vunpack.c.l.b16 %v4164
        %v4850 = vunpack.c.h.b16 %v4164
        %v4851 = vunpack.c.l.b16 %v4165
        %v4852 = vunpack.c.h.b16 %v4165
        %v4853 = vunpack.c.l.b16 %v4166
        %v4854 = vunpack.c.h.b16 %v4166
        %v4855 = vunpack.c.l.b16 %v4167
        %v4856 = vunpack.c.h.b16 %v4167
        %v4857 = vunpack.c.l.b16 %v4168
        %v4858 = vunpack.c.h.b16 %v4168
        %v4859 = vunpack.c.l.b16 %v4169
        %v4860 = vunpack.c.h.b16 %v4169
        %v4861 = vunpack.c.l.b16 %v4170
        %v4862 = vunpack.c.h.b16 %v4170
        %v4863 = vunpack.c.l.b16 %v4171
        %v4864 = vunpack.c.h.b16 %v4171
        %v4865 = vunpack.c.l.b16 %v4172
        %v4866 = vunpack.c.h.b16 %v4172
        %v4867 = vunpack.c.l.b16 %v4173
        %v4868 = vunpack.c.h.b16 %v4173
        %v4869 = vunpack.c.l.b16 %v4174
        %v4870 = vunpack.c.h.b16 %v4174
        %v4871 = vunpack.c.l.b16 %v4175
        %v4872 = vunpack.c.h.b16 %v4175
        %v4873 = vunpack.c.l.b16 %v4176
        %v4874 = vunpack.c.h.b16 %v4176
        %v4875 = vunpack.c.l.b16 %v4177
        %v4876 = vunpack.c.h.b16 %v4177
        %v4877 = vunpack.c.l.b16 %v4178
        %v4878 = vunpack.c.h.b16 %v4178
        %v4879 = vunpack.c.l.b16 %v4179
        %v4880 = vunpack.c.h.b16 %v4179
        %v4881 = vunpack.c.l.b16 %v4180
        %v4882 = vunpack.c.h.b16 %v4180
        %v4883 = vunpack.c.l.b16 %v4181
        %v4884 = vunpack.c.h.b16 %v4181
        %v4885 = vunpack.c.l.b16 %v4182
        %v4886 = vunpack.c.h.b16 %v4182
        %v4887 = vunpack.c.l.b16 %v4183
        %v4888 = vunpack.c.h.b16 %v4183
        %v4889 = vunpack.c.l.b16 %v4184
        %v4890 = vunpack.c.h.b16 %v4184
        %v4891 = vunpack.c.l.b16 %v4185
        %v4892 = vunpack.c.h.b16 %v4185
        %v4893 = vunpack.c.l.b16 %v4186
        %v4894 = vunpack.c.h.b16 %v4186
        %v4895 = vunpack.c.l.b16 %v4187
        %v4896 = vunpack.c.h.b16 %v4187
        %v4897 = vunpack.c.l.b16 %v4188
        %v4898 = vunpack.c.h.b16 %v4188
        %v4899 = vunpack.c.l.b16 %v4189
        %v4900 = vunpack.c.h.b16 %v4189
        %v4901 = vunpack.c.l.b16 %v4190
        %v4902 = vunpack.c.h.b16 %v4190
        %v4903 = vunpack.c.l.b16 %v4191
        %v4904 = vunpack.c.h.b16 %v4191
        %v4905 = vunpack.c.l.b16 %v4192
        %v4906 = vunpack.c.h.b16 %v4192
        %v4907 = vunpack.c.l.b16 %v4193
        %v4908 = vunpack.c.h.b16 %v4193
        %v4909 = vunpack.c.l.b16 %v4194
        %v4910 = vunpack.c.h.b16 %v4194
        %v4911 = vunpack.c.l.b16 %v4195
        %v4912 = vunpack.c.h.b16 %v4195
        %v4913 = vunpack.c.l.b16 %v4196
        %v4914 = vunpack.c.h.b16 %v4196
        %v4915 = vunpack.c.l.b16 %v4197
        %v4916 = vunpack.c.h.b16 %v4197
        %v4917 = vunpack.c.l.b16 %v4198
        %v4918 = vunpack.c.h.b16 %v4198
        %v4919 = vunpack.c.l.b16 %v4199
        %v4920 = vunpack.c.h.b16 %v4199
        %v4921 = vunpack.c.l.b16 %v4200
        %v4922 = vunpack.c.h.b16 %v4200
        %v4923 = vunpack.c.l.b16 %v4201
        %v4924 = vunpack.c.h.b16 %v4201
        %v4925 = vunpack.c.l.b16 %v4202
        %v4926 = vunpack.c.h.b16 %v4202
        %v4927 = vunpack.c.l.b16 %v4203
        %v4928 = vunpack.c.h.b16 %v4203
        %v4929 = vunpack.c.l.b16 %v4204
        %v4930 = vunpack.c.h.b16 %v4204
        %v4931 = vunpack.c.l.b16 %v4205
        %v4932 = vunpack.c.h.b16 %v4205
        %v4933 = vunpack.c.l.b16 %v4206
        %v4934 = vunpack.c.h.b16 %v4206
        %v4935 = vunpack.c.l.b16 %v4207
        %v4936 = vunpack.c.h.b16 %v4207
        %v4937 = vunpack.c.l.b16 %v4208
        %v4938 = vunpack.c.h.b16 %v4208
        %v4939 = vunpack.c.l.b16 %v4209
        %v4940 = vunpack.c.h.b16 %v4209
        %v4941 = vunpack.c.l.b16 %v4210
        %v4942 = vunpack.c.h.b16 %v4210
        %v4943 = vunpack.c.l.b16 %v4211
        %v4944 = vunpack.c.h.b16 %v4211
        %v4945 = vunpack.c.l.b16 %v4212
        %v4946 = vunpack.c.h.b16 %v4212
        %v4947 = vunpack.c.l.b16 %v4213
        %v4948 = vunpack.c.h.b16 %v4213
        %v4949 = vunpack.c.l.b16 %v4214
        %v4950 = vunpack.c.h.b16 %v4214
        %v4951 = vunpack.c.l.b16 %v4215
        %v4952 = vunpack.c.h.b16 %v4215
        %v4953 = vunpack.c.l.b16 %v4216
        %v4954 = vunpack.c.h.b16 %v4216
        %v4955 = vunpack.c.l.b16 %v4217
        %v4956 = vunpack.c.h.b16 %v4217
        %v4957 = vunpack.c.l.b16 %v4218
        %v4958 = vunpack.c.h.b16 %v4218
        %v4959 = vunpack.c.l.b16 %v4219
        %v4960 = vunpack.c.h.b16 %v4219
        %v4961 = vunpack.c.l.b16 %v4220
        %v4962 = vunpack.c.h.b16 %v4220
        %v4963 = vunpack.c.l.b16 %v4221
        %v4964 = vunpack.c.h.b16 %v4221
        %v4965 = vunpack.c.l.b16 %v4222
        %v4966 = vunpack.c.h.b16 %v4222
        %v4967 = vunpack.c.l.b16 %v4223
        %v4968 = vunpack.c.h.b16 %v4223
        %v4969 = vunpack.c.l.b16 %v4224
        %v4970 = vunpack.c.h.b16 %v4224
        %v4971 = vunpack.c.l.b16 %v4225
        %v4972 = vunpack.c.h.b16 %v4225
        %v4973 = vunpack.c.l.b16 %v4226
        %v4974 = vunpack.c.h.b16 %v4226
        %v4975 = vunpack.c.l.b16 %v4227
        %v4976 = vunpack.c.h.b16 %v4227
        %v4977 = vunpack.c.l.b16 %v4228
        %v4978 = vunpack.c.h.b16 %v4228
        %v4979 = vunpack.c.l.b16 %v4229
        %v4980 = vunpack.c.h.b16 %v4229
        %v4981 = vunpack.c.l.b16 %v4230
        %v4982 = vunpack.c.h.b16 %v4230
        %v4983 = vunpack.c.l.b16 %v4231
        %v4984 = vunpack.c.h.b16 %v4231
        %v4985 = vunpack.c.l.b16 %v4232
        %v4986 = vunpack.c.h.b16 %v4232
        %v4987 = vunpack.c.l.b16 %v4233
        %v4988 = vunpack.c.h.b16 %v4233
        %v4989 = vunpack.c.l.b16 %v4234
        %v4990 = vunpack.c.h.b16 %v4234
        %v4991 = vunpack.c.l.b16 %v4235
        %v4992 = vunpack.c.h.b16 %v4235
        %v4993 = vunpack.c.l.b16 %v4236
        %v4994 = vunpack.c.h.b16 %v4236
        %v4995 = vunpack.c.l.b16 %v4237
        %v4996 = vunpack.c.h.b16 %v4237
        %v4997 = vunpack.c.l.b16 %v4238
        %v4998 = vunpack.c.h.b16 %v4238
        %v4999 = vunpack.c.l.b16 %v4239
        %v5000 = vunpack.c.h.b16 %v4239
        %v5001 = vunpack.c.l.b16 %v4240
        %v5002 = vunpack.c.h.b16 %v4240
        %v5003 = vunpack.c.l.b16 %v4241
        %v5004 = vunpack.c.h.b16 %v4241
        %v5005 = vunpack.c.l.b16 %v4242
        %v5006 = vunpack.c.h.b16 %v4242
        %v5007 = vunpack.c.l.b16 %v4243
        %v5008 = vunpack.c.h.b16 %v4243
        %v5009 = vunpack.c.l.b16 %v4244
        %v5010 = vunpack.c.h.b16 %v4244
        %v5011 = vunpack.c.l.b16 %v4245
        %v5012 = vunpack.c.h.b16 %v4245
        %v5013 = vunpack.c.l.b16 %v4246
        %v5014 = vunpack.c.h.b16 %v4246
        %v5015 = vpack.c.b16 %v4507, %v4503
        %v5016 = vpack.c.b16 %v4508, %v4504
        %v5017 = vpack.c.b16 %v4509, %v4505
        %v5018 = vpack.c.b16 %v4510, %v4506
        %v5019 = vpack.c.b16 %v4515, %v4511
        %v5020 = vpack.c.b16 %v4516, %v4512
        %v5021 = vpack.c.b16 %v4517, %v4513
        %v5022 = vpack.c.b16 %v4518, %v4514
        %v5023 = vpack.c.b16 %v4523, %v4519
        %v5024 = vpack.c.b16 %v4524, %v4520
        %v5025 = vpack.c.b16 %v4525, %v4521
        %v5026 = vpack.c.b16 %v4526, %v4522
        %v5027 = vpack.c.b16 %v4531, %v4527
        %v5028 = vpack.c.b16 %v4532, %v4528
        %v5029 = vpack.c.b16 %v4533, %v4529
        %v5030 = vpack.c.b16 %v4534, %v4530
        %v5031 = vpack.c.b16 %v4539, %v4535
        %v5032 = vpack.c.b16 %v4540, %v4536
        %v5033 = vpack.c.b16 %v4541, %v4537
        %v5034 = vpack.c.b16 %v4542, %v4538
        %v5035 = vpack.c.b16 %v4547, %v4543
        %v5036 = vpack.c.b16 %v4548, %v4544
        %v5037 = vpack.c.b16 %v4549, %v4545
        %v5038 = vpack.c.b16 %v4550, %v4546
        %v5039 = vpack.c.b16 %v4555, %v4551
        %v5040 = vpack.c.b16 %v4556, %v4552
        %v5041 = vpack.c.b16 %v4557, %v4553
        %v5042 = vpack.c.b16 %v4558, %v4554
        %v5043 = vpack.c.b16 %v4563, %v4559
        %v5044 = vpack.c.b16 %v4564, %v4560
        %v5045 = vpack.c.b16 %v4565, %v4561
        %v5046 = vpack.c.b16 %v4566, %v4562
        %v5047 = vpack.c.b16 %v4571, %v4567
        %v5048 = vpack.c.b16 %v4572, %v4568
        %v5049 = vpack.c.b16 %v4573, %v4569
        %v5050 = vpack.c.b16 %v4574, %v4570
        %v5051 = vpack.c.b16 %v4579, %v4575
        %v5052 = vpack.c.b16 %v4580, %v4576
        %v5053 = vpack.c.b16 %v4581, %v4577
        %v5054 = vpack.c.b16 %v4582, %v4578
        %v5055 = vpack.c.b16 %v4587, %v4583
        %v5056 = vpack.c.b16 %v4588, %v4584
        %v5057 = vpack.c.b16 %v4589, %v4585
        %v5058 = vpack.c.b16 %v4590, %v4586
        %v5059 = vpack.c.b16 %v4595, %v4591
        %v5060 = vpack.c.b16 %v4596, %v4592
        %v5061 = vpack.c.b16 %v4597, %v4593
        %v5062 = vpack.c.b16 %v4598, %v4594
        %v5063 = vpack.c.b16 %v4603, %v4599
        %v5064 = vpack.c.b16 %v4604, %v4600
        %v5065 = vpack.c.b16 %v4605, %v4601
        %v5066 = vpack.c.b16 %v4606, %v4602
        %v5067 = vpack.c.b16 %v4611, %v4607
        %v5068 = vpack.c.b16 %v4612, %v4608
        %v5069 = vpack.c.b16 %v4613, %v4609
        %v5070 = vpack.c.b16 %v4614, %v4610
        %v5071 = vpack.c.b16 %v4619, %v4615
        %v5072 = vpack.c.b16 %v4620, %v4616
        %v5073 = vpack.c.b16 %v4621, %v4617
        %v5074 = vpack.c.b16 %v4622, %v4618
        %v5075 = vpack.c.b16 %v4627, %v4623
        %v5076 = vpack.c.b16 %v4628, %v4624
        %v5077 = vpack.c.b16 %v4629, %v4625
        %v5078 = vpack.c.b16 %v4630, %v4626
        %v5079 = vpack.c.b16 %v4635, %v4631
        %v5080 = vpack.c.b16 %v4636, %v4632
        %v5081 = vpack.c.b16 %v4637, %v4633
        %v5082 = vpack.c.b16 %v4638, %v4634
        %v5083 = vpack.c.b16 %v4643, %v4639
        %v5084 = vpack.c.b16 %v4644, %v4640
        %v5085 = vpack.c.b16 %v4645, %v4641
        %v5086 = vpack.c.b16 %v4646, %v4642
        %v5087 = vpack.c.b16 %v4651, %v4647
        %v5088 = vpack.c.b16 %v4652, %v4648
        %v5089 = vpack.c.b16 %v4653, %v4649
        %v5090 = vpack.c.b16 %v4654, %v4650
        %v5091 = vpack.c.b16 %v4659, %v4655
        %v5092 = vpack.c.b16 %v4660, %v4656
        %v5093 = vpack.c.b16 %v4661, %v4657
        %v5094 = vpack.c.b16 %v4662, %v4658
        %v5095 = vpack.c.b16 %v4667, %v4663
        %v5096 = vpack.c.b16 %v4668, %v4664
        %v5097 = vpack.c.b16 %v4669, %v4665
        %v5098 = vpack.c.b16 %v4670, %v4666
        %v5099 = vpack.c.b16 %v4675, %v4671
        %v5100 = vpack.c.b16 %v4676, %v4672
        %v5101 = vpack.c.b16 %v4677, %v4673
        %v5102 = vpack.c.b16 %v4678, %v4674
        %v5103 = vpack.c.b16 %v4683, %v4679
        %v5104 = vpack.c.b16 %v4684, %v4680
        %v5105 = vpack.c.b16 %v4685, %v4681
        %v5106 = vpack.c.b16 %v4686, %v4682
        %v5107 = vpack.c.b16 %v4691, %v4687
        %v5108 = vpack.c.b16 %v4692, %v4688
        %v5109 = vpack.c.b16 %v4693, %v4689
        %v5110 = vpack.c.b16 %v4694, %v4690
        %v5111 = vpack.c.b16 %v4699, %v4695
        %v5112 = vpack.c.b16 %v4700, %v4696
        %v5113 = vpack.c.b16 %v4701, %v4697
        %v5114 = vpack.c.b16 %v4702, %v4698
        %v5115 = vpack.c.b16 %v4707, %v4703
        %v5116 = vpack.c.b16 %v4708, %v4704
        %v5117 = vpack.c.b16 %v4709, %v4705
        %v5118 = vpack.c.b16 %v4710, %v4706
        %v5119 = vpack.c.b16 %v4715, %v4711
        %v5120 = vpack.c.b16 %v4716, %v4712
        %v5121 = vpack.c.b16 %v4717, %v4713
        %v5122 = vpack.c.b16 %v4718, %v4714
        %v5123 = vpack.c.b16 %v4723, %v4719
        %v5124 = vpack.c.b16 %v4724, %v4720
        %v5125 = vpack.c.b16 %v4725, %v4721
        %v5126 = vpack.c.b16 %v4726, %v4722
        %v5127 = vpack.c.b16 %v4731, %v4727
        %v5128 = vpack.c.b16 %v4732, %v4728
        %v5129 = vpack.c.b16 %v4733, %v4729
        %v5130 = vpack.c.b16 %v4734, %v4730
        %v5131 = vpack.c.b16 %v4739, %v4735
        %v5132 = vpack.c.b16 %v4740, %v4736
        %v5133 = vpack.c.b16 %v4741, %v4737
        %v5134 = vpack.c.b16 %v4742, %v4738
        %v5135 = vpack.c.b16 %v4747, %v4743
        %v5136 = vpack.c.b16 %v4748, %v4744
        %v5137 = vpack.c.b16 %v4749, %v4745
        %v5138 = vpack.c.b16 %v4750, %v4746
        %v5139 = vpack.c.b16 %v4755, %v4751
        %v5140 = vpack.c.b16 %v4756, %v4752
        %v5141 = vpack.c.b16 %v4757, %v4753
        %v5142 = vpack.c.b16 %v4758, %v4754
        %v5143 = vpack.c.b16 %v4763, %v4759
        %v5144 = vpack.c.b16 %v4764, %v4760
        %v5145 = vpack.c.b16 %v4765, %v4761
        %v5146 = vpack.c.b16 %v4766, %v4762
        %v5147 = vpack.c.b16 %v4771, %v4767
        %v5148 = vpack.c.b16 %v4772, %v4768
        %v5149 = vpack.c.b16 %v4773, %v4769
        %v5150 = vpack.c.b16 %v4774, %v4770
        %v5151 = vpack.c.b16 %v4779, %v4775
        %v5152 = vpack.c.b16 %v4780, %v4776
        %v5153 = vpack.c.b16 %v4781, %v4777
        %v5154 = vpack.c.b16 %v4782, %v4778
        %v5155 = vpack.c.b16 %v4787, %v4783
        %v5156 = vpack.c.b16 %v4788, %v4784
        %v5157 = vpack.c.b16 %v4789, %v4785
        %v5158 = vpack.c.b16 %v4790, %v4786
        %v5159 = vpack.c.b16 %v4795, %v4791
        %v5160 = vpack.c.b16 %v4796, %v4792
        %v5161 = vpack.c.b16 %v4797, %v4793
        %v5162 = vpack.c.b16 %v4798, %v4794
        %v5163 = vpack.c.b16 %v4803, %v4799
        %v5164 = vpack.c.b16 %v4804, %v4800
        %v5165 = vpack.c.b16 %v4805, %v4801
        %v5166 = vpack.c.b16 %v4806, %v4802
        %v5167 = vpack.c.b16 %v4811, %v4807
        %v5168 = vpack.c.b16 %v4812, %v4808
        %v5169 = vpack.c.b16 %v4813, %v4809
        %v5170 = vpack.c.b16 %v4814, %v4810
        %v5171 = vpack.c.b16 %v4819, %v4815
        %v5172 = vpack.c.b16 %v4820, %v4816
        %v5173 = vpack.c.b16 %v4821, %v4817
        %v5174 = vpack.c.b16 %v4822, %v4818
        %v5175 = vpack.c.b16 %v4827, %v4823
        %v5176 = vpack.c.b16 %v4828, %v4824
        %v5177 = vpack.c.b16 %v4829, %v4825
        %v5178 = vpack.c.b16 %v4830, %v4826
        %v5179 = vpack.c.b16 %v4835, %v4831
        %v5180 = vpack.c.b16 %v4836, %v4832
        %v5181 = vpack.c.b16 %v4837, %v4833
        %v5182 = vpack.c.b16 %v4838, %v4834
        %v5183 = vpack.c.b16 %v4843, %v4839
        %v5184 = vpack.c.b16 %v4844, %v4840
        %v5185 = vpack.c.b16 %v4845, %v4841
        %v5186 = vpack.c.b16 %v4846, %v4842
        %v5187 = vpack.c.b16 %v4851, %v4847
        %v5188 = vpack.c.b16 %v4852, %v4848
        %v5189 = vpack.c.b16 %v4853, %v4849
        %v5190 = vpack.c.b16 %v4854, %v4850
        %v5191 = vpack.c.b16 %v4859, %v4855
        %v5192 = vpack.c.b16 %v4860, %v4856
        %v5193 = vpack.c.b16 %v4861, %v4857
        %v5194 = vpack.c.b16 %v4862, %v4858
        %v5195 = vpack.c.b16 %v4867, %v4863
        %v5196 = vpack.c.b16 %v4868, %v4864
        %v5197 = vpack.c.b16 %v4869, %v4865
        %v5198 = vpack.c.b16 %v4870, %v4866
        %v5199 = vpack.c.b16 %v4875, %v4871
        %v5200 = vpack.c.b16 %v4876, %v4872
        %v5201 = vpack.c.b16 %v4877, %v4873
        %v5202 = vpack.c.b16 %v4878, %v4874
        %v5203 = vpack.c.b16 %v4883, %v4879
        %v5204 = vpack.c.b16 %v4884, %v4880
        %v5205 = vpack.c.b16 %v4885, %v4881
        %v5206 = vpack.c.b16 %v4886, %v4882
        %v5207 = vpack.c.b16 %v4891, %v4887
        %v5208 = vpack.c.b16 %v4892, %v4888
        %v5209 = vpack.c.b16 %v4893, %v4889
        %v5210 = vpack.c.b16 %v4894, %v4890
        %v5211 = vpack.c.b16 %v4899, %v4895
        %v5212 = vpack.c.b16 %v4900, %v4896
        %v5213 = vpack.c.b16 %v4901, %v4897
        %v5214 = vpack.c.b16 %v4902, %v4898
        %v5215 = vpack.c.b16 %v4907, %v4903
        %v5216 = vpack.c.b16 %v4908, %v4904
        %v5217 = vpack.c.b16 %v4909, %v4905
        %v5218 = vpack.c.b16 %v4910, %v4906
        %v5219 = vpack.c.b16 %v4915, %v4911
        %v5220 = vpack.c.b16 %v4916, %v4912
        %v5221 = vpack.c.b16 %v4917, %v4913
        %v5222 = vpack.c.b16 %v4918, %v4914
        %v5223 = vpack.c.b16 %v4923, %v4919
        %v5224 = vpack.c.b16 %v4924, %v4920
        %v5225 = vpack.c.b16 %v4925, %v4921
        %v5226 = vpack.c.b16 %v4926, %v4922
        %v5227 = vpack.c.b16 %v4931, %v4927
        %v5228 = vpack.c.b16 %v4932, %v4928
        %v5229 = vpack.c.b16 %v4933, %v4929
        %v5230 = vpack.c.b16 %v4934, %v4930
        %v5231 = vpack.c.b16 %v4939, %v4935
        %v5232 = vpack.c.b16 %v4940, %v4936
        %v5233 = vpack.c.b16 %v4941, %v4937
        %v5234 = vpack.c.b16 %v4942, %v4938
        %v5235 = vpack.c.b16 %v4947, %v4943
        %v5236 = vpack.c.b16 %v4948, %v4944
        %v5237 = vpack.c.b16 %v4949, %v4945
        %v5238 = vpack.c.b16 %v4950, %v4946
        %v5239 = vpack.c.b16 %v4955, %v4951
        %v5240 = vpack.c.b16 %v4956, %v4952
        %v5241 = vpack.c.b16 %v4957, %v4953
        %v5242 = vpack.c.b16 %v4958, %v4954
        %v5243 = vpack.c.b16 %v4963, %v4959
        %v5244 = vpack.c.b16 %v4964, %v4960
        %v5245 = vpack.c.b16 %v4965, %v4961
        %v5246 = vpack.c.b16 %v4966, %v4962
        %v5247 = vpack.c.b16 %v4971, %v4967
        %v5248 = vpack.c.b16 %v4972, %v4968
        %v5249 = vpack.c.b16 %v4973, %v4969
        %v5250 = vpack.c.b16 %v4974, %v4970
        %v5251 = vpack.c.b16 %v4979, %v4975
        %v5252 = vpack.c.b16 %v4980, %v4976
        %v5253 = vpack.c.b16 %v4981, %v4977
        %v5254 = vpack.c.b16 %v4982, %v4978
        %v5255 = vpack.c.b16 %v4987, %v4983
        %v5256 = vpack.c.b16 %v4988, %v4984
        %v5257 = vpack.c.b16 %v4989, %v4985
        %v5258 = vpack.c.b16 %v4990, %v4986
        %v5259 = vpack.c.b16 %v4995, %v4991
        %v5260 = vpack.c.b16 %v4996, %v4992
        %v5261 = vpack.c.b16 %v4997, %v4993
        %v5262 = vpack.c.b16 %v4998, %v4994
        %v5263 = vpack.c.b16 %v5003, %v4999
        %v5264 = vpack.c.b16 %v5004, %v5000
        %v5265 = vpack.c.b16 %v5005, %v5001
        %v5266 = vpack.c.b16 %v5006, %v5002
        %v5267 = vpack.c.b16 %v5011, %v5007
        %v5268 = vpack.c.b16 %v5012, %v5008
        %v5269 = vpack.c.b16 %v5013, %v5009
        %v5270 = vpack.c.b16 %v5014, %v5010
        %5527 = vmatprep.subr.bf16.mxu0 %v5016
        %5528 = vmatpush1.bf16.msra.mxu0 %v5015
        %5529 = vmatprep.subr.bf16.mxu0 %v5020
        %5530 = vmatpush1.bf16.msra.mxu0 %v5019
        %5531 = vmatprep.subr.bf16.mxu0 %v5024
        %5532 = vmatpush1.bf16.msra.mxu0 %v5023
        %5533 = vmatprep.subr.bf16.mxu0 %v5028
        %5534 = vmatpush1.bf16.msra.mxu0 %v5027
        %5535 = vmatprep.subr.bf16.mxu0 %v5032
        %5536 = vmatpush1.bf16.msra.mxu0 %v5031
        %5537 = vmatprep.subr.bf16.mxu0 %v5036
        %5538 = vmatpush1.bf16.msra.mxu0 %v5035
        %5539 = vmatprep.subr.bf16.mxu0 %v5040
        %5540 = vmatpush1.bf16.msra.mxu0 %v5039
        %5541 = vmatprep.subr.bf16.mxu0 %v5044
        %5542 = vmatpush1.bf16.msra.mxu0 %v5043
        %5543 = vmatprep.subr.bf16.mxu0 %v5048
        %5544 = vmatpush1.bf16.msra.mxu0 %v5047
        %5545 = vmatprep.subr.bf16.mxu0 %v5052
        %5546 = vmatpush1.bf16.msra.mxu0 %v5051
        %5547 = vmatprep.subr.bf16.mxu0 %v5056
        %5548 = vmatpush1.bf16.msra.mxu0 %v5055
        %5549 = vmatprep.subr.bf16.mxu0 %v5060
        %5550 = vmatpush1.bf16.msra.mxu0 %v5059
        %5551 = vmatprep.subr.bf16.mxu0 %v5064
        %5552 = vmatpush1.bf16.msra.mxu0 %v5063
        %5553 = vmatprep.subr.bf16.mxu0 %v5068
        %5554 = vmatpush1.bf16.msra.mxu0 %v5067
        %5555 = vmatprep.subr.bf16.mxu0 %v5072
        %5556 = vmatpush1.bf16.msra.mxu0 %v5071
        %5557 = vmatprep.subr.bf16.mxu0 %v5076
        %5558 = vmatpush1.bf16.msra.mxu0 %v5075
        %5559 = vmatprep.mubr.bf16.mxu0 %v3984
        %5560 = vmatmul.mubr.bf16.gmra.mrb[0].mxu0 %v3983
        %v5561 = vpop.f32.mrb[0].mxu0
        %v5562 = vadd.f32 %v3908, %v5561
        %v5563 = vpop.f32.mrb[0].mxu0
        %v5564 = vadd.f32 %v3910, %v5563
        %v5565 = vpop.f32.mrb[0].mxu0
        %v5566 = vpop.f32.mrb[0].mxu0
        %5567 = vdwg.mxu0
        %5568 = vmatprep.subr.bf16.mxu0 %v5080
        %5569 = vmatpush1.bf16.msra.mxu0 %v5079
        %5570 = vmatprep.subr.bf16.mxu0 %v5084
        %5571 = vmatpush1.bf16.msra.mxu0 %v5083
        %5572 = vmatprep.subr.bf16.mxu0 %v5088
        %5573 = vmatpush1.bf16.msra.mxu0 %v5087
        %5574 = vmatprep.subr.bf16.mxu0 %v5092
        %5575 = vmatpush1.bf16.msra.mxu0 %v5091
        %5576 = vmatprep.subr.bf16.mxu0 %v5096
        %5577 = vmatpush1.bf16.msra.mxu0 %v5095
        %5578 = vmatprep.subr.bf16.mxu0 %v5100
        %5579 = vmatpush1.bf16.msra.mxu0 %v5099
        %5580 = vmatprep.subr.bf16.mxu0 %v5104
        %5581 = vmatpush1.bf16.msra.mxu0 %v5103
        %5582 = vmatprep.subr.bf16.mxu0 %v5108
        %5583 = vmatpush1.bf16.msra.mxu0 %v5107
        %5584 = vmatprep.subr.bf16.mxu0 %v5112
        %5585 = vmatpush1.bf16.msra.mxu0 %v5111
        %5586 = vmatprep.subr.bf16.mxu0 %v5116
        %5587 = vmatpush1.bf16.msra.mxu0 %v5115
        %5588 = vmatprep.subr.bf16.mxu0 %v5120
        %5589 = vmatpush1.bf16.msra.mxu0 %v5119
        %5590 = vmatprep.subr.bf16.mxu0 %v5124
        %5591 = vmatpush1.bf16.msra.mxu0 %v5123
        %5592 = vmatprep.subr.bf16.mxu0 %v5128
        %5593 = vmatpush1.bf16.msra.mxu0 %v5127
        %5594 = vmatprep.subr.bf16.mxu0 %v5132
        %5595 = vmatpush1.bf16.msra.mxu0 %v5131
        %5596 = vmatprep.subr.bf16.mxu0 %v5136
        %5597 = vmatpush1.bf16.msra.mxu0 %v5135
        %5598 = vmatprep.subr.bf16.mxu0 %v5140
        %5599 = vmatpush1.bf16.msra.mxu0 %v5139
        %5600 = vmatprep.mubr.bf16.mxu0 %v3986
        %5601 = vmatmul.mubr.bf16.gmra.mrb[0].mxu0 %v3985
        %v5602 = vpop.f32.mrb[0].mxu0
        %v5603 = vadd.f32 %v5562, %v5602
        %v5604 = vpop.f32.mrb[0].mxu0
        %v5605 = vadd.f32 %v5564, %v5604
        %v5606 = vpop.f32.mrb[0].mxu0
        %v5607 = vpop.f32.mrb[0].mxu0
        %5608 = vdwg.mxu0
        %5609 = vmatprep.subr.bf16.mxu0 %v5144
        %5610 = vmatpush1.bf16.msra.mxu0 %v5143
        %5611 = vmatprep.subr.bf16.mxu0 %v5148
        %5612 = vmatpush1.bf16.msra.mxu0 %v5147
        %5613 = vmatprep.subr.bf16.mxu0 %v5152
        %5614 = vmatpush1.bf16.msra.mxu0 %v5151
        %5615 = vmatprep.subr.bf16.mxu0 %v5156
        %5616 = vmatpush1.bf16.msra.mxu0 %v5155
        %5617 = vmatprep.subr.bf16.mxu0 %v5160
        %5618 = vmatpush1.bf16.msra.mxu0 %v5159
        %5619 = vmatprep.subr.bf16.mxu0 %v5164
        %5620 = vmatpush1.bf16.msra.mxu0 %v5163
        %5621 = vmatprep.subr.bf16.mxu0 %v5168
        %5622 = vmatpush1.bf16.msra.mxu0 %v5167
        %5623 = vmatprep.subr.bf16.mxu0 %v5172
        %5624 = vmatpush1.bf16.msra.mxu0 %v5171
        %5625 = vmatprep.subr.bf16.mxu0 %v5176
        %5626 = vmatpush1.bf16.msra.mxu0 %v5175
        %5627 = vmatprep.subr.bf16.mxu0 %v5180
        %5628 = vmatpush1.bf16.msra.mxu0 %v5179
        %5629 = vmatprep.subr.bf16.mxu0 %v5184
        %5630 = vmatpush1.bf16.msra.mxu0 %v5183
        %5631 = vmatprep.subr.bf16.mxu0 %v5188
        %5632 = vmatpush1.bf16.msra.mxu0 %v5187
        %5633 = vmatprep.subr.bf16.mxu0 %v5192
        %5634 = vmatpush1.bf16.msra.mxu0 %v5191
        %5635 = vmatprep.subr.bf16.mxu0 %v5196
        %5636 = vmatpush1.bf16.msra.mxu0 %v5195
        %5637 = vmatprep.subr.bf16.mxu0 %v5200
        %5638 = vmatpush1.bf16.msra.mxu0 %v5199
        %5639 = vmatprep.subr.bf16.mxu0 %v5204
        %5640 = vmatpush1.bf16.msra.mxu0 %v5203
        %5641 = vmatprep.mubr.bf16.mxu0 %v3988
        %5642 = vmatmul.mubr.bf16.gmra.mrb[0].mxu0 %v3987
        %v5643 = vpop.f32.mrb[0].mxu0
        %v5644 = vadd.f32 %v5603, %v5643
        %v5645 = vpop.f32.mrb[0].mxu0
        %v5646 = vadd.f32 %v5605, %v5645
        %v5647 = vpop.f32.mrb[0].mxu0
        %v5648 = vpop.f32.mrb[0].mxu0
        %5649 = vdwg.mxu0
        %5650 = vmatprep.subr.bf16.mxu0 %v5208
        %5651 = vmatpush1.bf16.msra.mxu0 %v5207
        %5652 = vmatprep.subr.bf16.mxu0 %v5212
        %5653 = vmatpush1.bf16.msra.mxu0 %v5211
        %5654 = vmatprep.subr.bf16.mxu0 %v5216
        %5655 = vmatpush1.bf16.msra.mxu0 %v5215
        %5656 = vmatprep.subr.bf16.mxu0 %v5220
        %5657 = vmatpush1.bf16.msra.mxu0 %v5219
        %5658 = vmatprep.subr.bf16.mxu0 %v5224
        %5659 = vmatpush1.bf16.msra.mxu0 %v5223
        %5660 = vmatprep.subr.bf16.mxu0 %v5228
        %5661 = vmatpush1.bf16.msra.mxu0 %v5227
        %5662 = vmatprep.subr.bf16.mxu0 %v5232
        %5663 = vmatpush1.bf16.msra.mxu0 %v5231
        %5664 = vmatprep.subr.bf16.mxu0 %v5236
        %5665 = vmatpush1.bf16.msra.mxu0 %v5235
        %5666 = vmatprep.subr.bf16.mxu0 %v5240
        %5667 = vmatpush1.bf16.msra.mxu0 %v5239
        %5668 = vmatprep.subr.bf16.mxu0 %v5244
        %5669 = vmatpush1.bf16.msra.mxu0 %v5243
        %5670 = vmatprep.subr.bf16.mxu0 %v5248
        %5671 = vmatpush1.bf16.msra.mxu0 %v5247
        %5672 = vmatprep.subr.bf16.mxu0 %v5252
        %5673 = vmatpush1.bf16.msra.mxu0 %v5251
        %5674 = vmatprep.subr.bf16.mxu0 %v5256
        %5675 = vmatpush1.bf16.msra.mxu0 %v5255
        %5676 = vmatprep.subr.bf16.mxu0 %v5260
        %5677 = vmatpush1.bf16.msra.mxu0 %v5259
        %5678 = vmatprep.subr.bf16.mxu0 %v5264
        %5679 = vmatpush1.bf16.msra.mxu0 %v5263
        %5680 = vmatprep.subr.bf16.mxu0 %v5268
        %5681 = vmatpush1.bf16.msra.mxu0 %v5267
        %5682 = vmatprep.mubr.bf16.mxu0 %v3990
        %5683 = vmatmul.mubr.bf16.gmra.mrb[0].mxu0 %v3989
        %v5684 = vpop.f32.mrb[0].mxu0
        %v5685 = vadd.f32 %v5644, %v5684
        %v5686 = vpop.f32.mrb[0].mxu0
        %v5687 = vadd.f32 %v5646, %v5686
        %v5688 = vpop.f32.mrb[0].mxu0
        %v5689 = vpop.f32.mrb[0].mxu0
        %5690 = vdwg.mxu0
        %5691 = vmatprep.subr.bf16.mxu0 %v5018
        %5692 = vmatpush1.bf16.msra.mxu0 %v5017
        %5693 = vmatprep.subr.bf16.mxu0 %v5022
        %5694 = vmatpush1.bf16.msra.mxu0 %v5021
        %5695 = vmatprep.subr.bf16.mxu0 %v5026
        %5696 = vmatpush1.bf16.msra.mxu0 %v5025
        %5697 = vmatprep.subr.bf16.mxu0 %v5030
        %5698 = vmatpush1.bf16.msra.mxu0 %v5029
        %5699 = vmatprep.subr.bf16.mxu0 %v5034
        %5700 = vmatpush1.bf16.msra.mxu0 %v5033
        %5701 = vmatprep.subr.bf16.mxu0 %v5038
        %5702 = vmatpush1.bf16.msra.mxu0 %v5037
        %5703 = vmatprep.subr.bf16.mxu0 %v5042
        %5704 = vmatpush1.bf16.msra.mxu0 %v5041
        %5705 = vmatprep.subr.bf16.mxu0 %v5046
        %5706 = vmatpush1.bf16.msra.mxu0 %v5045
        %5707 = vmatprep.subr.bf16.mxu0 %v5050
        %5708 = vmatpush1.bf16.msra.mxu0 %v5049
        %5709 = vmatprep.subr.bf16.mxu0 %v5054
        %5710 = vmatpush1.bf16.msra.mxu0 %v5053
        %5711 = vmatprep.subr.bf16.mxu0 %v5058
        %5712 = vmatpush1.bf16.msra.mxu0 %v5057
        %5713 = vmatprep.subr.bf16.mxu0 %v5062
        %5714 = vmatpush1.bf16.msra.mxu0 %v5061
        %5715 = vmatprep.subr.bf16.mxu0 %v5066
        %5716 = vmatpush1.bf16.msra.mxu0 %v5065
        %5717 = vmatprep.subr.bf16.mxu0 %v5070
        %5718 = vmatpush1.bf16.msra.mxu0 %v5069
        %5719 = vmatprep.subr.bf16.mxu0 %v5074
        %5720 = vmatpush1.bf16.msra.mxu0 %v5073
        %5721 = vmatprep.subr.bf16.mxu0 %v5078
        %5722 = vmatpush1.bf16.msra.mxu0 %v5077
        %5723 = vmatprep.mubr.bf16.mxu0 %v3984
        %5724 = vmatmul.mubr.bf16.gmra.mrb[0].mxu0 %v3983
        %v5725 = vpop.f32.mrb[0].mxu0
        %v5726 = vadd.f32 %v3979, %v5725
        %v5727 = vpop.f32.mrb[0].mxu0
        %v5728 = vadd.f32 %v3981, %v5727
        %v5729 = vpop.f32.mrb[0].mxu0
        %v5730 = vpop.f32.mrb[0].mxu0
        %5731 = vdwg.mxu0
        %5732 = vmatprep.subr.bf16.mxu0 %v5082
        %5733 = vmatpush1.bf16.msra.mxu0 %v5081
        %5734 = vmatprep.subr.bf16.mxu0 %v5086
        %5735 = vmatpush1.bf16.msra.mxu0 %v5085
        %5736 = vmatprep.subr.bf16.mxu0 %v5090
        %5737 = vmatpush1.bf16.msra.mxu0 %v5089
        %5738 = vmatprep.subr.bf16.mxu0 %v5094
        %5739 = vmatpush1.bf16.msra.mxu0 %v5093
        %5740 = vmatprep.subr.bf16.mxu0 %v5098
        %5741 = vmatpush1.bf16.msra.mxu0 %v5097
        %5742 = vmatprep.subr.bf16.mxu0 %v5102
        %5743 = vmatpush1.bf16.msra.mxu0 %v5101
        %5744 = vmatprep.subr.bf16.mxu0 %v5106
        %5745 = vmatpush1.bf16.msra.mxu0 %v5105
        %5746 = vmatprep.subr.bf16.mxu0 %v5110
        %5747 = vmatpush1.bf16.msra.mxu0 %v5109
        %5748 = vmatprep.subr.bf16.mxu0 %v5114
        %5749 = vmatpush1.bf16.msra.mxu0 %v5113
        %5750 = vmatprep.subr.bf16.mxu0 %v5118
        %5751 = vmatpush1.bf16.msra.mxu0 %v5117
        %5752 = vmatprep.subr.bf16.mxu0 %v5122
        %5753 = vmatpush1.bf16.msra.mxu0 %v5121
        %5754 = vmatprep.subr.bf16.mxu0 %v5126
        %5755 = vmatpush1.bf16.msra.mxu0 %v5125
        %5756 = vmatprep.subr.bf16.mxu0 %v5130
        %5757 = vmatpush1.bf16.msra.mxu0 %v5129
        %5758 = vmatprep.subr.bf16.mxu0 %v5134
        %5759 = vmatpush1.bf16.msra.mxu0 %v5133
        %5760 = vmatprep.subr.bf16.mxu0 %v5138
        %5761 = vmatpush1.bf16.msra.mxu0 %v5137
        %5762 = vmatprep.subr.bf16.mxu0 %v5142
        %5763 = vmatpush1.bf16.msra.mxu0 %v5141
        %5764 = vmatprep.mubr.bf16.mxu0 %v3986
        %5765 = vmatmul.mubr.bf16.gmra.mrb[0].mxu0 %v3985
        %v5766 = vpop.f32.mrb[0].mxu0
        %v5767 = vadd.f32 %v5726, %v5766
        %v5768 = vpop.f32.mrb[0].mxu0
        %v5769 = vadd.f32 %v5728, %v5768
        %v5770 = vpop.f32.mrb[0].mxu0
        %v5771 = vpop.f32.mrb[0].mxu0
        %5772 = vdwg.mxu0
        %5773 = vmatprep.subr.bf16.mxu0 %v5146
        %5774 = vmatpush1.bf16.msra.mxu0 %v5145
        %5775 = vmatprep.subr.bf16.mxu0 %v5150
        %5776 = vmatpush1.bf16.msra.mxu0 %v5149
        %5777 = vmatprep.subr.bf16.mxu0 %v5154
        %5778 = vmatpush1.bf16.msra.mxu0 %v5153
        %5779 = vmatprep.subr.bf16.mxu0 %v5158
        %5780 = vmatpush1.bf16.msra.mxu0 %v5157
        %5781 = vmatprep.subr.bf16.mxu0 %v5162
        %5782 = vmatpush1.bf16.msra.mxu0 %v5161
        %5783 = vmatprep.subr.bf16.mxu0 %v5166
        %5784 = vmatpush1.bf16.msra.mxu0 %v5165
        %5785 = vmatprep.subr.bf16.mxu0 %v5170
        %5786 = vmatpush1.bf16.msra.mxu0 %v5169
        %5787 = vmatprep.subr.bf16.mxu0 %v5174
        %5788 = vmatpush1.bf16.msra.mxu0 %v5173
        %5789 = vmatprep.subr.bf16.mxu0 %v5178
        %5790 = vmatpush1.bf16.msra.mxu0 %v5177
        %5791 = vmatprep.subr.bf16.mxu0 %v5182
        %5792 = vmatpush1.bf16.msra.mxu0 %v5181
        %5793 = vmatprep.subr.bf16.mxu0 %v5186
        %5794 = vmatpush1.bf16.msra.mxu0 %v5185
        %5795 = vmatprep.subr.bf16.mxu0 %v5190
        %5796 = vmatpush1.bf16.msra.mxu0 %v5189
        %5797 = vmatprep.subr.bf16.mxu0 %v5194
        %5798 = vmatpush1.bf16.msra.mxu0 %v5193
        %5799 = vmatprep.subr.bf16.mxu0 %v5198
        %5800 = vmatpush1.bf16.msra.mxu0 %v5197
        %5801 = vmatprep.subr.bf16.mxu0 %v5202
        %5802 = vmatpush1.bf16.msra.mxu0 %v5201
        %5803 = vmatprep.subr.bf16.mxu0 %v5206
        %5804 = vmatpush1.bf16.msra.mxu0 %v5205
        %5805 = vmatprep.mubr.bf16.mxu0 %v3988
        %5806 = vmatmul.mubr.bf16.gmra.mrb[0].mxu0 %v3987
        %v5807 = vpop.f32.mrb[0].mxu0
        %v5808 = vadd.f32 %v5767, %v5807
        %v5809 = vpop.f32.mrb[0].mxu0
        %v5810 = vadd.f32 %v5769, %v5809
        %v5811 = vpop.f32.mrb[0].mxu0
        %v5812 = vpop.f32.mrb[0].mxu0
        %5813 = vdwg.mxu0
        %5814 = vmatprep.subr.bf16.mxu0 %v5210
        %5815 = vmatpush1.bf16.msra.mxu0 %v5209
        %5816 = vmatprep.subr.bf16.mxu0 %v5214
        %5817 = vmatpush1.bf16.msra.mxu0 %v5213
        %5818 = vmatprep.subr.bf16.mxu0 %v5218
        %5819 = vmatpush1.bf16.msra.mxu0 %v5217
        %5820 = vmatprep.subr.bf16.mxu0 %v5222
        %5821 = vmatpush1.bf16.msra.mxu0 %v5221
        %5822 = vmatprep.subr.bf16.mxu0 %v5226
        %5823 = vmatpush1.bf16.msra.mxu0 %v5225
        %5824 = vmatprep.subr.bf16.mxu0 %v5230
        %5825 = vmatpush1.bf16.msra.mxu0 %v5229
        %5826 = vmatprep.subr.bf16.mxu0 %v5234
        %5827 = vmatpush1.bf16.msra.mxu0 %v5233
        %5828 = vmatprep.subr.bf16.mxu0 %v5238
        %5829 = vmatpush1.bf16.msra.mxu0 %v5237
        %5830 = vmatprep.subr.bf16.mxu0 %v5242
        %5831 = vmatpush1.bf16.msra.mxu0 %v5241
        %5832 = vmatprep.subr.bf16.mxu0 %v5246
        %5833 = vmatpush1.bf16.msra.mxu0 %v5245
        %5834 = vmatprep.subr.bf16.mxu0 %v5250
        %5835 = vmatpush1.bf16.msra.mxu0 %v5249
        %5836 = vmatprep.subr.bf16.mxu0 %v5254
        %5837 = vmatpush1.bf16.msra.mxu0 %v5253
        %5838 = vmatprep.subr.bf16.mxu0 %v5258
        %5839 = vmatpush1.bf16.msra.mxu0 %v5257
        %5840 = vmatprep.subr.bf16.mxu0 %v5262
        %5841 = vmatpush1.bf16.msra.mxu0 %v5261
        %5842 = vmatprep.subr.bf16.mxu0 %v5266
        %5843 = vmatpush1.bf16.msra.mxu0 %v5265
        %5844 = vmatprep.subr.bf16.mxu0 %v5270
        %5845 = vmatpush1.bf16.msra.mxu0 %v5269
        %5846 = vmatprep.mubr.bf16.mxu0 %v3990
        %5847 = vmatmul.mubr.bf16.gmra.mrb[0].mxu0 %v3989
        %v5848 = vpop.f32.mrb[0].mxu0
        %v5849 = vadd.f32 %v5808, %v5848
        %v5850 = vpop.f32.mrb[0].mxu0
        %v5851 = vadd.f32 %v5810, %v5850
        %v5852 = vpop.f32.mrb[0].mxu0
        %v5853 = vpop.f32.mrb[0].mxu0
        %5854 = vdwg.mxu0
        %v5855 = vld [vmem:[#allocation13] sm:$0xf]
        %v5857 = vlaneseq
        %v5858 = vshrl.u32 %v5857, 7
        %v5859 = vsub.s32 0, %v5858
        %v5860 = vrot.slane %v5855, %v5859
        %v5861 = vlaneseq
        %v5862 = vshrl.u32 %v5861, 7
        %v5863 = vsub.s32 1, %v5862
        %v5864 = vrot.slane %v5855, %v5863
        %v5865 = vlaneseq
        %v5866 = vshrl.u32 %v5865, 7
        %v5867 = vsub.s32 2, %v5866
        %v5868 = vrot.slane %v5855, %v5867
        %v5869 = vlaneseq
        %v5870 = vshrl.u32 %v5869, 7
        %v5871 = vsub.s32 3, %v5870
        %v5872 = vrot.slane %v5855, %v5871
        %v5877 = vadd.f32 %v5685, %v5860
        %v5878 = vadd.f32 %v5687, %v5864
        %v5879 = vadd.f32 %v5849, %v5868
        %v5880 = vadd.f32 %v5851, %v5872
        %v5881 = vld [vmem:[#allocation14] sm:$0xf]
        %v5882 = vld [vmem:[#allocation16] sm:$0xf]
        %v5883 = vrot.slane %v5877, 4
        %v5884 = vadd.f32 %v5877, %v5883
        %v5885 = vrot.slane %v5884, 2
        %v5886 = vadd.f32 %v5884, %v5885
        %v5887 = vrot.slane %v5886, 1
        %v5888 = vadd.f32 %v5886, %v5887
        %v5889 = vrot.slane %v5878, 4
        %v5890 = vadd.f32 %v5878, %v5889
        %v5891 = vrot.slane %v5890, 2
        %v5892 = vadd.f32 %v5890, %v5891
        %v5893 = vrot.slane %v5892, 1
        %v5894 = vadd.f32 %v5892, %v5893
        %v5895 = vrot.slane %v5879, 4
        %v5896 = vadd.f32 %v5879, %v5895
        %v5897 = vrot.slane %v5896, 2
        %v5898 = vadd.f32 %v5896, %v5897
        %v5899 = vrot.slane %v5898, 1
        %v5900 = vadd.f32 %v5898, %v5899
        %v5901 = vrot.slane %v5880, 4
        %v5902 = vadd.f32 %v5880, %v5901
        %v5903 = vrot.slane %v5902, 2
        %v5904 = vadd.f32 %v5902, %v5903
        %v5905 = vrot.slane %v5904, 1
        %v5906 = vadd.f32 %v5904, %v5905
        %v5907 = vrcp.pop 8.0
        %v5908 = vmul.f32 %v5888, %v5907
        %v5909 = vmul.f32 %v5894, %v5907
        %v5910 = vmul.f32 %v5900, %v5907
        %v5911 = vmul.f32 %v5906, %v5907
        %v5912 = vsub.f32 %v5877, %v5908
        %v5913 = vsub.f32 %v5878, %v5909
        %v5914 = vsub.f32 %v5879, %v5910
        %v5915 = vsub.f32 %v5880, %v5911
        %v5916 = vmul.f32 %v5912, %v5912
        %v5917 = vmul.f32 %v5913, %v5913
        %v5918 = vmul.f32 %v5914, %v5914
        %v5919 = vmul.f32 %v5915, %v5915
        %v5920 = vrot.slane %v5916, 4
        %v5921 = vadd.f32 %v5916, %v5920
        %v5922 = vrot.slane %v5921, 2
        %v5923 = vadd.f32 %v5921, %v5922
        %v5924 = vrot.slane %v5923, 1
        %v5925 = vadd.f32 %v5923, %v5924
        %v5926 = vrot.slane %v5917, 4
        %v5927 = vadd.f32 %v5917, %v5926
        %v5928 = vrot.slane %v5927, 2
        %v5929 = vadd.f32 %v5927, %v5928
        %v5930 = vrot.slane %v5929, 1
        %v5931 = vadd.f32 %v5929, %v5930
        %v5932 = vrot.slane %v5918, 4
        %v5933 = vadd.f32 %v5918, %v5932
        %v5934 = vrot.slane %v5933, 2
        %v5935 = vadd.f32 %v5933, %v5934
        %v5936 = vrot.slane %v5935, 1
        %v5937 = vadd.f32 %v5935, %v5936
        %v5938 = vrot.slane %v5919, 4
        %v5939 = vadd.f32 %v5919, %v5938
        %v5940 = vrot.slane %v5939, 2
        %v5941 = vadd.f32 %v5939, %v5940
        %v5942 = vrot.slane %v5941, 1
        %v5943 = vadd.f32 %v5941, %v5942
        %v5944 = vmul.f32 %v5925, %v5907
        %v5945 = vmul.f32 %v5931, %v5907
        %v5946 = vmul.f32 %v5937, %v5907
        %v5947 = vmul.f32 %v5943, %v5907
        %v5948 = vadd.f32 %v5944, 1e-05
        %v5949 = vadd.f32 %v5945, 1e-05
        %v5950 = vadd.f32 %v5946, 1e-05
        %v5951 = vadd.f32 %v5947, 1e-05
        %v5952 = vrsqrt.pop %v5948
        %v5953 = vrsqrt.pop %v5949
        %v5954 = vrsqrt.pop %v5950
        %v5955 = vrsqrt.pop %v5951
        %v5956 = vmul.f32 %v5912, %v5952
        %v5957 = vmul.f32 %v5913, %v5953
        %v5958 = vmul.f32 %v5914, %v5954
        %v5959 = vmul.f32 %v5915, %v5955
        %v5961 = vlaneseq
        %v5962 = vshrl.u32 %v5961, 7
        %v5963 = vsub.s32 0, %v5962
        %v5964 = vrot.slane %v5881, %v5963
        %v5965 = vlaneseq
        %v5966 = vshrl.u32 %v5965, 7
        %v5967 = vsub.s32 1, %v5966
        %v5968 = vrot.slane %v5881, %v5967
        %v5969 = vlaneseq
        %v5970 = vshrl.u32 %v5969, 7
        %v5971 = vsub.s32 2, %v5970
        %v5972 = vrot.slane %v5881, %v5971
        %v5973 = vlaneseq
        %v5974 = vshrl.u32 %v5973, 7
        %v5975 = vsub.s32 3, %v5974
        %v5976 = vrot.slane %v5881, %v5975
        %v5981 = vmul.f32 %v5956, %v5964
        %v5982 = vmul.f32 %v5957, %v5968
        %v5983 = vmul.f32 %v5958, %v5972
        %v5984 = vmul.f32 %v5959, %v5976
        %v5986 = vlaneseq
        %v5987 = vshrl.u32 %v5986, 7
        %v5988 = vsub.s32 0, %v5987
        %v5989 = vrot.slane %v5882, %v5988
        %v5990 = vlaneseq
        %v5991 = vshrl.u32 %v5990, 7
        %v5992 = vsub.s32 1, %v5991
        %v5993 = vrot.slane %v5882, %v5992
        %v5994 = vlaneseq
        %v5995 = vshrl.u32 %v5994, 7
        %v5996 = vsub.s32 2, %v5995
        %v5997 = vrot.slane %v5882, %v5996
        %v5998 = vlaneseq
        %v5999 = vshrl.u32 %v5998, 7
        %v6000 = vsub.s32 3, %v5999
        %v6001 = vrot.slane %v5882, %v6000
        %v6006 = vadd.f32 %v5981, %v5989
        %v6007 = vadd.f32 %v5982, %v5993
        %v6008 = vadd.f32 %v5983, %v5997
        %v6009 = vadd.f32 %v5984, %v6001
        %vm6010 = vcmp.gt.f32.partialorder %v6006, 0.0
        %vm6011 = vcmp.gt.f32.partialorder %v6007, 0.0
        %vm6012 = vcmp.gt.f32.partialorder %v6008, 0.0
        %vm6013 = vcmp.gt.f32.partialorder %v6009, 0.0
        %v6014 = vmul.f32 %v6006, 0.2
        %v6015 = vmul.f32 %v6007, 0.2
        %v6016 = vmul.f32 %v6008, 0.2
        %v6017 = vmul.f32 %v6009, 0.2
        %v6018 = vsel %vm6010, %v6006, %v6014
        %v6019 = vsel %vm6011, %v6007, %v6015
        %v6020 = vsel %vm6012, %v6008, %v6016
        %v6021 = vsel %vm6013, %v6009, %v6017
        %v6022 = vpack.c.bf16 %v6018, %v6018
        %v6023 = vpack.c.bf16 %v6019, %v6019
        %v6024 = vpack.c.bf16 %v6020, %v6020
        %v6025 = vpack.c.bf16 %v6021, %v6021
        %v6026 = vld [vmem:[#allocation17] sm:$0xff]
        %v6027 = vld [vmem:[#allocation17 + $0x8] sm:$0xff]
        %v6028 = vld [vmem:[#allocation17 + $0x10] sm:$0xff]
        %v6029 = vld [vmem:[#allocation17 + $0x18] sm:$0xff]
        %v6030 = vld [vmem:[#allocation17 + $0x20] sm:$0xff]
        %v6031 = vld [vmem:[#allocation17 + $0x28] sm:$0xff]
        %v6032 = vld [vmem:[#allocation17 + $0x30] sm:$0xff]
        %v6033 = vld [vmem:[#allocation17 + $0x38] sm:$0xff]
        %v6034 = vld [vmem:[#allocation17 + $0x40] sm:$0xff]
        %v6035 = vld [vmem:[#allocation17 + $0x48] sm:$0xff]
        %v6036 = vld [vmem:[#allocation17 + $0x50] sm:$0xff]
        %v6037 = vld [vmem:[#allocation17 + $0x58] sm:$0xff]
        %v6038 = vld [vmem:[#allocation17 + $0x60] sm:$0xff]
        %v6039 = vld [vmem:[#allocation17 + $0x68] sm:$0xff]
        %v6040 = vld [vmem:[#allocation17 + $0x70] sm:$0xff]
        %v6041 = vld [vmem:[#allocation17 + $0x78] sm:$0xff]
        %v6042 = vld [vmem:[#allocation17 + $0x80] sm:$0xff]
        %v6043 = vld [vmem:[#allocation17 + $0x88] sm:$0xff]
        %v6044 = vld [vmem:[#allocation17 + $0x90] sm:$0xff]
        %v6045 = vld [vmem:[#allocation17 + $0x98] sm:$0xff]
        %v6046 = vld [vmem:[#allocation17 + $0xa0] sm:$0xff]
        %v6047 = vld [vmem:[#allocation17 + $0xa8] sm:$0xff]
        %v6048 = vld [vmem:[#allocation17 + $0xb0] sm:$0xff]
        %v6049 = vld [vmem:[#allocation17 + $0xb8] sm:$0xff]
        %v6050 = vld [vmem:[#allocation17 + $0xc0] sm:$0xff]
        %v6051 = vld [vmem:[#allocation17 + $0xc8] sm:$0xff]
        %v6052 = vld [vmem:[#allocation17 + $0xd0] sm:$0xff]
        %v6053 = vld [vmem:[#allocation17 + $0xd8] sm:$0xff]
        %v6054 = vld [vmem:[#allocation17 + $0xe0] sm:$0xff]
        %v6055 = vld [vmem:[#allocation17 + $0xe8] sm:$0xff]
        %v6056 = vld [vmem:[#allocation17 + $0xf0] sm:$0xff]
        %v6057 = vld [vmem:[#allocation17 + $0xf8] sm:$0xff]
        %v6058 = vld [vmem:[#allocation17 + $0x100] sm:$0xff]
        %v6059 = vld [vmem:[#allocation17 + $0x108] sm:$0xff]
        %v6060 = vld [vmem:[#allocation17 + $0x110] sm:$0xff]
        %v6061 = vld [vmem:[#allocation17 + $0x118] sm:$0xff]
        %v6062 = vld [vmem:[#allocation17 + $0x120] sm:$0xff]
        %v6063 = vld [vmem:[#allocation17 + $0x128] sm:$0xff]
        %v6064 = vld [vmem:[#allocation17 + $0x130] sm:$0xff]
        %v6065 = vld [vmem:[#allocation17 + $0x138] sm:$0xff]
        %v6066 = vld [vmem:[#allocation17 + $0x140] sm:$0xff]
        %v6067 = vld [vmem:[#allocation17 + $0x148] sm:$0xff]
        %v6068 = vld [vmem:[#allocation17 + $0x150] sm:$0xff]
        %v6069 = vld [vmem:[#allocation17 + $0x158] sm:$0xff]
        %v6070 = vld [vmem:[#allocation17 + $0x160] sm:$0xff]
        %v6071 = vld [vmem:[#allocation17 + $0x168] sm:$0xff]
        %v6072 = vld [vmem:[#allocation17 + $0x170] sm:$0xff]
        %v6073 = vld [vmem:[#allocation17 + $0x178] sm:$0xff]
        %v6074 = vld [vmem:[#allocation17 + $0x180] sm:$0xff]
        %v6075 = vld [vmem:[#allocation17 + $0x188] sm:$0xff]
        %v6076 = vld [vmem:[#allocation17 + $0x190] sm:$0xff]
        %v6077 = vld [vmem:[#allocation17 + $0x198] sm:$0xff]
        %v6078 = vld [vmem:[#allocation17 + $0x1a0] sm:$0xff]
        %v6079 = vld [vmem:[#allocation17 + $0x1a8] sm:$0xff]
        %v6080 = vld [vmem:[#allocation17 + $0x1b0] sm:$0xff]
        %v6081 = vld [vmem:[#allocation17 + $0x1b8] sm:$0xff]
        %v6082 = vld [vmem:[#allocation17 + $0x1c0] sm:$0xff]
        %v6083 = vld [vmem:[#allocation17 + $0x1c8] sm:$0xff]
        %v6084 = vld [vmem:[#allocation17 + $0x1d0] sm:$0xff]
        %v6085 = vld [vmem:[#allocation17 + $0x1d8] sm:$0xff]
        %v6086 = vld [vmem:[#allocation17 + $0x1e0] sm:$0xff]
        %v6087 = vld [vmem:[#allocation17 + $0x1e8] sm:$0xff]
        %v6088 = vld [vmem:[#allocation17 + $0x1f0] sm:$0xff]
        %v6089 = vld [vmem:[#allocation17 + $0x1f8] sm:$0xff]
        %v6090 = vld [vmem:[#allocation19] sm:$0x3]
        %v6092 = vlaneseq
        %v6093 = vshrl.u32 %v6092, 7
        %v6094 = vsub.s32 0, %v6093
        %v6095 = vrot.slane %v6090, %v6094
        %v6096 = vlaneseq
        %v6097 = vshrl.u32 %v6096, 7
        %v6098 = vsub.s32 1, %v6097
        %v6099 = vrot.slane %v6090, %v6098
        %v6166 = vunpack.c.l.b16 %v6026
        %v6167 = vunpack.c.h.b16 %v6026
        %v6168 = vunpack.c.l.b16 %v6027
        %v6169 = vunpack.c.h.b16 %v6027
        %v6170 = vunpack.c.l.b16 %v6028
        %v6171 = vunpack.c.h.b16 %v6028
        %v6172 = vunpack.c.l.b16 %v6029
        %v6173 = vunpack.c.h.b16 %v6029
        %v6174 = vunpack.c.l.b16 %v6030
        %v6175 = vunpack.c.h.b16 %v6030
        %v6176 = vunpack.c.l.b16 %v6031
        %v6177 = vunpack.c.h.b16 %v6031
        %v6178 = vunpack.c.l.b16 %v6032
        %v6179 = vunpack.c.h.b16 %v6032
        %v6180 = vunpack.c.l.b16 %v6033
        %v6181 = vunpack.c.h.b16 %v6033
        %v6182 = vunpack.c.l.b16 %v6034
        %v6183 = vunpack.c.h.b16 %v6034
        %v6184 = vunpack.c.l.b16 %v6035
        %v6185 = vunpack.c.h.b16 %v6035
        %v6186 = vunpack.c.l.b16 %v6036
        %v6187 = vunpack.c.h.b16 %v6036
        %v6188 = vunpack.c.l.b16 %v6037
        %v6189 = vunpack.c.h.b16 %v6037
        %v6190 = vunpack.c.l.b16 %v6038
        %v6191 = vunpack.c.h.b16 %v6038
        %v6192 = vunpack.c.l.b16 %v6039
        %v6193 = vunpack.c.h.b16 %v6039
        %v6194 = vunpack.c.l.b16 %v6040
        %v6195 = vunpack.c.h.b16 %v6040
        %v6196 = vunpack.c.l.b16 %v6041
        %v6197 = vunpack.c.h.b16 %v6041
        %v6198 = vunpack.c.l.b16 %v6042
        %v6199 = vunpack.c.h.b16 %v6042
        %v6200 = vunpack.c.l.b16 %v6043
        %v6201 = vunpack.c.h.b16 %v6043
        %v6202 = vunpack.c.l.b16 %v6044
        %v6203 = vunpack.c.h.b16 %v6044
        %v6204 = vunpack.c.l.b16 %v6045
        %v6205 = vunpack.c.h.b16 %v6045
        %v6206 = vunpack.c.l.b16 %v6046
        %v6207 = vunpack.c.h.b16 %v6046
        %v6208 = vunpack.c.l.b16 %v6047
        %v6209 = vunpack.c.h.b16 %v6047
        %v6210 = vunpack.c.l.b16 %v6048
        %v6211 = vunpack.c.h.b16 %v6048
        %v6212 = vunpack.c.l.b16 %v6049
        %v6213 = vunpack.c.h.b16 %v6049
        %v6214 = vunpack.c.l.b16 %v6050
        %v6215 = vunpack.c.h.b16 %v6050
        %v6216 = vunpack.c.l.b16 %v6051
        %v6217 = vunpack.c.h.b16 %v6051
        %v6218 = vunpack.c.l.b16 %v6052
        %v6219 = vunpack.c.h.b16 %v6052
        %v6220 = vunpack.c.l.b16 %v6053
        %v6221 = vunpack.c.h.b16 %v6053
        %v6222 = vunpack.c.l.b16 %v6054
        %v6223 = vunpack.c.h.b16 %v6054
        %v6224 = vunpack.c.l.b16 %v6055
        %v6225 = vunpack.c.h.b16 %v6055
        %v6226 = vunpack.c.l.b16 %v6056
        %v6227 = vunpack.c.h.b16 %v6056
        %v6228 = vunpack.c.l.b16 %v6057
        %v6229 = vunpack.c.h.b16 %v6057
        %v6230 = vunpack.c.l.b16 %v6058
        %v6231 = vunpack.c.h.b16 %v6058
        %v6232 = vunpack.c.l.b16 %v6059
        %v6233 = vunpack.c.h.b16 %v6059
        %v6234 = vunpack.c.l.b16 %v6060
        %v6235 = vunpack.c.h.b16 %v6060
        %v6236 = vunpack.c.l.b16 %v6061
        %v6237 = vunpack.c.h.b16 %v6061
        %v6238 = vunpack.c.l.b16 %v6062
        %v6239 = vunpack.c.h.b16 %v6062
        %v6240 = vunpack.c.l.b16 %v6063
        %v6241 = vunpack.c.h.b16 %v6063
        %v6242 = vunpack.c.l.b16 %v6064
        %v6243 = vunpack.c.h.b16 %v6064
        %v6244 = vunpack.c.l.b16 %v6065
        %v6245 = vunpack.c.h.b16 %v6065
        %v6246 = vunpack.c.l.b16 %v6066
        %v6247 = vunpack.c.h.b16 %v6066
        %v6248 = vunpack.c.l.b16 %v6067
        %v6249 = vunpack.c.h.b16 %v6067
        %v6250 = vunpack.c.l.b16 %v6068
        %v6251 = vunpack.c.h.b16 %v6068
        %v6252 = vunpack.c.l.b16 %v6069
        %v6253 = vunpack.c.h.b16 %v6069
        %v6254 = vunpack.c.l.b16 %v6070
        %v6255 = vunpack.c.h.b16 %v6070
        %v6256 = vunpack.c.l.b16 %v6071
        %v6257 = vunpack.c.h.b16 %v6071
        %v6258 = vunpack.c.l.b16 %v6072
        %v6259 = vunpack.c.h.b16 %v6072
        %v6260 = vunpack.c.l.b16 %v6073
        %v6261 = vunpack.c.h.b16 %v6073
        %v6262 = vunpack.c.l.b16 %v6074
        %v6263 = vunpack.c.h.b16 %v6074
        %v6264 = vunpack.c.l.b16 %v6075
        %v6265 = vunpack.c.h.b16 %v6075
        %v6266 = vunpack.c.l.b16 %v6076
        %v6267 = vunpack.c.h.b16 %v6076
        %v6268 = vunpack.c.l.b16 %v6077
        %v6269 = vunpack.c.h.b16 %v6077
        %v6270 = vunpack.c.l.b16 %v6078
        %v6271 = vunpack.c.h.b16 %v6078
        %v6272 = vunpack.c.l.b16 %v6079
        %v6273 = vunpack.c.h.b16 %v6079
        %v6274 = vunpack.c.l.b16 %v6080
        %v6275 = vunpack.c.h.b16 %v6080
        %v6276 = vunpack.c.l.b16 %v6081
        %v6277 = vunpack.c.h.b16 %v6081
        %v6278 = vunpack.c.l.b16 %v6082
        %v6279 = vunpack.c.h.b16 %v6082
        %v6280 = vunpack.c.l.b16 %v6083
        %v6281 = vunpack.c.h.b16 %v6083
        %v6282 = vunpack.c.l.b16 %v6084
        %v6283 = vunpack.c.h.b16 %v6084
        %v6284 = vunpack.c.l.b16 %v6085
        %v6285 = vunpack.c.h.b16 %v6085
        %v6286 = vunpack.c.l.b16 %v6086
        %v6287 = vunpack.c.h.b16 %v6086
        %v6288 = vunpack.c.l.b16 %v6087
        %v6289 = vunpack.c.h.b16 %v6087
        %v6290 = vunpack.c.l.b16 %v6088
        %v6291 = vunpack.c.h.b16 %v6088
        %v6292 = vunpack.c.l.b16 %v6089
        %v6293 = vunpack.c.h.b16 %v6089
        %v6294 = vpack.c.b16 %v6168, %v6166
        %v6295 = vpack.c.b16 %v6169, %v6167
        %v6296 = vpack.c.b16 %v6172, %v6170
        %v6297 = vpack.c.b16 %v6173, %v6171
        %v6298 = vpack.c.b16 %v6176, %v6174
        %v6299 = vpack.c.b16 %v6177, %v6175
        %v6300 = vpack.c.b16 %v6180, %v6178
        %v6301 = vpack.c.b16 %v6181, %v6179
        %v6302 = vpack.c.b16 %v6184, %v6182
        %v6303 = vpack.c.b16 %v6185, %v6183
        %v6304 = vpack.c.b16 %v6188, %v6186
        %v6305 = vpack.c.b16 %v6189, %v6187
        %v6306 = vpack.c.b16 %v6192, %v6190
        %v6307 = vpack.c.b16 %v6193, %v6191
        %v6308 = vpack.c.b16 %v6196, %v6194
        %v6309 = vpack.c.b16 %v6197, %v6195
        %v6310 = vpack.c.b16 %v6200, %v6198
        %v6311 = vpack.c.b16 %v6201, %v6199
        %v6312 = vpack.c.b16 %v6204, %v6202
        %v6313 = vpack.c.b16 %v6205, %v6203
        %v6314 = vpack.c.b16 %v6208, %v6206
        %v6315 = vpack.c.b16 %v6209, %v6207
        %v6316 = vpack.c.b16 %v6212, %v6210
        %v6317 = vpack.c.b16 %v6213, %v6211
        %v6318 = vpack.c.b16 %v6216, %v6214
        %v6319 = vpack.c.b16 %v6217, %v6215
        %v6320 = vpack.c.b16 %v6220, %v6218
        %v6321 = vpack.c.b16 %v6221, %v6219
        %v6322 = vpack.c.b16 %v6224, %v6222
        %v6323 = vpack.c.b16 %v6225, %v6223
        %v6324 = vpack.c.b16 %v6228, %v6226
        %v6325 = vpack.c.b16 %v6229, %v6227
        %v6326 = vpack.c.b16 %v6232, %v6230
        %v6327 = vpack.c.b16 %v6233, %v6231
        %v6328 = vpack.c.b16 %v6236, %v6234
        %v6329 = vpack.c.b16 %v6237, %v6235
        %v6330 = vpack.c.b16 %v6240, %v6238
        %v6331 = vpack.c.b16 %v6241, %v6239
        %v6332 = vpack.c.b16 %v6244, %v6242
        %v6333 = vpack.c.b16 %v6245, %v6243
        %v6334 = vpack.c.b16 %v6248, %v6246
        %v6335 = vpack.c.b16 %v6249, %v6247
        %v6336 = vpack.c.b16 %v6252, %v6250
        %v6337 = vpack.c.b16 %v6253, %v6251
        %v6338 = vpack.c.b16 %v6256, %v6254
        %v6339 = vpack.c.b16 %v6257, %v6255
        %v6340 = vpack.c.b16 %v6260, %v6258
        %v6341 = vpack.c.b16 %v6261, %v6259
        %v6342 = vpack.c.b16 %v6264, %v6262
        %v6343 = vpack.c.b16 %v6265, %v6263
        %v6344 = vpack.c.b16 %v6268, %v6266
        %v6345 = vpack.c.b16 %v6269, %v6267
        %v6346 = vpack.c.b16 %v6272, %v6270
        %v6347 = vpack.c.b16 %v6273, %v6271
        %v6348 = vpack.c.b16 %v6276, %v6274
        %v6349 = vpack.c.b16 %v6277, %v6275
        %v6350 = vpack.c.b16 %v6280, %v6278
        %v6351 = vpack.c.b16 %v6281, %v6279
        %v6352 = vpack.c.b16 %v6284, %v6282
        %v6353 = vpack.c.b16 %v6285, %v6283
        %v6354 = vpack.c.b16 %v6288, %v6286
        %v6355 = vpack.c.b16 %v6289, %v6287
        %v6356 = vpack.c.b16 %v6292, %v6290
        %v6357 = vpack.c.b16 %v6293, %v6291
        %6422 = vmatprep.subr.bf16.mxu0 %v6295
        %6423 = vmatpush1.bf16.msra.mxu0 %v6294
        %6424 = vmatprep.subr.bf16.mxu0 %v6297
        %6425 = vmatpush1.bf16.msra.mxu0 %v6296
        %6426 = vmatprep.subr.bf16.mxu0 %v6299
        %6427 = vmatpush1.bf16.msra.mxu0 %v6298
        %6428 = vmatprep.subr.bf16.mxu0 %v6301
        %6429 = vmatpush1.bf16.msra.mxu0 %v6300
        %6430 = vmatprep.subr.bf16.mxu0 %v6303
        %6431 = vmatpush1.bf16.msra.mxu0 %v6302
        %6432 = vmatprep.subr.bf16.mxu0 %v6305
        %6433 = vmatpush1.bf16.msra.mxu0 %v6304
        %6434 = vmatprep.subr.bf16.mxu0 %v6307
        %6435 = vmatpush1.bf16.msra.mxu0 %v6306
        %6436 = vmatprep.subr.bf16.mxu0 %v6309
        %6437 = vmatpush1.bf16.msra.mxu0 %v6308
        %6438 = vmatprep.subr.bf16.mxu0 %v6311
        %6439 = vmatpush1.bf16.msra.mxu0 %v6310
        %6440 = vmatprep.subr.bf16.mxu0 %v6313
        %6441 = vmatpush1.bf16.msra.mxu0 %v6312
        %6442 = vmatprep.subr.bf16.mxu0 %v6315
        %6443 = vmatpush1.bf16.msra.mxu0 %v6314
        %6444 = vmatprep.subr.bf16.mxu0 %v6317
        %6445 = vmatpush1.bf16.msra.mxu0 %v6316
        %6446 = vmatprep.subr.bf16.mxu0 %v6319
        %6447 = vmatpush1.bf16.msra.mxu0 %v6318
        %6448 = vmatprep.subr.bf16.mxu0 %v6321
        %6449 = vmatpush1.bf16.msra.mxu0 %v6320
        %6450 = vmatprep.subr.bf16.mxu0 %v6323
        %6451 = vmatpush1.bf16.msra.mxu0 %v6322
        %6452 = vmatprep.subr.bf16.mxu0 %v6325
        %6453 = vmatpush1.bf16.msra.mxu0 %v6324
        %6454 = vmatprep.mubr.bf16.mxu0 %v6023
        %6455 = vmatmul.mubr.bf16.gmra.mrb[0].mxu0 %v6022
        %v6456 = vpop.f32.mrb[0].mxu0
        %v6457 = vadd.f32 %v6095, %v6456
        %v6458 = vpop.f32.mrb[0].mxu0
        %v6459 = vadd.f32 %v6099, %v6458
        %v6460 = vpop.f32.mrb[0].mxu0
        %v6461 = vpop.f32.mrb[0].mxu0
        %6462 = vdwg.mxu0
        %6463 = vmatprep.subr.bf16.mxu0 %v6327
        %6464 = vmatpush1.bf16.msra.mxu0 %v6326
        %6465 = vmatprep.subr.bf16.mxu0 %v6329
        %6466 = vmatpush1.bf16.msra.mxu0 %v6328
        %6467 = vmatprep.subr.bf16.mxu0 %v6331
        %6468 = vmatpush1.bf16.msra.mxu0 %v6330
        %6469 = vmatprep.subr.bf16.mxu0 %v6333
        %6470 = vmatpush1.bf16.msra.mxu0 %v6332
        %6471 = vmatprep.subr.bf16.mxu0 %v6335
        %6472 = vmatpush1.bf16.msra.mxu0 %v6334
        %6473 = vmatprep.subr.bf16.mxu0 %v6337
        %6474 = vmatpush1.bf16.msra.mxu0 %v6336
        %6475 = vmatprep.subr.bf16.mxu0 %v6339
        %6476 = vmatpush1.bf16.msra.mxu0 %v6338
        %6477 = vmatprep.subr.bf16.mxu0 %v6341
        %6478 = vmatpush1.bf16.msra.mxu0 %v6340
        %6479 = vmatprep.subr.bf16.mxu0 %v6343
        %6480 = vmatpush1.bf16.msra.mxu0 %v6342
        %6481 = vmatprep.subr.bf16.mxu0 %v6345
        %6482 = vmatpush1.bf16.msra.mxu0 %v6344
        %6483 = vmatprep.subr.bf16.mxu0 %v6347
        %6484 = vmatpush1.bf16.msra.mxu0 %v6346
        %6485 = vmatprep.subr.bf16.mxu0 %v6349
        %6486 = vmatpush1.bf16.msra.mxu0 %v6348
        %6487 = vmatprep.subr.bf16.mxu0 %v6351
        %6488 = vmatpush1.bf16.msra.mxu0 %v6350
        %6489 = vmatprep.subr.bf16.mxu0 %v6353
        %6490 = vmatpush1.bf16.msra.mxu0 %v6352
        %6491 = vmatprep.subr.bf16.mxu0 %v6355
        %6492 = vmatpush1.bf16.msra.mxu0 %v6354
        %6493 = vmatprep.subr.bf16.mxu0 %v6357
        %6494 = vmatpush1.bf16.msra.mxu0 %v6356
        %6495 = vmatprep.mubr.bf16.mxu0 %v6025
        %6496 = vmatmul.mubr.bf16.gmra.mrb[0].mxu0 %v6024
        %v6497 = vpop.f32.mrb[0].mxu0
        %v6498 = vadd.f32 %v6457, %v6497
        %v6499 = vpop.f32.mrb[0].mxu0
        %v6500 = vadd.f32 %v6459, %v6499
        %v6501 = vpop.f32.mrb[0].mxu0
        %v6502 = vpop.f32.mrb[0].mxu0
        %6503 = vdwg.mxu0
        %v6504 = vld [vmem:[#allocation20] sm:$0x3]
        %v6505 = vld [vmem:[#allocation22] sm:$0x3]
        %v6506 = vrot.slane %v6498, 4
        %v6507 = vadd.f32 %v6498, %v6506
        %v6508 = vrot.slane %v6507, 2
        %v6509 = vadd.f32 %v6507, %v6508
        %v6510 = vrot.slane %v6509, 1
        %v6511 = vadd.f32 %v6509, %v6510
        %v6512 = vrot.slane %v6500, 4
        %v6513 = vadd.f32 %v6500, %v6512
        %v6514 = vrot.slane %v6513, 2
        %v6515 = vadd.f32 %v6513, %v6514
        %v6516 = vrot.slane %v6515, 1
        %v6517 = vadd.f32 %v6515, %v6516
        %v6518 = vmul.f32 %v6511, %v5907
        %v6519 = vmul.f32 %v6517, %v5907
        %v6520 = vsub.f32 %v6498, %v6518
        %v6521 = vsub.f32 %v6500, %v6519
        %v6522 = vmul.f32 %v6520, %v6520
        %v6523 = vmul.f32 %v6521, %v6521
        %v6524 = vrot.slane %v6522, 4
        %v6525 = vadd.f32 %v6522, %v6524
        %v6526 = vrot.slane %v6525, 2
        %v6527 = vadd.f32 %v6525, %v6526
        %v6528 = vrot.slane %v6527, 1
        %v6529 = vadd.f32 %v6527, %v6528
        %v6530 = vrot.slane %v6523, 4
        %v6531 = vadd.f32 %v6523, %v6530
        %v6532 = vrot.slane %v6531, 2
        %v6533 = vadd.f32 %v6531, %v6532
        %v6534 = vrot.slane %v6533, 1
        %v6535 = vadd.f32 %v6533, %v6534
        %v6536 = vmul.f32 %v6529, %v5907
        %v6537 = vmul.f32 %v6535, %v5907
        %v6538 = vadd.f32 %v6536, 1e-05
        %v6539 = vadd.f32 %v6537, 1e-05
        %v6540 = vrsqrt.pop %v6538
        %v6541 = vrsqrt.pop %v6539
        %v6542 = vmul.f32 %v6520, %v6540
        %v6543 = vmul.f32 %v6521, %v6541
        %v6545 = vlaneseq
        %v6546 = vshrl.u32 %v6545, 7
        %v6547 = vsub.s32 0, %v6546
        %v6548 = vrot.slane %v6504, %v6547
        %v6549 = vlaneseq
        %v6550 = vshrl.u32 %v6549, 7
        %v6551 = vsub.s32 1, %v6550
        %v6552 = vrot.slane %v6504, %v6551
        %v6555 = vmul.f32 %v6542, %v6548
        %v6556 = vmul.f32 %v6543, %v6552
        %v6558 = vlaneseq
        %v6559 = vshrl.u32 %v6558, 7
        %v6560 = vsub.s32 0, %v6559
        %v6561 = vrot.slane %v6505, %v6560
        %v6562 = vlaneseq
        %v6563 = vshrl.u32 %v6562, 7
        %v6564 = vsub.s32 1, %v6563
        %v6565 = vrot.slane %v6505, %v6564
        %v6568 = vadd.f32 %v6555, %v6561
        %v6569 = vadd.f32 %v6556, %v6565
        %vm6570 = vcmp.gt.f32.partialorder %v6568, 0.0
        %vm6571 = vcmp.gt.f32.partialorder %v6569, 0.0
        %v6572 = vmul.f32 %v6568, 0.2
        %v6573 = vmul.f32 %v6569, 0.2
        %v6574 = vsel %vm6570, %v6568, %v6572
        %v6575 = vsel %vm6571, %v6569, %v6573
        %v6576 = vld [vmem:[#allocation23] sm:$0x3]
        %v6578 = vlaneseq
        %v6579 = vshrl.u32 %v6578, 7
        %v6580 = vsub.s32 0, %v6579
        %v6581 = vrot.slane %v6576, %v6580
        %v6582 = vlaneseq
        %v6583 = vshrl.u32 %v6582, 7
        %v6584 = vsub.s32 1, %v6583
        %v6585 = vrot.slane %v6576, %v6584
        %v6588 = vmul.f32 %v6574, %v6581
        %v6589 = vmul.f32 %v6575, %v6585
        %v6590 = vadd.f32 %v6588, %v6589
        %6591 = vadd.xlane.f32.xlu0 %v6590
        %v6592 = vpop.xlane.xlu0 %6591
        %v6593 = vld [vmem:[#allocation2] sm:$0x1]
        %v6595 = vlaneseq
        %v6596 = vshrl.u32 %v6595, 7
        %v6597 = vsub.s32 0, %v6596
        %v6598 = vrot.slane %v6593, %v6597
        %v6600 = vadd.f32 %v6592, %v6598
        %v6601 = vxor.u32 %v6600, 2147483648
        %v6602 = vmul.f32 %v6601, 1.442695
        %v6603 = vpow.pop %v6602
        %v6604 = vadd.f32 %v6603, 1.0
        %v6605 = vrcp.pop %v6604
        %v6606 = vmul.f32 1.0, %v6605
        %vm6607 = vcmask 7168
        %6608 = vst.msk [vmem:[%s707] sm:$0xff] %vm6607, %v6606
        %p6609 = scmp.lt.s32.totalorder %s40, 1
        %s6610 = scalar_select %p6609, %s40, 1
        %s6611 = smul.addr %s6610, 8
        %s6612 = scalar_lea.vmem %s15, %s6611
        // Predicated region
        $region137: #{tpu_custom_call.1} parent=79 // pred_check
          %p6613 = pneg %p383
        $region138: #{tpu_custom_call.1} parent=79 // pred_check_branch
          %6615 = sbr.rel (%p6613) target = $region140
        $region139: #{tpu_custom_call.1} parent=79 // pred_region
          _
        $region140: #{tpu_custom_call.1} parent=79 // pred_fallthru
          _
      $region80: #{tpu_custom_call.1} parent=5 // pred_fallthru
        _
      %p6616 = scmp.le.s32.totalorder 2, %s35
      // Predicated region
      $region141: #{tpu_custom_call.1} parent=5 // pred_check
        %p6617 = pneg %p6616
      $region142: #{tpu_custom_call.1} parent=5 // pred_check_branch
        %6619 = sbr.rel (%p6617) target = $region144
      $region143: #{tpu_custom_call.1} parent=5 // pred_region
        %s6620 = ssub.s32 %s35, 2
        // Predicated region
        $region145: #{tpu_custom_call.1} parent=143 // pred_check
          %p6621 = pneg %p389
        $region146: #{tpu_custom_call.1} parent=143 // pred_check_branch
          %6623 = sbr.rel (%p6621) target = $region148
        $region147: #{tpu_custom_call.1} parent=143 // pred_region
          %p6624 = scmp.lt.s32.totalorder %s41, 1
          %s6625 = scalar_select %p6624, %s41, 1
          %s6626 = smul.addr %s6625, 8
          %s6627 = scalar_lea.vmem %s15, %s6626
        $region148: #{tpu_custom_call.1} parent=143 // pred_fallthru
          _
      $region144: #{tpu_custom_call.1} parent=5 // pred_fallthru
        _
    $region6: #{tpu_custom_call.1} parent=1 // loop_footer
      %s39 = sadd.s32 1, %s35
    $region7: #{tpu_custom_call.1} parent=1 // loop_footer_branch
      %34 = sbr.rel target = $region3
    $region8: #{tpu_custom_call.1} parent=1 // loop_exit
      _
    %6628 = vsyncpa [#allocation4], 1
    %s6629 = scalar_lea.sflag [#allocation4], 1
    %6630 = vsyncpa %s6629, 1
    %6631 = vsyncpa [#allocation6], 1
    %s6632 = scalar_lea.sflag [#allocation6], 1
    %6633 = vsyncpa %s6632, 1
    %6634 = vsyncpa [#allocation9], 1
    %6635 = vsyncpa [#allocation12], 1
    %6636 = vsyncpa [#allocation15], 1
    %6637 = vsyncpa [#allocation18], 1
    %6638 = vsyncpa [#allocation21], 1
    %6639 = vsyncpa [#allocation24], 1

</llo_original>
